<compile_context>
chip_gen: v7x
topology: tpu7x:2x2x1
jax: 0.10.0
libtpu: 0.0.40
codegen_flags: <defaults>
</compile_context>

<pallas_src>
import functools

import jax
import jax.numpy as jnp
from jax import lax
from jax.experimental import pallas as pl
from jax.experimental.pallas import tpu as pltpu


def _make_block_kernel(H, W, Cin, P, stride, Ho, Wo, cdt):
    """Fused BasicBlock kernel for one batch element (NHWC, flattened weights)."""
    KH = KW = 3
    centre = (KH // 2) * KW + (KW // 2)  # tap (1, 1) of the 3x3 window

    def im2col(xp, cin, s, ho, wo):
        # xp: padded (hp, wp, cin) value.  Build the (ho*wo, KH*KW*cin) patch slab
        # (tap-major, channel-minor) so one fat MXU contraction does the conv.
        cols = []
        for kh in range(KH):
            for kw in range(KW):
                cols.append(xp[kh:kh + s * (ho - 1) + 1:s,
                               kw:kw + s * (wo - 1) + 1:s, :])
        slab = jnp.concatenate(cols, axis=-1)                  # (ho, wo, 9*cin)
        return slab.reshape(ho * wo, KH * KW * cin)

    def kernel(x_ref, w1_ref, w2_ref, wsc_ref, o_ref, xp_ref, hp_ref):
        # ---- stage x into a zero-padded VMEM scratch (halo for the 3x3 conv) ----
        xp_ref[...] = jnp.zeros_like(xp_ref)
        xp_ref[1:H + 1, 1:W + 1, :] = x_ref[0].astype(xp_ref.dtype)
        xp = xp_ref[...].astype(cdt)

        # ---- conv1: 3x3 / stride / pad=1, single MXU contraction, fused ReLU ----
        slab1 = im2col(xp, Cin, stride, Ho, Wo)                # (Ho*Wo, 9*Cin)
        h = jnp.dot(slab1, w1_ref[...], preferred_element_type=jnp.float32)
        h = jnp.maximum(h, 0.0)

        # ---- shortcut: 1x1 / stride conv.  The centre tap of slab1 is exactly
        #      the strided x (already resident) -> reuse it, no extra traffic. ----
        xs = slab1[:, centre * Cin:(centre + 1) * Cin]         # (Ho*Wo, Cin)
        sc = jnp.dot(xs, wsc_ref[...], preferred_element_type=jnp.float32)

        # ---- stage relu(h) into a zero-padded VMEM scratch for conv2's halo ----
        hp_ref[...] = jnp.zeros_like(hp_ref)
        hp_ref[1:Ho + 1, 1:Wo + 1, :] = h.reshape(Ho, Wo, P).astype(hp_ref.dtype)
        hp = hp_ref[...].astype(cdt)

        # ---- conv2: 3x3 / 1 / pad=1, single MXU contraction ----
        slab2 = im2col(hp, P, 1, Ho, Wo)                       # (Ho*Wo, 9*P)
        out = jnp.dot(slab2, w2_ref[...], preferred_element_type=jnp.float32)

        # ---- residual add + final ReLU (f32 epilogue), store ----
        out = jnp.maximum(out + sc, 0.0)
        o_ref[0] = out.reshape(Ho, Wo, P).astype(o_ref.dtype)

    return kernel


def basic_block_pallas(x_nhwc, params, *, stride=1, compute_dtype=None):
    """Fused BasicBlock forward: NHWC activations in, NHWC out, all convs in one kernel."""
    N, H, W, Cin = x_nhwc.shape
    KH, KW, _, P = params["w1"].shape
    assert (KH, KW) == (3, 3)
    Ho = (H + 2 - KH) // stride + 1
    Wo = (W + 2 - KW) // stride + 1
    cdt = jnp.dtype(compute_dtype) if compute_dtype is not None else x_nhwc.dtype

    x = x_nhwc.astype(cdt)
    # Fold the 3x3 taps into the contraction dim (tap-major, channel-minor),
    # matching the kernel's im2col ordering.
    w1 = params["w1"].reshape(KH * KW * Cin, P).astype(cdt)
    w2 = params["w2"].reshape(KH * KW * P, P).astype(cdt)
    wsc = params["wsc"].reshape(Cin, P).astype(cdt)

    kernel = _make_block_kernel(H, W, Cin, P, stride, Ho, Wo, cdt)

    return pl.pallas_call(
        kernel,
        out_shape=jax.ShapeDtypeStruct((N, Ho, Wo, P), cdt),
        grid=(N,),
        in_specs=[
            pl.BlockSpec((1, H, W, Cin), lambda n: (n, 0, 0, 0)),
            pl.BlockSpec((KH * KW * Cin, P), lambda n: (0, 0)),
            pl.BlockSpec((KH * KW * P, P), lambda n: (0, 0)),
            pl.BlockSpec((Cin, P), lambda n: (0, 0)),
        ],
        out_specs=pl.BlockSpec((1, Ho, Wo, P), lambda n: (n, 0, 0, 0)),
        scratch_shapes=[
            pltpu.VMEM((H + 2, W + 2, Cin), jnp.float32),      # zero-padded x
            pltpu.VMEM((Ho + 2, Wo + 2, P), jnp.float32),      # zero-padded relu(h)
        ],
        compiler_params=pltpu.CompilerParams(
            dimension_semantics=("parallel",),
        ),
    )(x, w1, w2, wsc)


def init_basic_block_params(key, in_planes, planes):
    """Deterministic kaiming-ish init, matching the conv shapes in __init__ (HWIO)."""
    k1, k2, k3 = jax.random.split(key, 3)

    def _w(k, kh, kw, cin, cout):
        fan_in = kh * kw * cin
        return (jax.random.normal(k, (kh, kw, cin, cout), jnp.float32)
                * (2.0 / fan_in) ** 0.5)

    return {
        "w1": _w(k1, 3, 3, in_planes, planes),   # DynamicConv2D(in_planes, planes, 3, stride, pad=1)
        "w2": _w(k2, 3, 3, planes, planes),      # DynamicConv2D(planes, planes, 3, 1, pad=1)
        "wsc": _w(k3, 1, 1, in_planes, planes),  # shortcut: DynamicConv2D(in_planes, planes, 1, stride)
    }


@functools.partial(jax.jit, static_argnames=("stride", "compute_dtype"))
def basic_block_forward(x_nchw, params, t=0, stride=1, compute_dtype=None):
    """BasicBlock.forward(x, t) — NCHW in / NCHW out, all conv math fused in Pallas."""
    del t  # TODO(synk): task-conditional weight selection not defined in reference.
    x = jnp.transpose(x_nchw, (0, 2, 3, 1))                    # NCHW -> NHWC
    out = basic_block_pallas(x, params, stride=stride, compute_dtype=compute_dtype)
    return jnp.transpose(out, (0, 3, 1, 2))                    # NHWC -> NCHW


def _reference_forward(x_nchw, params, stride=1):
    """Pure-JAX reference (lax conv) for correctness checking."""
    x = jnp.transpose(x_nchw, (0, 2, 3, 1))
    dn = ("NHWC", "HWIO", "NHWC")

    def conv(a, w, s, p):
        return lax.conv_general_dilated(a, w, (s, s), [(p, p), (p, p)],
                                        dimension_numbers=dn)

    h = jax.nn.relu(conv(x, params["w1"], stride, 1))
    out = conv(h, params["w2"], 1, 1) + conv(x, params["wsc"], stride, 0)
    out = jax.nn.relu(out)
    return jnp.transpose(out, (0, 3, 1, 2))


if __name__ == "__main__":
    key = jax.random.PRNGKey(0)
    k_x, k_p = jax.random.split(key)

    batch, in_planes, planes, spatial, stride = 2, 4, 8, 16, 1
    x = jax.random.normal(k_x, (batch, in_planes, spatial, spatial), jnp.float32)
    params = init_basic_block_params(k_p, in_planes, planes)

    # --- f32 path: tight check against the lax reference ---
    out = jax.block_until_ready(basic_block_forward(x, params, t=0, stride=stride))
    ref = _reference_forward(x, params, stride=stride)
    assert out.shape == (batch, planes, spatial, spatial), out.shape
    assert jnp.allclose(out, ref, atol=1e-4, rtol=1e-4), float(jnp.max(jnp.abs(out - ref)))

    # --- bf16-fed MXU path (f32 accumulation): loose check vs bf16-input reference ---
    out_bf16 = jax.block_until_ready(
        basic_block_forward(x, params, t=0, stride=stride, compute_dtype="bfloat16"))
    params_bf16 = {k: v.astype(jnp.bfloat16).astype(jnp.float32) for k, v in params.items()}
    ref_bf16 = _reference_forward(x.astype(jnp.bfloat16).astype(jnp.float32),
                                  params_bf16, stride=stride)
    err = float(jnp.max(jnp.abs(out_bf16.astype(jnp.float32) - ref_bf16)))
    assert jnp.allclose(out_bf16.astype(jnp.float32), ref_bf16, atol=1e-1, rtol=1e-1), err

    print("KERNEL_OK")
</pallas_src>

<mosaic_0001>
module attributes {stable_mosaic.version = 11 : i64} {
  func.func @kernel(%arg0: i32, %arg1: memref<1x16x16x4xf32, #tpu.memory_space<vmem>>, %arg2: memref<36x8xf32, #tpu.memory_space<vmem>>, %arg3: memref<72x8xf32, #tpu.memory_space<vmem>>, %arg4: memref<4x8xf32, #tpu.memory_space<vmem>>, %arg5: memref<1x16x16x8xf32, #tpu.memory_space<vmem>>, %arg6: memref<18x18x4xf32, #tpu.memory_space<vmem>>, %arg7: memref<18x18x8xf32, #tpu.memory_space<vmem>>) attributes {dimension_semantics = [#tpu.dimension_semantics<parallel>], iteration_bounds = array<i64: 2>, scalar_prefetch = 0 : i64, scratch_operands = 2 : i64, tpu.core_type = #tpu.core_type<tc>, window_params = [{transform_indices = @transform_0, window_bounds = array<i64: 1, 16, 16, 4>}, {pipeline_mode = #tpu.pipeline_mode<synchronous>, transform_indices = @transform_1, window_bounds = array<i64: 36, 8>}, {pipeline_mode = #tpu.pipeline_mode<synchronous>, transform_indices = @transform_2, window_bounds = array<i64: 72, 8>}, {pipeline_mode = #tpu.pipeline_mode<synchronous>, transform_indices = @transform_3, window_bounds = array<i64: 4, 8>}, {transform_indices = @transform_4, window_bounds = array<i64: 1, 16, 16, 8>}]} {
    %cst = arith.constant 0.000000e+00 : f32
    %0 = vector.broadcast %cst : f32 to vector<18x18x4xf32>
    %c0 = arith.constant 0 : index
    %c0_0 = arith.constant 0 : index
    %c0_1 = arith.constant 0 : index
    %1 = vector.load %arg6[%c0, %c0_0, %c0_1] : memref<18x18x4xf32, #tpu.memory_space<vmem>>, vector<18x18x4xf32>
    tpu.vector_store %arg6[%c0, %c0_0, %c0_1], %0 {strides = array<i32>} : memref<18x18x4xf32, #tpu.memory_space<vmem>>, vector<18x18x4xf32>,
    %c0_2 = arith.constant 0 : index
    %c0_3 = arith.constant 0 : index
    %c0_4 = arith.constant 0 : index
    %c0_5 = arith.constant 0 : index
    %2 = vector.load %arg1[%c0_2, %c0_3, %c0_4, %c0_5] : memref<1x16x16x4xf32, #tpu.memory_space<vmem>>, vector<1x16x16x4xf32>
    %3 = vector.shape_cast %2 : vector<1x16x16x4xf32> to vector<16x16x4xf32>
    %c1 = arith.constant 1 : index
    %c1_6 = arith.constant 1 : index
    %c0_7 = arith.constant 0 : index
    %4 = vector.load %arg6[%c1, %c1_6, %c0_7] : memref<18x18x4xf32, #tpu.memory_space<vmem>>, vector<16x16x4xf32>
    tpu.vector_store %arg6[%c1, %c1_6, %c0_7], %3 {strides = array<i32>} : memref<18x18x4xf32, #tpu.memory_space<vmem>>, vector<16x16x4xf32>,
    %c0_8 = arith.constant 0 : index
    %c0_9 = arith.constant 0 : index
    %c0_10 = arith.constant 0 : index
    %5 = vector.load %arg6[%c0_8, %c0_9, %c0_10] : memref<18x18x4xf32, #tpu.memory_space<vmem>>, vector<18x18x4xf32>
    %6 = vector.extract_strided_slice %5 {offsets = [0, 0, 0], sizes = [16, 16, 4], strides = [1, 1, 1]} : vector<18x18x4xf32> to vector<16x16x4xf32>
    %7 = vector.extract_strided_slice %5 {offsets = [0, 1, 0], sizes = [16, 16, 4], strides = [1, 1, 1]} : vector<18x18x4xf32> to vector<16x16x4xf32>
    %8 = vector.extract_strided_slice %5 {offsets = [0, 2, 0], sizes = [16, 16, 4], strides = [1, 1, 1]} : vector<18x18x4xf32> to vector<16x16x4xf32>
    %9 = vector.extract_strided_slice %5 {offsets = [1, 0, 0], sizes = [16, 16, 4], strides = [1, 1, 1]} : vector<18x18x4xf32> to vector<16x16x4xf32>
    %10 = vector.extract_strided_slice %5 {offsets = [1, 1, 0], sizes = [16, 16, 4], strides = [1, 1, 1]} : vector<18x18x4xf32> to vector<16x16x4xf32>
    %11 = vector.extract_strided_slice %5 {offsets = [1, 2, 0], sizes = [16, 16, 4], strides = [1, 1, 1]} : vector<18x18x4xf32> to vector<16x16x4xf32>
    %12 = vector.extract_strided_slice %5 {offsets = [2, 0, 0], sizes = [16, 16, 4], strides = [1, 1, 1]} : vector<18x18x4xf32> to vector<16x16x4xf32>
    %13 = vector.extract_strided_slice %5 {offsets = [2, 1, 0], sizes = [16, 16, 4], strides = [1, 1, 1]} : vector<18x18x4xf32> to vector<16x16x4xf32>
    %14 = vector.extract_strided_slice %5 {offsets = [2, 2, 0], sizes = [16, 16, 4], strides = [1, 1, 1]} : vector<18x18x4xf32> to vector<16x16x4xf32>
    %15 = tpu.concatenate %6, %7, %8, %9, %10, %11, %12, %13, %14 in 2 : vector<16x16x4xf32>, vector<16x16x4xf32>, vector<16x16x4xf32>, vector<16x16x4xf32>, vector<16x16x4xf32>, vector<16x16x4xf32>, vector<16x16x4xf32>, vector<16x16x4xf32>, vector<16x16x4xf32> -> vector<16x16x36xf32>
    %16 = vector.shape_cast %15 : vector<16x16x36xf32> to vector<256x36xf32>
    %c0_11 = arith.constant 0 : index
    %c0_12 = arith.constant 0 : index
    %17 = vector.load %arg2[%c0_11, %c0_12] : memref<36x8xf32, #tpu.memory_space<vmem>>, vector<36x8xf32>
    %cst_13 = arith.constant dense<0.000000e+00> : vector<256x8xf32>
    %18 = tpu.matmul %16, %17, %cst_13 {dimension_numbers = #tpu.dot_dimension_numbers<[1], [0], [0], [1], [0, 0, 1, 1], [], []>} : vector<256x36xf32>, vector<36x8xf32>, vector<256x8xf32> -> vector<256x8xf32>
    %cst_14 = arith.constant 0.000000e+00 : f32
    %19 = vector.broadcast %cst_14 : f32 to vector<256x8xf32>
    %20 = arith.maximumf %18, %19 : vector<256x8xf32>
    %21 = vector.extract_strided_slice %16 {offsets = [0, 16], sizes = [256, 4], strides = [1, 1]} : vector<256x36xf32> to vector<256x4xf32>
    %c0_15 = arith.constant 0 : index
    %c0_16 = arith.constant 0 : index
    %22 = vector.load %arg4[%c0_15, %c0_16] : memref<4x8xf32, #tpu.memory_space<vmem>>, vector<4x8xf32>
    %cst_17 = arith.constant dense<0.000000e+00> : vector<256x8xf32>
    %23 = tpu.matmul %21, %22, %cst_17 {dimension_numbers = #tpu.dot_dimension_numbers<[1], [0], [0], [1], [0, 0, 1, 1], [], []>} : vector<256x4xf32>, vector<4x8xf32>, vector<256x8xf32> -> vector<256x8xf32>
    %cst_18 = arith.constant 0.000000e+00 : f32
    %24 = vector.broadcast %cst_18 : f32 to vector<18x18x8xf32>
    %c0_19 = arith.constant 0 : index
    %c0_20 = arith.constant 0 : index
    %c0_21 = arith.constant 0 : index
    %25 = vector.load %arg7[%c0_19, %c0_20, %c0_21] : memref<18x18x8xf32, #tpu.memory_space<vmem>>, vector<18x18x8xf32>
    tpu.vector_store %arg7[%c0_19, %c0_20, %c0_21], %24 {strides = array<i32>} : memref<18x18x8xf32, #tpu.memory_space<vmem>>, vector<18x18x8xf32>,
    %26 = vector.shape_cast %20 : vector<256x8xf32> to vector<16x16x8xf32>
    %c1_22 = arith.constant 1 : index
    %c1_23 = arith.constant 1 : index
    %c0_24 = arith.constant 0 : index
    %27 = vector.load %arg7[%c1_22, %c1_23, %c0_24] : memref<18x18x8xf32, #tpu.memory_space<vmem>>, vector<16x16x8xf32>
    tpu.vector_store %arg7[%c1_22, %c1_23, %c0_24], %26 {strides = array<i32>} : memref<18x18x8xf32, #tpu.memory_space<vmem>>, vector<16x16x8xf32>,
    %c0_25 = arith.constant 0 : index
    %c0_26 = arith.constant 0 : index
    %c0_27 = arith.constant 0 : index
    %28 = vector.load %arg7[%c0_25, %c0_26, %c0_27] : memref<18x18x8xf32, #tpu.memory_space<vmem>>, vector<18x18x8xf32>
    %29 = vector.extract_strided_slice %28 {offsets = [0, 0, 0], sizes = [16, 16, 8], strides = [1, 1, 1]} : vector<18x18x8xf32> to vector<16x16x8xf32>
    %30 = vector.extract_strided_slice %28 {offsets = [0, 1, 0], sizes = [16, 16, 8], strides = [1, 1, 1]} : vector<18x18x8xf32> to vector<16x16x8xf32>
    %31 = vector.extract_strided_slice %28 {offsets = [0, 2, 0], sizes = [16, 16, 8], strides = [1, 1, 1]} : vector<18x18x8xf32> to vector<16x16x8xf32>
    %32 = vector.extract_strided_slice %28 {offsets = [1, 0, 0], sizes = [16, 16, 8], strides = [1, 1, 1]} : vector<18x18x8xf32> to vector<16x16x8xf32>
    %33 = vector.extract_strided_slice %28 {offsets = [1, 1, 0], sizes = [16, 16, 8], strides = [1, 1, 1]} : vector<18x18x8xf32> to vector<16x16x8xf32>
    %34 = vector.extract_strided_slice %28 {offsets = [1, 2, 0], sizes = [16, 16, 8], strides = [1, 1, 1]} : vector<18x18x8xf32> to vector<16x16x8xf32>
    %35 = vector.extract_strided_slice %28 {offsets = [2, 0, 0], sizes = [16, 16, 8], strides = [1, 1, 1]} : vector<18x18x8xf32> to vector<16x16x8xf32>
    %36 = vector.extract_strided_slice %28 {offsets = [2, 1, 0], sizes = [16, 16, 8], strides = [1, 1, 1]} : vector<18x18x8xf32> to vector<16x16x8xf32>
    %37 = vector.extract_strided_slice %28 {offsets = [2, 2, 0], sizes = [16, 16, 8], strides = [1, 1, 1]} : vector<18x18x8xf32> to vector<16x16x8xf32>
    %38 = tpu.concatenate %29, %30, %31, %32, %33, %34, %35, %36, %37 in 2 : vector<16x16x8xf32>, vector<16x16x8xf32>, vector<16x16x8xf32>, vector<16x16x8xf32>, vector<16x16x8xf32>, vector<16x16x8xf32>, vector<16x16x8xf32>, vector<16x16x8xf32>, vector<16x16x8xf32> -> vector<16x16x72xf32>
    %39 = vector.shape_cast %38 : vector<16x16x72xf32> to vector<256x72xf32>
    %c0_28 = arith.constant 0 : index
    %c0_29 = arith.constant 0 : index
    %40 = vector.load %arg3[%c0_28, %c0_29] : memref<72x8xf32, #tpu.memory_space<vmem>>, vector<72x8xf32>
    %cst_30 = arith.constant dense<0.000000e+00> : vector<256x8xf32>
    %41 = tpu.matmul %39, %40, %cst_30 {dimension_numbers = #tpu.dot_dimension_numbers<[1], [0], [0], [1], [0, 0, 1, 1], [], []>} : vector<256x72xf32>, vector<72x8xf32>, vector<256x8xf32> -> vector<256x8xf32>
    %42 = arith.addf %41, %23 : vector<256x8xf32>
    %cst_31 = arith.constant 0.000000e+00 : f32
    %43 = vector.broadcast %cst_31 : f32 to vector<256x8xf32>
    %44 = arith.maximumf %42, %43 : vector<256x8xf32>
    %45 = vector.shape_cast %44 : vector<256x8xf32> to vector<16x16x8xf32>
    %c0_32 = arith.constant 0 : index
    %c0_33 = arith.constant 0 : index
    %c0_34 = arith.constant 0 : index
    %c0_35 = arith.constant 0 : index
    %46 = vector.load %arg5[%c0_32, %c0_33, %c0_34, %c0_35] : memref<1x16x16x8xf32, #tpu.memory_space<vmem>>, vector<1x16x16x8xf32>
    %47 = vector.shape_cast %46 : vector<1x16x16x8xf32> to vector<16x16x8xf32>
    %48 = vector.shape_cast %45 : vector<16x16x8xf32> to vector<1x16x16x8xf32>
    tpu.vector_store %arg5[%c0_32, %c0_33, %c0_34, %c0_35], %48 {strides = array<i32>} : memref<1x16x16x8xf32, #tpu.memory_space<vmem>>, vector<1x16x16x8xf32>,
    return
  }
  func.func @transform_0(%arg0: i32) -> (i32, i32, i32, i32) {
    %c0_i32 = arith.constant 0 : i32
    %c0_i32_0 = arith.constant 0 : i32
    %c0_i32_1 = arith.constant 0 : i32
    %c0_i32_2 = arith.constant 0 : i32
    return %arg0, %c0_i32, %c0_i32_0, %c0_i32_1 : i32, i32, i32, i32
  }
  func.func @transform_1(%arg0: i32) -> (i32, i32) {
    %c0_i32 = arith.constant 0 : i32
    %c0_i32_0 = arith.constant 0 : i32
    %c0_i32_1 = arith.constant 0 : i32
    return %c0_i32, %c0_i32_0 : i32, i32
  }
  func.func @transform_2(%arg0: i32) -> (i32, i32) {
    %c0_i32 = arith.constant 0 : i32
    %c0_i32_0 = arith.constant 0 : i32
    %c0_i32_1 = arith.constant 0 : i32
    return %c0_i32, %c0_i32_0 : i32, i32
  }
  func.func @transform_3(%arg0: i32) -> (i32, i32) {
    %c0_i32 = arith.constant 0 : i32
    %c0_i32_0 = arith.constant 0 : i32
    %c0_i32_1 = arith.constant 0 : i32
    return %c0_i32, %c0_i32_0 : i32, i32
  }
  func.func @transform_4(%arg0: i32) -> (i32, i32, i32, i32) {
    %c0_i32 = arith.constant 0 : i32
    %c0_i32_0 = arith.constant 0 : i32
    %c0_i32_1 = arith.constant 0 : i32
    %c0_i32_2 = arith.constant 0 : i32
    return %arg0, %c0_i32, %c0_i32_0, %c0_i32_1 : i32, i32, i32, i32
  }
}

</mosaic_0001>

<llo_original>
// kernel: basic_block_forward.1
$region0: #{basic_block_forward.1}
  #allocation0 [shape = 'u32[]', space=smem, size = 0x4, offset = 0x4, fixed_abs, tag = 'smem constant byte address 0x4 - core index']
  #allocation1 [shape = 'u32[144,128]{1,0:T(1,128)}', space=vmem, size = 0x12000, scoped, tag = 'internal scratch']
  #allocation2 [shape = 'f32[18,18,4]{2,1,0:T(8,128)}', space=vmem, size = 0x36000, scoped, tag = 'scratch operand']
  #allocation3 [shape = 'f32[18,18,8]{2,1,0:T(8,128)}', space=vmem, size = 0x36000, scoped, tag = 'scratch operand']
  %s0 = inlined_call_operand.vmem [shape: f32[2,16,16,4], index: 0, kind: input, shape index: {}]
  %s1 = inlined_call_operand.vmem [shape: f32[36,8], index: 1, kind: input, shape index: {}]
  %s2 = inlined_call_operand.vmem [shape: f32[72,8], index: 2, kind: input, shape index: {}]
  %s3 = inlined_call_operand.vmem [shape: f32[4,8], index: 3, kind: input, shape index: {}]
  %s4 = inlined_call_operand.vmem [shape: f32[2,16,16,8], index: 4, kind: output, shape index: {}]
  %s5 = sld [smem:[#allocation0]]
  $region49: #{basic_block_forward.1} parent=0
    _
  %s7 = ssub.s32 1, %s5
  %s8 = scalar_select 0, %s7, %s5
  loop: start=0, step=1, limit=4
  $region2: #{basic_block_forward.1} parent=0 // loop_pre_header
    _
  $region3: #{basic_block_forward.1} parent=0 // loop_header
    %s10 = sphi 0, %s14
    %p11 = scmp.ge.s32.totalorder %s10, 4
    %s20 = sphi 0, %s22
    %s23 = sphi 0, %s20
    %s24 = sphi 0, %s23
    %s40 = sphi 0, %s24
    %s44 = sphi 0, %s44
    %s46 = sphi 0, %s44
    %s47 = sphi 0, %s46
    %s61 = sphi 0, %s47
    %s65 = sphi 0, %s65
    %s67 = sphi 0, %s65
    %s68 = sphi 0, %s67
    %s82 = sphi 0, %s68
    %s86 = sphi 0, %s86
    %s88 = sphi 0, %s86
    %s89 = sphi 0, %s88
    %s103 = sphi 0, %s89
    %s109 = sphi 0, %s111
    %s112 = sphi 0, %s109
    %s113 = sphi 0, %s112
    %s129 = sphi 0, %s113
  $region4: #{basic_block_forward.1} parent=0 // loop_header_branch
    %13 = sbr.rel (%p11) target = $region8
  $region5: #{basic_block_forward.1} parent=0 // loop_body
    %s15 = ssub.s32 %s10, 1
    %s16 = ssub.s32 %s10, 2
    %s17 = sadd.s32 %s10, 1
    %s18 = ssub.s32 %s10, %s17
    %p19 = scmp.eq.s32.totalorder %s18, 0
    %s21 = sadd.s32 %s20, 1
    %s22 = scalar_select %p19, %s20, %s21
    %p25 = pneg %p19
    %p26 = scmp.eq.s32.totalorder %s10, 1
    %p27 = por %p25, %p26
    %p28 = scmp.ne.s32.totalorder %s20, %s23
    %p29 = scmp.eq.s32.totalorder %s10, 0
    %p30 = por %p28, %p29
    %p31 = scmp.ne.s32.totalorder %s20, %s23
    %p32 = scmp.eq.s32.totalorder %s15, 1
    %p33 = por %p31, %p32
    %p34 = scmp.ne.s32.totalorder %s23, %s24
    %p35 = scmp.eq.s32.totalorder %s15, 0
    %p36 = por %p34, %p35
    %p37 = scmp.ne.s32.totalorder %s23, %s24
    %p38 = scmp.eq.s32.totalorder %s16, 1
    %p39 = por %p37, %p38
    %p41 = scmp.ne.s32.totalorder %s24, %s40
    %p42 = scmp.eq.s32.totalorder %s16, 0
    %p43 = por %p41, %p42
    %s45 = sadd.s32 %s44, 1
    %p48 = scmp.eq.s32.totalorder %s10, 1
    %p49 = scmp.ne.s32.totalorder %s44, %s46
    %p50 = scmp.eq.s32.totalorder %s10, 0
    %p51 = por %p49, %p50
    %p52 = scmp.ne.s32.totalorder %s44, %s46
    %p53 = scmp.eq.s32.totalorder %s15, 1
    %p54 = por %p52, %p53
    %p55 = scmp.ne.s32.totalorder %s46, %s47
    %p56 = scmp.eq.s32.totalorder %s15, 0
    %p57 = por %p55, %p56
    %p58 = scmp.ne.s32.totalorder %s46, %s47
    %p59 = scmp.eq.s32.totalorder %s16, 1
    %p60 = por %p58, %p59
    %p62 = scmp.ne.s32.totalorder %s47, %s61
    %p63 = scmp.eq.s32.totalorder %s16, 0
    %p64 = por %p62, %p63
    %s66 = sadd.s32 %s65, 1
    %p69 = scmp.eq.s32.totalorder %s10, 1
    %p70 = scmp.ne.s32.totalorder %s65, %s67
    %p71 = scmp.eq.s32.totalorder %s10, 0
    %p72 = por %p70, %p71
    %p73 = scmp.ne.s32.totalorder %s65, %s67
    %p74 = scmp.eq.s32.totalorder %s15, 1
    %p75 = por %p73, %p74
    %p76 = scmp.ne.s32.totalorder %s67, %s68
    %p77 = scmp.eq.s32.totalorder %s15, 0
    %p78 = por %p76, %p77
    %p79 = scmp.ne.s32.totalorder %s67, %s68
    %p80 = scmp.eq.s32.totalorder %s16, 1
    %p81 = por %p79, %p80
    %p83 = scmp.ne.s32.totalorder %s68, %s82
    %p84 = scmp.eq.s32.totalorder %s16, 0
    %p85 = por %p83, %p84
    %s87 = sadd.s32 %s86, 1
    %p90 = scmp.eq.s32.totalorder %s10, 1
    %p91 = scmp.ne.s32.totalorder %s86, %s88
    %p92 = scmp.eq.s32.totalorder %s10, 0
    %p93 = por %p91, %p92
    %p94 = scmp.ne.s32.totalorder %s86, %s88
    %p95 = scmp.eq.s32.totalorder %s15, 1
    %p96 = por %p94, %p95
    %p97 = scmp.ne.s32.totalorder %s88, %s89
    %p98 = scmp.eq.s32.totalorder %s15, 0
    %p99 = por %p97, %p98
    %p100 = scmp.ne.s32.totalorder %s88, %s89
    %p101 = scmp.eq.s32.totalorder %s16, 1
    %p102 = por %p100, %p101
    %p104 = scmp.ne.s32.totalorder %s89, %s103
    %p105 = scmp.eq.s32.totalorder %s16, 0
    %p106 = por %p104, %p105
    %s107 = ssub.s32 %s10, %s17
    %p108 = scmp.eq.s32.totalorder %s107, 0
    %s110 = sadd.s32 %s109, 1
    %s111 = scalar_select %p108, %s109, %s110
    %p114 = pneg %p108
    %p115 = scmp.eq.s32.totalorder %s10, 1
    %p116 = por %p114, %p115
    %p117 = scmp.ne.s32.totalorder %s109, %s112
    %p118 = scmp.eq.s32.totalorder %s10, 0
    %p119 = por %p117, %p118
    %p120 = scmp.ne.s32.totalorder %s109, %s112
    %p121 = scmp.eq.s32.totalorder %s15, 1
    %p122 = por %p120, %p121
    %p123 = scmp.ne.s32.totalorder %s112, %s113
    %p124 = scmp.eq.s32.totalorder %s15, 0
    %p125 = por %p123, %p124
    %p126 = scmp.ne.s32.totalorder %s112, %s113
    %p127 = scmp.eq.s32.totalorder %s16, 1
    %p128 = por %p126, %p127
    %p130 = scmp.ne.s32.totalorder %s113, %s129
    %p131 = scmp.eq.s32.totalorder %s16, 0
    %p132 = por %p130, %p131
    %p133 = scmp.le.s32.totalorder 1, %s10
    %p134 = scmp.lt.s32.totalorder %s10, 3
    %p135 = pnand %p133, %p134
    %p136 = pneg %p135
    // Predicated region
    $region9: #{basic_block_forward.1} parent=5 // pred_check
      _
    $region10: #{basic_block_forward.1} parent=5 // pred_check_branch
      %138 = sbr.rel (%p135) target = $region12
    $region11: #{basic_block_forward.1} parent=5 // pred_region
      %s139 = ssub.s32 %s10, 1
      // Predicated region
      $region13: #{basic_block_forward.1} parent=11 // pred_check
        %p140 = pneg %p57
      $region14: #{basic_block_forward.1} parent=11 // pred_check_branch
        %142 = sbr.rel (%p140) target = $region16
      $region15: #{basic_block_forward.1} parent=11 // pred_region
        _
      $region16: #{basic_block_forward.1} parent=11 // pred_fallthru
        _
      // Predicated region
      $region17: #{basic_block_forward.1} parent=11 // pred_check
        %p143 = pneg %p78
      $region18: #{basic_block_forward.1} parent=11 // pred_check_branch
        %145 = sbr.rel (%p143) target = $region20
      $region19: #{basic_block_forward.1} parent=11 // pred_region
        _
      $region20: #{basic_block_forward.1} parent=11 // pred_fallthru
        _
      // Predicated region
      $region21: #{basic_block_forward.1} parent=11 // pred_check
        %p146 = pneg %p99
      $region22: #{basic_block_forward.1} parent=11 // pred_check_branch
        %148 = sbr.rel (%p146) target = $region24
      $region23: #{basic_block_forward.1} parent=11 // pred_region
        _
      $region24: #{basic_block_forward.1} parent=11 // pred_fallthru
        _
    $region12: #{basic_block_forward.1} parent=5 // pred_fallthru
      _
    %p149 = scmp.lt.s32.totalorder %s10, 2
    // Predicated region
    $region25: #{basic_block_forward.1} parent=5 // pred_check
      %p150 = pneg %p149
    $region26: #{basic_block_forward.1} parent=5 // pred_check_branch
      %152 = sbr.rel (%p150) target = $region28
    $region27: #{basic_block_forward.1} parent=5 // pred_region
      // Predicated region
      $region29: #{basic_block_forward.1} parent=27 // pred_check
        %p153 = pneg %p30
      $region30: #{basic_block_forward.1} parent=27 // pred_check_branch
        %155 = sbr.rel (%p153) target = $region32
      $region31: #{basic_block_forward.1} parent=27 // pred_region
        %p156 = scmp.lt.s32.totalorder %s10, 1
        %s157 = scalar_select %p156, %s10, 1
        %s158 = smul.addr %s157, 32
        %s159 = smul.addr %s158, 8
        %s160 = scalar_lea.vmem %s0, %s159
      $region32: #{basic_block_forward.1} parent=27 // pred_fallthru
        _
    $region28: #{basic_block_forward.1} parent=5 // pred_fallthru
      _
    %p161 = scmp.le.s32.totalorder 1, %s10
    %p162 = scmp.lt.s32.totalorder %s10, 3
    %p163 = pnand %p161, %p162
    %p164 = pneg %p163
    // Predicated region
    $region33: #{basic_block_forward.1} parent=5 // pred_check
      _
    $region34: #{basic_block_forward.1} parent=5 // pred_check_branch
      %166 = sbr.rel (%p163) target = $region36
    $region35: #{basic_block_forward.1} parent=5 // pred_region
      %s167 = ssub.s32 %s10, 1
      %p168 = scmp.lt.s32.totalorder %s15, 1
      %s169 = scalar_select %p168, %s15, 1
      %s170 = smul.addr %s169, 32
      %s171 = smul.addr %s170, 8
      %s172 = scalar_lea.vmem %s0, %s171
      %p173 = pneg %p36
      %p174 = pneg %p33
      %p175 = pneg %p57
      %p176 = pneg %p54
      %p177 = pneg %p78
      %p178 = pneg %p75
      %p179 = pneg %p99
      %p180 = pneg %p96
      %p181 = pneg %p125
      %p182 = pneg %p122
      %p183 = scmp.lt.s32.totalorder %s15, 1
      %s184 = scalar_select %p183, %s15, 1
      %s185 = smul.addr %s184, 32
      %s186 = smul.addr %s185, 8
      %s187 = scalar_lea.vmem %s4, %s186
      %p188 = scmp.lt.s32.totalorder %s15, 1
      %s189 = scalar_select %p188, %s15, 1
      %s190 = smul.addr %s189, 32
      %s191 = smul.addr %s190, 8
      %s192 = scalar_lea.vmem %s0, %s191
      %p193 = scmp.lt.s32.totalorder %s15, 1
      %s194 = scalar_select %p193, %s15, 1
      %s195 = smul.addr %s194, 32
      %s196 = smul.addr %s195, 8
      %s197 = scalar_lea.vmem %s4, %s196
      %vm198 = vcmask 31744
      %199 = vst.msk [vmem:[#allocation2] sm:$0xff] %vm198, 0.0
      %200 = vst.msk [vmem:[#allocation2 + $0x8] sm:$0xff] %vm198, 0.0
      %vm201 = vcmask 25600
      %202 = vst.msk [vmem:[#allocation2 + $0x10] sm:$0x3] %vm201, 0.0
      %203 = vst.msk [vmem:[#allocation2 + $0x18] sm:$0xff] %vm198, 0.0
      %204 = vst.msk [vmem:[#allocation2 + $0x20] sm:$0xff] %vm198, 0.0
      %205 = vst.msk [vmem:[#allocation2 + $0x28] sm:$0x3] %vm201, 0.0
      %206 = vst.msk [vmem:[#allocation2 + $0x30] sm:$0xff] %vm198, 0.0
      %207 = vst.msk [vmem:[#allocation2 + $0x38] sm:$0xff] %vm198, 0.0
      %208 = vst.msk [vmem:[#allocation2 + $0x40] sm:$0x3] %vm201, 0.0
      %209 = vst.msk [vmem:[#allocation2 + $0x48] sm:$0xff] %vm198, 0.0
      %210 = vst.msk [vmem:[#allocation2 + $0x50] sm:$0xff] %vm198, 0.0
      %211 = vst.msk [vmem:[#allocation2 + $0x58] sm:$0x3] %vm201, 0.0
      %212 = vst.msk [vmem:[#allocation2 + $0x60] sm:$0xff] %vm198, 0.0
      %213 = vst.msk [vmem:[#allocation2 + $0x68] sm:$0xff] %vm198, 0.0
      %214 = vst.msk [vmem:[#allocation2 + $0x70] sm:$0x3] %vm201, 0.0
      %215 = vst.msk [vmem:[#allocation2 + $0x78] sm:$0xff] %vm198, 0.0
      %216 = vst.msk [vmem:[#allocation2 + $0x80] sm:$0xff] %vm198, 0.0
      %217 = vst.msk [vmem:[#allocation2 + $0x88] sm:$0x3] %vm201, 0.0
      %218 = vst.msk [vmem:[#allocation2 + $0x90] sm:$0xff] %vm198, 0.0
      %219 = vst.msk [vmem:[#allocation2 + $0x98] sm:$0xff] %vm198, 0.0
      %220 = vst.msk [vmem:[#allocation2 + $0xa0] sm:$0x3] %vm201, 0.0
      %221 = vst.msk [vmem:[#allocation2 + $0xa8] sm:$0xff] %vm198, 0.0
      %222 = vst.msk [vmem:[#allocation2 + $0xb0] sm:$0xff] %vm198, 0.0
      %223 = vst.msk [vmem:[#allocation2 + $0xb8] sm:$0x3] %vm201, 0.0
      %224 = vst.msk [vmem:[#allocation2 + $0xc0] sm:$0xff] %vm198, 0.0
      %225 = vst.msk [vmem:[#allocation2 + $0xc8] sm:$0xff] %vm198, 0.0
      %226 = vst.msk [vmem:[#allocation2 + $0xd0] sm:$0x3] %vm201, 0.0
      %227 = vst.msk [vmem:[#allocation2 + $0xd8] sm:$0xff] %vm198, 0.0
      %228 = vst.msk [vmem:[#allocation2 + $0xe0] sm:$0xff] %vm198, 0.0
      %229 = vst.msk [vmem:[#allocation2 + $0xe8] sm:$0x3] %vm201, 0.0
      %230 = vst.msk [vmem:[#allocation2 + $0xf0] sm:$0xff] %vm198, 0.0
      %231 = vst.msk [vmem:[#allocation2 + $0xf8] sm:$0xff] %vm198, 0.0
      %232 = vst.msk [vmem:[#allocation2 + $0x100] sm:$0x3] %vm201, 0.0
      %233 = vst.msk [vmem:[#allocation2 + $0x108] sm:$0xff] %vm198, 0.0
      %234 = vst.msk [vmem:[#allocation2 + $0x110] sm:$0xff] %vm198, 0.0
      %235 = vst.msk [vmem:[#allocation2 + $0x118] sm:$0x3] %vm201, 0.0
      %236 = vst.msk [vmem:[#allocation2 + $0x120] sm:$0xff] %vm198, 0.0
      %237 = vst.msk [vmem:[#allocation2 + $0x128] sm:$0xff] %vm198, 0.0
      %238 = vst.msk [vmem:[#allocation2 + $0x130] sm:$0x3] %vm201, 0.0
      %239 = vst.msk [vmem:[#allocation2 + $0x138] sm:$0xff] %vm198, 0.0
      %240 = vst.msk [vmem:[#allocation2 + $0x140] sm:$0xff] %vm198, 0.0
      %241 = vst.msk [vmem:[#allocation2 + $0x148] sm:$0x3] %vm201, 0.0
      %242 = vst.msk [vmem:[#allocation2 + $0x150] sm:$0xff] %vm198, 0.0
      %243 = vst.msk [vmem:[#allocation2 + $0x158] sm:$0xff] %vm198, 0.0
      %244 = vst.msk [vmem:[#allocation2 + $0x160] sm:$0x3] %vm201, 0.0
      %245 = vst.msk [vmem:[#allocation2 + $0x168] sm:$0xff] %vm198, 0.0
      %246 = vst.msk [vmem:[#allocation2 + $0x170] sm:$0xff] %vm198, 0.0
      %247 = vst.msk [vmem:[#allocation2 + $0x178] sm:$0x3] %vm201, 0.0
      %248 = vst.msk [vmem:[#allocation2 + $0x180] sm:$0xff] %vm198, 0.0
      %249 = vst.msk [vmem:[#allocation2 + $0x188] sm:$0xff] %vm198, 0.0
      %250 = vst.msk [vmem:[#allocation2 + $0x190] sm:$0x3] %vm201, 0.0
      %251 = vst.msk [vmem:[#allocation2 + $0x198] sm:$0xff] %vm198, 0.0
      %252 = vst.msk [vmem:[#allocation2 + $0x1a0] sm:$0xff] %vm198, 0.0
      %253 = vst.msk [vmem:[#allocation2 + $0x1a8] sm:$0x3] %vm201, 0.0
      %v254 = vld [vmem:[%s192] sm:$0xff]
      %v255 = vld [vmem:[%s192 + $0x8] sm:$0xff]
      %v256 = vld [vmem:[%s192 + $0x10] sm:$0xff]
      %v257 = vld [vmem:[%s192 + $0x18] sm:$0xff]
      %v258 = vld [vmem:[%s192 + $0x20] sm:$0xff]
      %v259 = vld [vmem:[%s192 + $0x28] sm:$0xff]
      %v260 = vld [vmem:[%s192 + $0x30] sm:$0xff]
      %v261 = vld [vmem:[%s192 + $0x38] sm:$0xff]
      %v262 = vld [vmem:[%s192 + $0x40] sm:$0xff]
      %v263 = vld [vmem:[%s192 + $0x48] sm:$0xff]
      %v264 = vld [vmem:[%s192 + $0x50] sm:$0xff]
      %v265 = vld [vmem:[%s192 + $0x58] sm:$0xff]
      %v266 = vld [vmem:[%s192 + $0x60] sm:$0xff]
      %v267 = vld [vmem:[%s192 + $0x68] sm:$0xff]
      %v268 = vld [vmem:[%s192 + $0x70] sm:$0xff]
      %v269 = vld [vmem:[%s192 + $0x78] sm:$0xff]
      %v270 = vld [vmem:[%s192 + $0x80] sm:$0xff]
      %v271 = vld [vmem:[%s192 + $0x88] sm:$0xff]
      %v272 = vld [vmem:[%s192 + $0x90] sm:$0xff]
      %v273 = vld [vmem:[%s192 + $0x98] sm:$0xff]
      %v274 = vld [vmem:[%s192 + $0xa0] sm:$0xff]
      %v275 = vld [vmem:[%s192 + $0xa8] sm:$0xff]
      %v276 = vld [vmem:[%s192 + $0xb0] sm:$0xff]
      %v277 = vld [vmem:[%s192 + $0xb8] sm:$0xff]
      %v278 = vld [vmem:[%s192 + $0xc0] sm:$0xff]
      %v279 = vld [vmem:[%s192 + $0xc8] sm:$0xff]
      %v280 = vld [vmem:[%s192 + $0xd0] sm:$0xff]
      %v281 = vld [vmem:[%s192 + $0xd8] sm:$0xff]
      %v282 = vld [vmem:[%s192 + $0xe0] sm:$0xff]
      %v283 = vld [vmem:[%s192 + $0xe8] sm:$0xff]
      %v284 = vld [vmem:[%s192 + $0xf0] sm:$0xff]
      %v285 = vld [vmem:[%s192 + $0xf8] sm:$0xff]
      %s286 = scalar_lea.vmem [#allocation2], 24
      %287 = vst.msk [vmem:[%s286 + $0x1] sm:$0xff] %vm198, %v254
      %288 = vst.msk [vmem:[%s286 + $0x9] sm:$0xff] %vm198, %v255
      %289 = vst.msk [vmem:[%s286 + $0x19] sm:$0xff] %vm198, %v256
      %290 = vst.msk [vmem:[%s286 + $0x21] sm:$0xff] %vm198, %v257
      %291 = vst.msk [vmem:[%s286 + $0x31] sm:$0xff] %vm198, %v258
      %292 = vst.msk [vmem:[%s286 + $0x39] sm:$0xff] %vm198, %v259
      %293 = vst.msk [vmem:[%s286 + $0x49] sm:$0xff] %vm198, %v260
      %294 = vst.msk [vmem:[%s286 + $0x51] sm:$0xff] %vm198, %v261
      %295 = vst.msk [vmem:[%s286 + $0x61] sm:$0xff] %vm198, %v262
      %296 = vst.msk [vmem:[%s286 + $0x69] sm:$0xff] %vm198, %v263
      %297 = vst.msk [vmem:[%s286 + $0x79] sm:$0xff] %vm198, %v264
      %298 = vst.msk [vmem:[%s286 + $0x81] sm:$0xff] %vm198, %v265
      %299 = vst.msk [vmem:[%s286 + $0x91] sm:$0xff] %vm198, %v266
      %300 = vst.msk [vmem:[%s286 + $0x99] sm:$0xff] %vm198, %v267
      %301 = vst.msk [vmem:[%s286 + $0xa9] sm:$0xff] %vm198, %v268
      %302 = vst.msk [vmem:[%s286 + $0xb1] sm:$0xff] %vm198, %v269
      %303 = vst.msk [vmem:[%s286 + $0xc1] sm:$0xff] %vm198, %v270
      %304 = vst.msk [vmem:[%s286 + $0xc9] sm:$0xff] %vm198, %v271
      %305 = vst.msk [vmem:[%s286 + $0xd9] sm:$0xff] %vm198, %v272
      %306 = vst.msk [vmem:[%s286 + $0xe1] sm:$0xff] %vm198, %v273
      %307 = vst.msk [vmem:[%s286 + $0xf1] sm:$0xff] %vm198, %v274
      %308 = vst.msk [vmem:[%s286 + $0xf9] sm:$0xff] %vm198, %v275
      %309 = vst.msk [vmem:[%s286 + $0x109] sm:$0xff] %vm198, %v276
      %310 = vst.msk [vmem:[%s286 + $0x111] sm:$0xff] %vm198, %v277
      %311 = vst.msk [vmem:[%s286 + $0x121] sm:$0xff] %vm198, %v278
      %312 = vst.msk [vmem:[%s286 + $0x129] sm:$0xff] %vm198, %v279
      %313 = vst.msk [vmem:[%s286 + $0x139] sm:$0xff] %vm198, %v280
      %314 = vst.msk [vmem:[%s286 + $0x141] sm:$0xff] %vm198, %v281
      %315 = vst.msk [vmem:[%s286 + $0x151] sm:$0xff] %vm198, %v282
      %316 = vst.msk [vmem:[%s286 + $0x159] sm:$0xff] %vm198, %v283
      %317 = vst.msk [vmem:[%s286 + $0x169] sm:$0xff] %vm198, %v284
      %318 = vst.msk [vmem:[%s286 + $0x171] sm:$0xff] %vm198, %v285
      %v319 = vld [vmem:[#allocation2] sm:$0xff]
      %v320 = vld [vmem:[#allocation2 + $0x8] sm:$0xff]
      %v321 = vld [vmem:[#allocation2 + $0x10] sm:$0x3]
      %v322 = vld [vmem:[#allocation2 + $0x18] sm:$0xff]
      %v323 = vld [vmem:[#allocation2 + $0x20] sm:$0xff]
      %v324 = vld [vmem:[#allocation2 + $0x28] sm:$0x3]
      %v325 = vld [vmem:[#allocation2 + $0x30] sm:$0xff]
      %v326 = vld [vmem:[#allocation2 + $0x38] sm:$0xff]
      %v327 = vld [vmem:[#allocation2 + $0x40] sm:$0x3]
      %v328 = vld [vmem:[#allocation2 + $0x48] sm:$0xff]
      %v329 = vld [vmem:[#allocation2 + $0x50] sm:$0xff]
      %v330 = vld [vmem:[#allocation2 + $0x58] sm:$0x3]
      %v331 = vld [vmem:[#allocation2 + $0x60] sm:$0xff]
      %v332 = vld [vmem:[#allocation2 + $0x68] sm:$0xff]
      %v333 = vld [vmem:[#allocation2 + $0x70] sm:$0x3]
      %v334 = vld [vmem:[#allocation2 + $0x78] sm:$0xff]
      %v335 = vld [vmem:[#allocation2 + $0x80] sm:$0xff]
      %v336 = vld [vmem:[#allocation2 + $0x88] sm:$0x3]
      %v337 = vld [vmem:[#allocation2 + $0x90] sm:$0xff]
      %v338 = vld [vmem:[#allocation2 + $0x98] sm:$0xff]
      %v339 = vld [vmem:[#allocation2 + $0xa0] sm:$0x3]
      %v340 = vld [vmem:[#allocation2 + $0xa8] sm:$0xff]
      %v341 = vld [vmem:[#allocation2 + $0xb0] sm:$0xff]
      %v342 = vld [vmem:[#allocation2 + $0xb8] sm:$0x3]
      %v343 = vld [vmem:[#allocation2 + $0xc0] sm:$0xff]
      %v344 = vld [vmem:[#allocation2 + $0xc8] sm:$0xff]
      %v345 = vld [vmem:[#allocation2 + $0xd0] sm:$0x3]
      %v346 = vld [vmem:[#allocation2 + $0xd8] sm:$0xff]
      %v347 = vld [vmem:[#allocation2 + $0xe0] sm:$0xff]
      %v348 = vld [vmem:[#allocation2 + $0xe8] sm:$0x3]
      %v349 = vld [vmem:[#allocation2 + $0xf0] sm:$0xff]
      %v350 = vld [vmem:[#allocation2 + $0xf8] sm:$0xff]
      %v351 = vld [vmem:[#allocation2 + $0x100] sm:$0x3]
      %v352 = vld [vmem:[#allocation2 + $0x108] sm:$0xff]
      %v353 = vld [vmem:[#allocation2 + $0x110] sm:$0xff]
      %v354 = vld [vmem:[#allocation2 + $0x118] sm:$0x3]
      %v355 = vld [vmem:[#allocation2 + $0x120] sm:$0xff]
      %v356 = vld [vmem:[#allocation2 + $0x128] sm:$0xff]
      %v357 = vld [vmem:[#allocation2 + $0x130] sm:$0x3]
      %v358 = vld [vmem:[#allocation2 + $0x138] sm:$0xff]
      %v359 = vld [vmem:[#allocation2 + $0x140] sm:$0xff]
      %v360 = vld [vmem:[#allocation2 + $0x148] sm:$0x3]
      %v361 = vld [vmem:[#allocation2 + $0x150] sm:$0xff]
      %v362 = vld [vmem:[#allocation2 + $0x158] sm:$0xff]
      %v363 = vld [vmem:[#allocation2 + $0x160] sm:$0x3]
      %v364 = vld [vmem:[#allocation2 + $0x168] sm:$0xff]
      %v365 = vld [vmem:[#allocation2 + $0x170] sm:$0xff]
      %v366 = vld [vmem:[#allocation2 + $0x178] sm:$0x3]
      %v367 = vld [vmem:[#allocation2 + $0x180] sm:$0xff]
      %v368 = vld [vmem:[#allocation2 + $0x188] sm:$0xff]
      %v369 = vld [vmem:[#allocation2 + $0x190] sm:$0x3]
      %v370 = vld [vmem:[#allocation2 + $0x198] sm:$0xff]
      %v371 = vld [vmem:[#allocation2 + $0x1a0] sm:$0xff]
      %v372 = vld [vmem:[#allocation2 + $0x1a8] sm:$0x3]
      %vm421 = vcmask 1046528
      %v422 = vrot.slane %v319, 1
      %v423 = vrot.slane %v320, 1
      %v424 = vsel %vm421, %v422, %v423
      %v425 = vrot.slane %v321, 1
      %v426 = vsel %vm421, %v423, %v425
      %v427 = vrot.slane %v322, 1
      %v428 = vrot.slane %v323, 1
      %v429 = vsel %vm421, %v427, %v428
      %v430 = vrot.slane %v324, 1
      %v431 = vsel %vm421, %v428, %v430
      %v432 = vrot.slane %v325, 1
      %v433 = vrot.slane %v326, 1
      %v434 = vsel %vm421, %v432, %v433
      %v435 = vrot.slane %v327, 1
      %v436 = vsel %vm421, %v433, %v435
      %v437 = vrot.slane %v328, 1
      %v438 = vrot.slane %v329, 1
      %v439 = vsel %vm421, %v437, %v438
      %v440 = vrot.slane %v330, 1
      %v441 = vsel %vm421, %v438, %v440
      %v442 = vrot.slane %v331, 1
      %v443 = vrot.slane %v332, 1
      %v444 = vsel %vm421, %v442, %v443
      %v445 = vrot.slane %v333, 1
      %v446 = vsel %vm421, %v443, %v445
      %v447 = vrot.slane %v334, 1
      %v448 = vrot.slane %v335, 1
      %v449 = vsel %vm421, %v447, %v448
      %v450 = vrot.slane %v336, 1
      %v451 = vsel %vm421, %v448, %v450
      %v452 = vrot.slane %v337, 1
      %v453 = vrot.slane %v338, 1
      %v454 = vsel %vm421, %v452, %v453
      %v455 = vrot.slane %v339, 1
      %v456 = vsel %vm421, %v453, %v455
      %v457 = vrot.slane %v340, 1
      %v458 = vrot.slane %v341, 1
      %v459 = vsel %vm421, %v457, %v458
      %v460 = vrot.slane %v342, 1
      %v461 = vsel %vm421, %v458, %v460
      %v462 = vrot.slane %v343, 1
      %v463 = vrot.slane %v344, 1
      %v464 = vsel %vm421, %v462, %v463
      %v465 = vrot.slane %v345, 1
      %v466 = vsel %vm421, %v463, %v465
      %v467 = vrot.slane %v346, 1
      %v468 = vrot.slane %v347, 1
      %v469 = vsel %vm421, %v467, %v468
      %v470 = vrot.slane %v348, 1
      %v471 = vsel %vm421, %v468, %v470
      %v472 = vrot.slane %v349, 1
      %v473 = vrot.slane %v350, 1
      %v474 = vsel %vm421, %v472, %v473
      %v475 = vrot.slane %v351, 1
      %v476 = vsel %vm421, %v473, %v475
      %v477 = vrot.slane %v352, 1
      %v478 = vrot.slane %v353, 1
      %v479 = vsel %vm421, %v477, %v478
      %v480 = vrot.slane %v354, 1
      %v481 = vsel %vm421, %v478, %v480
      %v482 = vrot.slane %v355, 1
      %v483 = vrot.slane %v356, 1
      %v484 = vsel %vm421, %v482, %v483
      %v485 = vrot.slane %v357, 1
      %v486 = vsel %vm421, %v483, %v485
      %v487 = vrot.slane %v358, 1
      %v488 = vrot.slane %v359, 1
      %v489 = vsel %vm421, %v487, %v488
      %v490 = vrot.slane %v360, 1
      %v491 = vsel %vm421, %v488, %v490
      %v492 = vrot.slane %v361, 1
      %v493 = vrot.slane %v362, 1
      %v494 = vsel %vm421, %v492, %v493
      %v495 = vrot.slane %v363, 1
      %v496 = vsel %vm421, %v493, %v495
      %v497 = vrot.slane %v364, 1
      %v498 = vrot.slane %v365, 1
      %v499 = vsel %vm421, %v497, %v498
      %v500 = vrot.slane %v366, 1
      %v501 = vsel %vm421, %v498, %v500
      %502 = vrot.lane.b32.xlu0 %v424, 4
      %v503 = vpop.permute.xlu0 %502
      %504 = vrot.lane.b32.xlu0 %v426, 4
      %v505 = vpop.permute.xlu0 %504
      %506 = vrot.lane.b32.xlu0 %v429, 4
      %v507 = vpop.permute.xlu0 %506
      %508 = vrot.lane.b32.xlu0 %v431, 4
      %v509 = vpop.permute.xlu0 %508
      %510 = vrot.lane.b32.xlu0 %v434, 4
      %v511 = vpop.permute.xlu0 %510
      %512 = vrot.lane.b32.xlu0 %v436, 4
      %v513 = vpop.permute.xlu0 %512
      %514 = vrot.lane.b32.xlu0 %v439, 4
      %v515 = vpop.permute.xlu0 %514
      %516 = vrot.lane.b32.xlu0 %v441, 4
      %v517 = vpop.permute.xlu0 %516
      %518 = vrot.lane.b32.xlu0 %v444, 4
      %v519 = vpop.permute.xlu0 %518
      %520 = vrot.lane.b32.xlu0 %v446, 4
      %v521 = vpop.permute.xlu0 %520
      %522 = vrot.lane.b32.xlu0 %v449, 4
      %v523 = vpop.permute.xlu0 %522
      %524 = vrot.lane.b32.xlu0 %v451, 4
      %v525 = vpop.permute.xlu0 %524
      %526 = vrot.lane.b32.xlu0 %v454, 4
      %v527 = vpop.permute.xlu0 %526
      %528 = vrot.lane.b32.xlu0 %v456, 4
      %v529 = vpop.permute.xlu0 %528
      %530 = vrot.lane.b32.xlu0 %v459, 4
      %v531 = vpop.permute.xlu0 %530
      %532 = vrot.lane.b32.xlu0 %v461, 4
      %v533 = vpop.permute.xlu0 %532
      %534 = vrot.lane.b32.xlu0 %v464, 4
      %v535 = vpop.permute.xlu0 %534
      %536 = vrot.lane.b32.xlu0 %v466, 4
      %v537 = vpop.permute.xlu0 %536
      %538 = vrot.lane.b32.xlu0 %v469, 4
      %v539 = vpop.permute.xlu0 %538
      %540 = vrot.lane.b32.xlu0 %v471, 4
      %v541 = vpop.permute.xlu0 %540
      %542 = vrot.lane.b32.xlu0 %v474, 4
      %v543 = vpop.permute.xlu0 %542
      %544 = vrot.lane.b32.xlu0 %v476, 4
      %v545 = vpop.permute.xlu0 %544
      %546 = vrot.lane.b32.xlu0 %v479, 4
      %v547 = vpop.permute.xlu0 %546
      %548 = vrot.lane.b32.xlu0 %v481, 4
      %v549 = vpop.permute.xlu0 %548
      %550 = vrot.lane.b32.xlu0 %v484, 4
      %v551 = vpop.permute.xlu0 %550
      %552 = vrot.lane.b32.xlu0 %v486, 4
      %v553 = vpop.permute.xlu0 %552
      %554 = vrot.lane.b32.xlu0 %v489, 4
      %v555 = vpop.permute.xlu0 %554
      %556 = vrot.lane.b32.xlu0 %v491, 4
      %v557 = vpop.permute.xlu0 %556
      %558 = vrot.lane.b32.xlu0 %v494, 4
      %v559 = vpop.permute.xlu0 %558
      %560 = vrot.lane.b32.xlu0 %v496, 4
      %v561 = vpop.permute.xlu0 %560
      %562 = vrot.lane.b32.xlu0 %v499, 4
      %v563 = vpop.permute.xlu0 %562
      %564 = vrot.lane.b32.xlu0 %v501, 4
      %v565 = vpop.permute.xlu0 %564
      %vm598 = vcmask 1045504
      %v599 = vrot.slane %v319, 2
      %v600 = vrot.slane %v320, 2
      %v601 = vsel %vm598, %v599, %v600
      %v602 = vrot.slane %v321, 2
      %v603 = vsel %vm598, %v600, %v602
      %v604 = vrot.slane %v322, 2
      %v605 = vrot.slane %v323, 2
      %v606 = vsel %vm598, %v604, %v605
      %v607 = vrot.slane %v324, 2
      %v608 = vsel %vm598, %v605, %v607
      %v609 = vrot.slane %v325, 2
      %v610 = vrot.slane %v326, 2
      %v611 = vsel %vm598, %v609, %v610
      %v612 = vrot.slane %v327, 2
      %v613 = vsel %vm598, %v610, %v612
      %v614 = vrot.slane %v328, 2
      %v615 = vrot.slane %v329, 2
      %v616 = vsel %vm598, %v614, %v615
      %v617 = vrot.slane %v330, 2
      %v618 = vsel %vm598, %v615, %v617
      %v619 = vrot.slane %v331, 2
      %v620 = vrot.slane %v332, 2
      %v621 = vsel %vm598, %v619, %v620
      %v622 = vrot.slane %v333, 2
      %v623 = vsel %vm598, %v620, %v622
      %v624 = vrot.slane %v334, 2
      %v625 = vrot.slane %v335, 2
      %v626 = vsel %vm598, %v624, %v625
      %v627 = vrot.slane %v336, 2
      %v628 = vsel %vm598, %v625, %v627
      %v629 = vrot.slane %v337, 2
      %v630 = vrot.slane %v338, 2
      %v631 = vsel %vm598, %v629, %v630
      %v632 = vrot.slane %v339, 2
      %v633 = vsel %vm598, %v630, %v632
      %v634 = vrot.slane %v340, 2
      %v635 = vrot.slane %v341, 2
      %v636 = vsel %vm598, %v634, %v635
      %v637 = vrot.slane %v342, 2
      %v638 = vsel %vm598, %v635, %v637
      %v639 = vrot.slane %v343, 2
      %v640 = vrot.slane %v344, 2
      %v641 = vsel %vm598, %v639, %v640
      %v642 = vrot.slane %v345, 2
      %v643 = vsel %vm598, %v640, %v642
      %v644 = vrot.slane %v346, 2
      %v645 = vrot.slane %v347, 2
      %v646 = vsel %vm598, %v644, %v645
      %v647 = vrot.slane %v348, 2
      %v648 = vsel %vm598, %v645, %v647
      %v649 = vrot.slane %v349, 2
      %v650 = vrot.slane %v350, 2
      %v651 = vsel %vm598, %v649, %v650
      %v652 = vrot.slane %v351, 2
      %v653 = vsel %vm598, %v650, %v652
      %v654 = vrot.slane %v352, 2
      %v655 = vrot.slane %v353, 2
      %v656 = vsel %vm598, %v654, %v655
      %v657 = vrot.slane %v354, 2
      %v658 = vsel %vm598, %v655, %v657
      %v659 = vrot.slane %v355, 2
      %v660 = vrot.slane %v356, 2
      %v661 = vsel %vm598, %v659, %v660
      %v662 = vrot.slane %v357, 2
      %v663 = vsel %vm598, %v660, %v662
      %v664 = vrot.slane %v358, 2
      %v665 = vrot.slane %v359, 2
      %v666 = vsel %vm598, %v664, %v665
      %v667 = vrot.slane %v360, 2
      %v668 = vsel %vm598, %v665, %v667
      %v669 = vrot.slane %v361, 2
      %v670 = vrot.slane %v362, 2
      %v671 = vsel %vm598, %v669, %v670
      %v672 = vrot.slane %v363, 2
      %v673 = vsel %vm598, %v670, %v672
      %v674 = vrot.slane %v364, 2
      %v675 = vrot.slane %v365, 2
      %v676 = vsel %vm598, %v674, %v675
      %v677 = vrot.slane %v366, 2
      %v678 = vsel %vm598, %v675, %v677
      %679 = vrot.lane.b32.xlu0 %v601, 8
      %v680 = vpop.permute.xlu0 %679
      %681 = vrot.lane.b32.xlu0 %v603, 8
      %v682 = vpop.permute.xlu0 %681
      %683 = vrot.lane.b32.xlu0 %v606, 8
      %v684 = vpop.permute.xlu0 %683
      %685 = vrot.lane.b32.xlu0 %v608, 8
      %v686 = vpop.permute.xlu0 %685
      %687 = vrot.lane.b32.xlu0 %v611, 8
      %v688 = vpop.permute.xlu0 %687
      %689 = vrot.lane.b32.xlu0 %v613, 8
      %v690 = vpop.permute.xlu0 %689
      %691 = vrot.lane.b32.xlu0 %v616, 8
      %v692 = vpop.permute.xlu0 %691
      %693 = vrot.lane.b32.xlu0 %v618, 8
      %v694 = vpop.permute.xlu0 %693
      %695 = vrot.lane.b32.xlu0 %v621, 8
      %v696 = vpop.permute.xlu0 %695
      %697 = vrot.lane.b32.xlu0 %v623, 8
      %v698 = vpop.permute.xlu0 %697
      %699 = vrot.lane.b32.xlu0 %v626, 8
      %v700 = vpop.permute.xlu0 %699
      %701 = vrot.lane.b32.xlu0 %v628, 8
      %v702 = vpop.permute.xlu0 %701
      %703 = vrot.lane.b32.xlu0 %v631, 8
      %v704 = vpop.permute.xlu0 %703
      %705 = vrot.lane.b32.xlu0 %v633, 8
      %v706 = vpop.permute.xlu0 %705
      %707 = vrot.lane.b32.xlu0 %v636, 8
      %v708 = vpop.permute.xlu0 %707
      %709 = vrot.lane.b32.xlu0 %v638, 8
      %v710 = vpop.permute.xlu0 %709
      %711 = vrot.lane.b32.xlu0 %v641, 8
      %v712 = vpop.permute.xlu0 %711
      %713 = vrot.lane.b32.xlu0 %v643, 8
      %v714 = vpop.permute.xlu0 %713
      %715 = vrot.lane.b32.xlu0 %v646, 8
      %v716 = vpop.permute.xlu0 %715
      %717 = vrot.lane.b32.xlu0 %v648, 8
      %v718 = vpop.permute.xlu0 %717
      %719 = vrot.lane.b32.xlu0 %v651, 8
      %v720 = vpop.permute.xlu0 %719
      %721 = vrot.lane.b32.xlu0 %v653, 8
      %v722 = vpop.permute.xlu0 %721
      %723 = vrot.lane.b32.xlu0 %v656, 8
      %v724 = vpop.permute.xlu0 %723
      %725 = vrot.lane.b32.xlu0 %v658, 8
      %v726 = vpop.permute.xlu0 %725
      %727 = vrot.lane.b32.xlu0 %v661, 8
      %v728 = vpop.permute.xlu0 %727
      %729 = vrot.lane.b32.xlu0 %v663, 8
      %v730 = vpop.permute.xlu0 %729
      %731 = vrot.lane.b32.xlu0 %v666, 8
      %v732 = vpop.permute.xlu0 %731
      %733 = vrot.lane.b32.xlu0 %v668, 8
      %v734 = vpop.permute.xlu0 %733
      %735 = vrot.lane.b32.xlu0 %v671, 8
      %v736 = vpop.permute.xlu0 %735
      %737 = vrot.lane.b32.xlu0 %v673, 8
      %v738 = vpop.permute.xlu0 %737
      %739 = vrot.lane.b32.xlu0 %v676, 8
      %v740 = vpop.permute.xlu0 %739
      %741 = vrot.lane.b32.xlu0 %v678, 8
      %v742 = vpop.permute.xlu0 %741
      %777 = vrot.lane.b32.xlu0 %v322, 12
      %v778 = vpop.permute.xlu0 %777
      %779 = vrot.lane.b32.xlu0 %v323, 12
      %v780 = vpop.permute.xlu0 %779
      %781 = vrot.lane.b32.xlu0 %v325, 12
      %v782 = vpop.permute.xlu0 %781
      %783 = vrot.lane.b32.xlu0 %v326, 12
      %v784 = vpop.permute.xlu0 %783
      %785 = vrot.lane.b32.xlu0 %v328, 12
      %v786 = vpop.permute.xlu0 %785
      %787 = vrot.lane.b32.xlu0 %v329, 12
      %v788 = vpop.permute.xlu0 %787
      %789 = vrot.lane.b32.xlu0 %v331, 12
      %v790 = vpop.permute.xlu0 %789
      %791 = vrot.lane.b32.xlu0 %v332, 12
      %v792 = vpop.permute.xlu0 %791
      %793 = vrot.lane.b32.xlu0 %v334, 12
      %v794 = vpop.permute.xlu0 %793
      %795 = vrot.lane.b32.xlu0 %v335, 12
      %v796 = vpop.permute.xlu0 %795
      %797 = vrot.lane.b32.xlu0 %v337, 12
      %v798 = vpop.permute.xlu0 %797
      %799 = vrot.lane.b32.xlu0 %v338, 12
      %v800 = vpop.permute.xlu0 %799
      %801 = vrot.lane.b32.xlu0 %v340, 12
      %v802 = vpop.permute.xlu0 %801
      %803 = vrot.lane.b32.xlu0 %v341, 12
      %v804 = vpop.permute.xlu0 %803
      %805 = vrot.lane.b32.xlu0 %v343, 12
      %v806 = vpop.permute.xlu0 %805
      %807 = vrot.lane.b32.xlu0 %v344, 12
      %v808 = vpop.permute.xlu0 %807
      %809 = vrot.lane.b32.xlu0 %v346, 12
      %v810 = vpop.permute.xlu0 %809
      %811 = vrot.lane.b32.xlu0 %v347, 12
      %v812 = vpop.permute.xlu0 %811
      %813 = vrot.lane.b32.xlu0 %v349, 12
      %v814 = vpop.permute.xlu0 %813
      %815 = vrot.lane.b32.xlu0 %v350, 12
      %v816 = vpop.permute.xlu0 %815
      %817 = vrot.lane.b32.xlu0 %v352, 12
      %v818 = vpop.permute.xlu0 %817
      %819 = vrot.lane.b32.xlu0 %v353, 12
      %v820 = vpop.permute.xlu0 %819
      %821 = vrot.lane.b32.xlu0 %v355, 12
      %v822 = vpop.permute.xlu0 %821
      %823 = vrot.lane.b32.xlu0 %v356, 12
      %v824 = vpop.permute.xlu0 %823
      %825 = vrot.lane.b32.xlu0 %v358, 12
      %v826 = vpop.permute.xlu0 %825
      %827 = vrot.lane.b32.xlu0 %v359, 12
      %v828 = vpop.permute.xlu0 %827
      %829 = vrot.lane.b32.xlu0 %v361, 12
      %v830 = vpop.permute.xlu0 %829
      %831 = vrot.lane.b32.xlu0 %v362, 12
      %v832 = vpop.permute.xlu0 %831
      %833 = vrot.lane.b32.xlu0 %v364, 12
      %v834 = vpop.permute.xlu0 %833
      %835 = vrot.lane.b32.xlu0 %v365, 12
      %v836 = vpop.permute.xlu0 %835
      %837 = vrot.lane.b32.xlu0 %v367, 12
      %v838 = vpop.permute.xlu0 %837
      %839 = vrot.lane.b32.xlu0 %v368, 12
      %v840 = vpop.permute.xlu0 %839
      %v874 = vrot.slane %v367, 1
      %v875 = vrot.slane %v368, 1
      %v876 = vsel %vm421, %v874, %v875
      %v877 = vrot.slane %v369, 1
      %v878 = vsel %vm421, %v875, %v877
      %879 = vrot.lane.b32.xlu0 %v429, 16
      %v880 = vpop.permute.xlu0 %879
      %881 = vrot.lane.b32.xlu0 %v431, 16
      %v882 = vpop.permute.xlu0 %881
      %883 = vrot.lane.b32.xlu0 %v434, 16
      %v884 = vpop.permute.xlu0 %883
      %885 = vrot.lane.b32.xlu0 %v436, 16
      %v886 = vpop.permute.xlu0 %885
      %887 = vrot.lane.b32.xlu0 %v439, 16
      %v888 = vpop.permute.xlu0 %887
      %889 = vrot.lane.b32.xlu0 %v441, 16
      %v890 = vpop.permute.xlu0 %889
      %891 = vrot.lane.b32.xlu0 %v444, 16
      %v892 = vpop.permute.xlu0 %891
      %893 = vrot.lane.b32.xlu0 %v446, 16
      %v894 = vpop.permute.xlu0 %893
      %895 = vrot.lane.b32.xlu0 %v449, 16
      %v896 = vpop.permute.xlu0 %895
      %897 = vrot.lane.b32.xlu0 %v451, 16
      %v898 = vpop.permute.xlu0 %897
      %899 = vrot.lane.b32.xlu0 %v454, 16
      %v900 = vpop.permute.xlu0 %899
      %901 = vrot.lane.b32.xlu0 %v456, 16
      %v902 = vpop.permute.xlu0 %901
      %903 = vrot.lane.b32.xlu0 %v459, 16
      %v904 = vpop.permute.xlu0 %903
      %905 = vrot.lane.b32.xlu0 %v461, 16
      %v906 = vpop.permute.xlu0 %905
      %907 = vrot.lane.b32.xlu0 %v464, 16
      %v908 = vpop.permute.xlu0 %907
      %909 = vrot.lane.b32.xlu0 %v466, 16
      %v910 = vpop.permute.xlu0 %909
      %911 = vrot.lane.b32.xlu0 %v469, 16
      %v912 = vpop.permute.xlu0 %911
      %913 = vrot.lane.b32.xlu0 %v471, 16
      %v914 = vpop.permute.xlu0 %913
      %915 = vrot.lane.b32.xlu0 %v474, 16
      %v916 = vpop.permute.xlu0 %915
      %917 = vrot.lane.b32.xlu0 %v476, 16
      %v918 = vpop.permute.xlu0 %917
      %919 = vrot.lane.b32.xlu0 %v479, 16
      %v920 = vpop.permute.xlu0 %919
      %921 = vrot.lane.b32.xlu0 %v481, 16
      %v922 = vpop.permute.xlu0 %921
      %923 = vrot.lane.b32.xlu0 %v484, 16
      %v924 = vpop.permute.xlu0 %923
      %925 = vrot.lane.b32.xlu0 %v486, 16
      %v926 = vpop.permute.xlu0 %925
      %927 = vrot.lane.b32.xlu0 %v489, 16
      %v928 = vpop.permute.xlu0 %927
      %929 = vrot.lane.b32.xlu0 %v491, 16
      %v930 = vpop.permute.xlu0 %929
      %931 = vrot.lane.b32.xlu0 %v494, 16
      %v932 = vpop.permute.xlu0 %931
      %933 = vrot.lane.b32.xlu0 %v496, 16
      %v934 = vpop.permute.xlu0 %933
      %935 = vrot.lane.b32.xlu0 %v499, 16
      %v936 = vpop.permute.xlu0 %935
      %937 = vrot.lane.b32.xlu0 %v501, 16
      %v938 = vpop.permute.xlu0 %937
      %939 = vrot.lane.b32.xlu0 %v876, 16
      %v940 = vpop.permute.xlu0 %939
      %941 = vrot.lane.b32.xlu0 %v878, 16
      %v942 = vpop.permute.xlu0 %941
      %v975 = vrot.slane %v367, 2
      %v976 = vrot.slane %v368, 2
      %v977 = vsel %vm598, %v975, %v976
      %v978 = vrot.slane %v369, 2
      %v979 = vsel %vm598, %v976, %v978
      %980 = vrot.lane.b32.xlu0 %v606, 20
      %v981 = vpop.permute.xlu0 %980
      %982 = vrot.lane.b32.xlu0 %v608, 20
      %v983 = vpop.permute.xlu0 %982
      %984 = vrot.lane.b32.xlu0 %v611, 20
      %v985 = vpop.permute.xlu0 %984
      %986 = vrot.lane.b32.xlu0 %v613, 20
      %v987 = vpop.permute.xlu0 %986
      %988 = vrot.lane.b32.xlu0 %v616, 20
      %v989 = vpop.permute.xlu0 %988
      %990 = vrot.lane.b32.xlu0 %v618, 20
      %v991 = vpop.permute.xlu0 %990
      %992 = vrot.lane.b32.xlu0 %v621, 20
      %v993 = vpop.permute.xlu0 %992
      %994 = vrot.lane.b32.xlu0 %v623, 20
      %v995 = vpop.permute.xlu0 %994
      %996 = vrot.lane.b32.xlu0 %v626, 20
      %v997 = vpop.permute.xlu0 %996
      %998 = vrot.lane.b32.xlu0 %v628, 20
      %v999 = vpop.permute.xlu0 %998
      %1000 = vrot.lane.b32.xlu0 %v631, 20
      %v1001 = vpop.permute.xlu0 %1000
      %1002 = vrot.lane.b32.xlu0 %v633, 20
      %v1003 = vpop.permute.xlu0 %1002
      %1004 = vrot.lane.b32.xlu0 %v636, 20
      %v1005 = vpop.permute.xlu0 %1004
      %1006 = vrot.lane.b32.xlu0 %v638, 20
      %v1007 = vpop.permute.xlu0 %1006
      %1008 = vrot.lane.b32.xlu0 %v641, 20
      %v1009 = vpop.permute.xlu0 %1008
      %1010 = vrot.lane.b32.xlu0 %v643, 20
      %v1011 = vpop.permute.xlu0 %1010
      %1012 = vrot.lane.b32.xlu0 %v646, 20
      %v1013 = vpop.permute.xlu0 %1012
      %1014 = vrot.lane.b32.xlu0 %v648, 20
      %v1015 = vpop.permute.xlu0 %1014
      %1016 = vrot.lane.b32.xlu0 %v651, 20
      %v1017 = vpop.permute.xlu0 %1016
      %1018 = vrot.lane.b32.xlu0 %v653, 20
      %v1019 = vpop.permute.xlu0 %1018
      %1020 = vrot.lane.b32.xlu0 %v656, 20
      %v1021 = vpop.permute.xlu0 %1020
      %1022 = vrot.lane.b32.xlu0 %v658, 20
      %v1023 = vpop.permute.xlu0 %1022
      %1024 = vrot.lane.b32.xlu0 %v661, 20
      %v1025 = vpop.permute.xlu0 %1024
      %1026 = vrot.lane.b32.xlu0 %v663, 20
      %v1027 = vpop.permute.xlu0 %1026
      %1028 = vrot.lane.b32.xlu0 %v666, 20
      %v1029 = vpop.permute.xlu0 %1028
      %1030 = vrot.lane.b32.xlu0 %v668, 20
      %v1031 = vpop.permute.xlu0 %1030
      %1032 = vrot.lane.b32.xlu0 %v671, 20
      %v1033 = vpop.permute.xlu0 %1032
      %1034 = vrot.lane.b32.xlu0 %v673, 20
      %v1035 = vpop.permute.xlu0 %1034
      %1036 = vrot.lane.b32.xlu0 %v676, 20
      %v1037 = vpop.permute.xlu0 %1036
      %1038 = vrot.lane.b32.xlu0 %v678, 20
      %v1039 = vpop.permute.xlu0 %1038
      %1040 = vrot.lane.b32.xlu0 %v977, 20
      %v1041 = vpop.permute.xlu0 %1040
      %1042 = vrot.lane.b32.xlu0 %v979, 20
      %v1043 = vpop.permute.xlu0 %1042
      %1078 = vrot.lane.b32.xlu0 %v325, 24
      %v1079 = vpop.permute.xlu0 %1078
      %1080 = vrot.lane.b32.xlu0 %v326, 24
      %v1081 = vpop.permute.xlu0 %1080
      %1082 = vrot.lane.b32.xlu0 %v328, 24
      %v1083 = vpop.permute.xlu0 %1082
      %1084 = vrot.lane.b32.xlu0 %v329, 24
      %v1085 = vpop.permute.xlu0 %1084
      %1086 = vrot.lane.b32.xlu0 %v331, 24
      %v1087 = vpop.permute.xlu0 %1086
      %1088 = vrot.lane.b32.xlu0 %v332, 24
      %v1089 = vpop.permute.xlu0 %1088
      %1090 = vrot.lane.b32.xlu0 %v334, 24
      %v1091 = vpop.permute.xlu0 %1090
      %1092 = vrot.lane.b32.xlu0 %v335, 24
      %v1093 = vpop.permute.xlu0 %1092
      %1094 = vrot.lane.b32.xlu0 %v337, 24
      %v1095 = vpop.permute.xlu0 %1094
      %1096 = vrot.lane.b32.xlu0 %v338, 24
      %v1097 = vpop.permute.xlu0 %1096
      %1098 = vrot.lane.b32.xlu0 %v340, 24
      %v1099 = vpop.permute.xlu0 %1098
      %1100 = vrot.lane.b32.xlu0 %v341, 24
      %v1101 = vpop.permute.xlu0 %1100
      %1102 = vrot.lane.b32.xlu0 %v343, 24
      %v1103 = vpop.permute.xlu0 %1102
      %1104 = vrot.lane.b32.xlu0 %v344, 24
      %v1105 = vpop.permute.xlu0 %1104
      %1106 = vrot.lane.b32.xlu0 %v346, 24
      %v1107 = vpop.permute.xlu0 %1106
      %1108 = vrot.lane.b32.xlu0 %v347, 24
      %v1109 = vpop.permute.xlu0 %1108
      %1110 = vrot.lane.b32.xlu0 %v349, 24
      %v1111 = vpop.permute.xlu0 %1110
      %1112 = vrot.lane.b32.xlu0 %v350, 24
      %v1113 = vpop.permute.xlu0 %1112
      %1114 = vrot.lane.b32.xlu0 %v352, 24
      %v1115 = vpop.permute.xlu0 %1114
      %1116 = vrot.lane.b32.xlu0 %v353, 24
      %v1117 = vpop.permute.xlu0 %1116
      %1118 = vrot.lane.b32.xlu0 %v355, 24
      %v1119 = vpop.permute.xlu0 %1118
      %1120 = vrot.lane.b32.xlu0 %v356, 24
      %v1121 = vpop.permute.xlu0 %1120
      %1122 = vrot.lane.b32.xlu0 %v358, 24
      %v1123 = vpop.permute.xlu0 %1122
      %1124 = vrot.lane.b32.xlu0 %v359, 24
      %v1125 = vpop.permute.xlu0 %1124
      %1126 = vrot.lane.b32.xlu0 %v361, 24
      %v1127 = vpop.permute.xlu0 %1126
      %1128 = vrot.lane.b32.xlu0 %v362, 24
      %v1129 = vpop.permute.xlu0 %1128
      %1130 = vrot.lane.b32.xlu0 %v364, 24
      %v1131 = vpop.permute.xlu0 %1130
      %1132 = vrot.lane.b32.xlu0 %v365, 24
      %v1133 = vpop.permute.xlu0 %1132
      %1134 = vrot.lane.b32.xlu0 %v367, 24
      %v1135 = vpop.permute.xlu0 %1134
      %1136 = vrot.lane.b32.xlu0 %v368, 24
      %v1137 = vpop.permute.xlu0 %1136
      %1138 = vrot.lane.b32.xlu0 %v370, 24
      %v1139 = vpop.permute.xlu0 %1138
      %1140 = vrot.lane.b32.xlu0 %v371, 24
      %v1141 = vpop.permute.xlu0 %1140
      %v1175 = vrot.slane %v370, 1
      %v1176 = vrot.slane %v371, 1
      %v1177 = vsel %vm421, %v1175, %v1176
      %v1178 = vrot.slane %v372, 1
      %v1179 = vsel %vm421, %v1176, %v1178
      %1180 = vrot.lane.b32.xlu0 %v434, 28
      %v1181 = vpop.permute.xlu0 %1180
      %1182 = vrot.lane.b32.xlu0 %v436, 28
      %v1183 = vpop.permute.xlu0 %1182
      %1184 = vrot.lane.b32.xlu0 %v439, 28
      %v1185 = vpop.permute.xlu0 %1184
      %1186 = vrot.lane.b32.xlu0 %v441, 28
      %v1187 = vpop.permute.xlu0 %1186
      %1188 = vrot.lane.b32.xlu0 %v444, 28
      %v1189 = vpop.permute.xlu0 %1188
      %1190 = vrot.lane.b32.xlu0 %v446, 28
      %v1191 = vpop.permute.xlu0 %1190
      %1192 = vrot.lane.b32.xlu0 %v449, 28
      %v1193 = vpop.permute.xlu0 %1192
      %1194 = vrot.lane.b32.xlu0 %v451, 28
      %v1195 = vpop.permute.xlu0 %1194
      %1196 = vrot.lane.b32.xlu0 %v454, 28
      %v1197 = vpop.permute.xlu0 %1196
      %1198 = vrot.lane.b32.xlu0 %v456, 28
      %v1199 = vpop.permute.xlu0 %1198
      %1200 = vrot.lane.b32.xlu0 %v459, 28
      %v1201 = vpop.permute.xlu0 %1200
      %1202 = vrot.lane.b32.xlu0 %v461, 28
      %v1203 = vpop.permute.xlu0 %1202
      %1204 = vrot.lane.b32.xlu0 %v464, 28
      %v1205 = vpop.permute.xlu0 %1204
      %1206 = vrot.lane.b32.xlu0 %v466, 28
      %v1207 = vpop.permute.xlu0 %1206
      %1208 = vrot.lane.b32.xlu0 %v469, 28
      %v1209 = vpop.permute.xlu0 %1208
      %1210 = vrot.lane.b32.xlu0 %v471, 28
      %v1211 = vpop.permute.xlu0 %1210
      %1212 = vrot.lane.b32.xlu0 %v474, 28
      %v1213 = vpop.permute.xlu0 %1212
      %1214 = vrot.lane.b32.xlu0 %v476, 28
      %v1215 = vpop.permute.xlu0 %1214
      %1216 = vrot.lane.b32.xlu0 %v479, 28
      %v1217 = vpop.permute.xlu0 %1216
      %1218 = vrot.lane.b32.xlu0 %v481, 28
      %v1219 = vpop.permute.xlu0 %1218
      %1220 = vrot.lane.b32.xlu0 %v484, 28
      %v1221 = vpop.permute.xlu0 %1220
      %1222 = vrot.lane.b32.xlu0 %v486, 28
      %v1223 = vpop.permute.xlu0 %1222
      %1224 = vrot.lane.b32.xlu0 %v489, 28
      %v1225 = vpop.permute.xlu0 %1224
      %1226 = vrot.lane.b32.xlu0 %v491, 28
      %v1227 = vpop.permute.xlu0 %1226
      %1228 = vrot.lane.b32.xlu0 %v494, 28
      %v1229 = vpop.permute.xlu0 %1228
      %1230 = vrot.lane.b32.xlu0 %v496, 28
      %v1231 = vpop.permute.xlu0 %1230
      %1232 = vrot.lane.b32.xlu0 %v499, 28
      %v1233 = vpop.permute.xlu0 %1232
      %1234 = vrot.lane.b32.xlu0 %v501, 28
      %v1235 = vpop.permute.xlu0 %1234
      %1236 = vrot.lane.b32.xlu0 %v876, 28
      %v1237 = vpop.permute.xlu0 %1236
      %1238 = vrot.lane.b32.xlu0 %v878, 28
      %v1239 = vpop.permute.xlu0 %1238
      %1240 = vrot.lane.b32.xlu0 %v1177, 28
      %v1241 = vpop.permute.xlu0 %1240
      %1242 = vrot.lane.b32.xlu0 %v1179, 28
      %v1243 = vpop.permute.xlu0 %1242
      %v1276 = vrot.slane %v370, 2
      %v1277 = vrot.slane %v371, 2
      %v1278 = vsel %vm598, %v1276, %v1277
      %v1279 = vrot.slane %v372, 2
      %v1280 = vsel %vm598, %v1277, %v1279
      %1281 = vrot.lane.b32.xlu0 %v611, 32
      %v1282 = vpop.permute.xlu0 %1281
      %1283 = vrot.lane.b32.xlu0 %v613, 32
      %v1284 = vpop.permute.xlu0 %1283
      %1285 = vrot.lane.b32.xlu0 %v616, 32
      %v1286 = vpop.permute.xlu0 %1285
      %1287 = vrot.lane.b32.xlu0 %v618, 32
      %v1288 = vpop.permute.xlu0 %1287
      %1289 = vrot.lane.b32.xlu0 %v621, 32
      %v1290 = vpop.permute.xlu0 %1289
      %1291 = vrot.lane.b32.xlu0 %v623, 32
      %v1292 = vpop.permute.xlu0 %1291
      %1293 = vrot.lane.b32.xlu0 %v626, 32
      %v1294 = vpop.permute.xlu0 %1293
      %1295 = vrot.lane.b32.xlu0 %v628, 32
      %v1296 = vpop.permute.xlu0 %1295
      %1297 = vrot.lane.b32.xlu0 %v631, 32
      %v1298 = vpop.permute.xlu0 %1297
      %1299 = vrot.lane.b32.xlu0 %v633, 32
      %v1300 = vpop.permute.xlu0 %1299
      %1301 = vrot.lane.b32.xlu0 %v636, 32
      %v1302 = vpop.permute.xlu0 %1301
      %1303 = vrot.lane.b32.xlu0 %v638, 32
      %v1304 = vpop.permute.xlu0 %1303
      %1305 = vrot.lane.b32.xlu0 %v641, 32
      %v1306 = vpop.permute.xlu0 %1305
      %1307 = vrot.lane.b32.xlu0 %v643, 32
      %v1308 = vpop.permute.xlu0 %1307
      %1309 = vrot.lane.b32.xlu0 %v646, 32
      %v1310 = vpop.permute.xlu0 %1309
      %1311 = vrot.lane.b32.xlu0 %v648, 32
      %v1312 = vpop.permute.xlu0 %1311
      %1313 = vrot.lane.b32.xlu0 %v651, 32
      %v1314 = vpop.permute.xlu0 %1313
      %1315 = vrot.lane.b32.xlu0 %v653, 32
      %v1316 = vpop.permute.xlu0 %1315
      %1317 = vrot.lane.b32.xlu0 %v656, 32
      %v1318 = vpop.permute.xlu0 %1317
      %1319 = vrot.lane.b32.xlu0 %v658, 32
      %v1320 = vpop.permute.xlu0 %1319
      %1321 = vrot.lane.b32.xlu0 %v661, 32
      %v1322 = vpop.permute.xlu0 %1321
      %1323 = vrot.lane.b32.xlu0 %v663, 32
      %v1324 = vpop.permute.xlu0 %1323
      %1325 = vrot.lane.b32.xlu0 %v666, 32
      %v1326 = vpop.permute.xlu0 %1325
      %1327 = vrot.lane.b32.xlu0 %v668, 32
      %v1328 = vpop.permute.xlu0 %1327
      %1329 = vrot.lane.b32.xlu0 %v671, 32
      %v1330 = vpop.permute.xlu0 %1329
      %1331 = vrot.lane.b32.xlu0 %v673, 32
      %v1332 = vpop.permute.xlu0 %1331
      %1333 = vrot.lane.b32.xlu0 %v676, 32
      %v1334 = vpop.permute.xlu0 %1333
      %1335 = vrot.lane.b32.xlu0 %v678, 32
      %v1336 = vpop.permute.xlu0 %1335
      %1337 = vrot.lane.b32.xlu0 %v977, 32
      %v1338 = vpop.permute.xlu0 %1337
      %1339 = vrot.lane.b32.xlu0 %v979, 32
      %v1340 = vpop.permute.xlu0 %1339
      %1341 = vrot.lane.b32.xlu0 %v1278, 32
      %v1342 = vpop.permute.xlu0 %1341
      %1343 = vrot.lane.b32.xlu0 %v1280, 32
      %v1344 = vpop.permute.xlu0 %1343
      %v1377 = vsel %vm198, %v319, %v503
      %v1378 = vsel %vm198, %v320, %v505
      %v1379 = vsel %vm198, %v322, %v507
      %v1380 = vsel %vm198, %v323, %v509
      %v1381 = vsel %vm198, %v325, %v511
      %v1382 = vsel %vm198, %v326, %v513
      %v1383 = vsel %vm198, %v328, %v515
      %v1384 = vsel %vm198, %v329, %v517
      %v1385 = vsel %vm198, %v331, %v519
      %v1386 = vsel %vm198, %v332, %v521
      %v1387 = vsel %vm198, %v334, %v523
      %v1388 = vsel %vm198, %v335, %v525
      %v1389 = vsel %vm198, %v337, %v527
      %v1390 = vsel %vm198, %v338, %v529
      %v1391 = vsel %vm198, %v340, %v531
      %v1392 = vsel %vm198, %v341, %v533
      %v1393 = vsel %vm198, %v343, %v535
      %v1394 = vsel %vm198, %v344, %v537
      %v1395 = vsel %vm198, %v346, %v539
      %v1396 = vsel %vm198, %v347, %v541
      %v1397 = vsel %vm198, %v349, %v543
      %v1398 = vsel %vm198, %v350, %v545
      %v1399 = vsel %vm198, %v352, %v547
      %v1400 = vsel %vm198, %v353, %v549
      %v1401 = vsel %vm198, %v355, %v551
      %v1402 = vsel %vm198, %v356, %v553
      %v1403 = vsel %vm198, %v358, %v555
      %v1404 = vsel %vm198, %v359, %v557
      %v1405 = vsel %vm198, %v361, %v559
      %v1406 = vsel %vm198, %v362, %v561
      %v1407 = vsel %vm198, %v364, %v563
      %v1408 = vsel %vm198, %v365, %v565
      %vm1409 = vcmask 64512
      %v1410 = vsel %vm1409, %v1377, %v680
      %v1411 = vsel %vm1409, %v1378, %v682
      %v1412 = vsel %vm1409, %v1379, %v684
      %v1413 = vsel %vm1409, %v1380, %v686
      %v1414 = vsel %vm1409, %v1381, %v688
      %v1415 = vsel %vm1409, %v1382, %v690
      %v1416 = vsel %vm1409, %v1383, %v692
      %v1417 = vsel %vm1409, %v1384, %v694
      %v1418 = vsel %vm1409, %v1385, %v696
      %v1419 = vsel %vm1409, %v1386, %v698
      %v1420 = vsel %vm1409, %v1387, %v700
      %v1421 = vsel %vm1409, %v1388, %v702
      %v1422 = vsel %vm1409, %v1389, %v704
      %v1423 = vsel %vm1409, %v1390, %v706
      %v1424 = vsel %vm1409, %v1391, %v708
      %v1425 = vsel %vm1409, %v1392, %v710
      %v1426 = vsel %vm1409, %v1393, %v712
      %v1427 = vsel %vm1409, %v1394, %v714
      %v1428 = vsel %vm1409, %v1395, %v716
      %v1429 = vsel %vm1409, %v1396, %v718
      %v1430 = vsel %vm1409, %v1397, %v720
      %v1431 = vsel %vm1409, %v1398, %v722
      %v1432 = vsel %vm1409, %v1399, %v724
      %v1433 = vsel %vm1409, %v1400, %v726
      %v1434 = vsel %vm1409, %v1401, %v728
      %v1435 = vsel %vm1409, %v1402, %v730
      %v1436 = vsel %vm1409, %v1403, %v732
      %v1437 = vsel %vm1409, %v1404, %v734
      %v1438 = vsel %vm1409, %v1405, %v736
      %v1439 = vsel %vm1409, %v1406, %v738
      %v1440 = vsel %vm1409, %v1407, %v740
      %v1441 = vsel %vm1409, %v1408, %v742
      %vm1442 = vcmask 97280
      %v1443 = vsel %vm1442, %v1410, %v778
      %v1444 = vsel %vm1442, %v1411, %v780
      %v1445 = vsel %vm1442, %v1412, %v782
      %v1446 = vsel %vm1442, %v1413, %v784
      %v1447 = vsel %vm1442, %v1414, %v786
      %v1448 = vsel %vm1442, %v1415, %v788
      %v1449 = vsel %vm1442, %v1416, %v790
      %v1450 = vsel %vm1442, %v1417, %v792
      %v1451 = vsel %vm1442, %v1418, %v794
      %v1452 = vsel %vm1442, %v1419, %v796
      %v1453 = vsel %vm1442, %v1420, %v798
      %v1454 = vsel %vm1442, %v1421, %v800
      %v1455 = vsel %vm1442, %v1422, %v802
      %v1456 = vsel %vm1442, %v1423, %v804
      %v1457 = vsel %vm1442, %v1424, %v806
      %v1458 = vsel %vm1442, %v1425, %v808
      %v1459 = vsel %vm1442, %v1426, %v810
      %v1460 = vsel %vm1442, %v1427, %v812
      %v1461 = vsel %vm1442, %v1428, %v814
      %v1462 = vsel %vm1442, %v1429, %v816
      %v1463 = vsel %vm1442, %v1430, %v818
      %v1464 = vsel %vm1442, %v1431, %v820
      %v1465 = vsel %vm1442, %v1432, %v822
      %v1466 = vsel %vm1442, %v1433, %v824
      %v1467 = vsel %vm1442, %v1434, %v826
      %v1468 = vsel %vm1442, %v1435, %v828
      %v1469 = vsel %vm1442, %v1436, %v830
      %v1470 = vsel %vm1442, %v1437, %v832
      %v1471 = vsel %vm1442, %v1438, %v834
      %v1472 = vsel %vm1442, %v1439, %v836
      %v1473 = vsel %vm1442, %v1440, %v838
      %v1474 = vsel %vm1442, %v1441, %v840
      %vm1475 = vcmask 130048
      %v1476 = vsel %vm1475, %v1443, %v880
      %v1477 = vsel %vm1475, %v1444, %v882
      %v1478 = vsel %vm1475, %v1445, %v884
      %v1479 = vsel %vm1475, %v1446, %v886
      %v1480 = vsel %vm1475, %v1447, %v888
      %v1481 = vsel %vm1475, %v1448, %v890
      %v1482 = vsel %vm1475, %v1449, %v892
      %v1483 = vsel %vm1475, %v1450, %v894
      %v1484 = vsel %vm1475, %v1451, %v896
      %v1485 = vsel %vm1475, %v1452, %v898
      %v1486 = vsel %vm1475, %v1453, %v900
      %v1487 = vsel %vm1475, %v1454, %v902
      %v1488 = vsel %vm1475, %v1455, %v904
      %v1489 = vsel %vm1475, %v1456, %v906
      %v1490 = vsel %vm1475, %v1457, %v908
      %v1491 = vsel %vm1475, %v1458, %v910
      %v1492 = vsel %vm1475, %v1459, %v912
      %v1493 = vsel %vm1475, %v1460, %v914
      %v1494 = vsel %vm1475, %v1461, %v916
      %v1495 = vsel %vm1475, %v1462, %v918
      %v1496 = vsel %vm1475, %v1463, %v920
      %v1497 = vsel %vm1475, %v1464, %v922
      %v1498 = vsel %vm1475, %v1465, %v924
      %v1499 = vsel %vm1475, %v1466, %v926
      %v1500 = vsel %vm1475, %v1467, %v928
      %v1501 = vsel %vm1475, %v1468, %v930
      %v1502 = vsel %vm1475, %v1469, %v932
      %v1503 = vsel %vm1475, %v1470, %v934
      %v1504 = vsel %vm1475, %v1471, %v936
      %v1505 = vsel %vm1475, %v1472, %v938
      %v1506 = vsel %vm1475, %v1473, %v940
      %v1507 = vsel %vm1475, %v1474, %v942
      %vm1508 = vcmask 162816
      %v1509 = vsel %vm1508, %v1476, %v981
      %v1510 = vsel %vm1508, %v1477, %v983
      %v1511 = vsel %vm1508, %v1478, %v985
      %v1512 = vsel %vm1508, %v1479, %v987
      %v1513 = vsel %vm1508, %v1480, %v989
      %v1514 = vsel %vm1508, %v1481, %v991
      %v1515 = vsel %vm1508, %v1482, %v993
      %v1516 = vsel %vm1508, %v1483, %v995
      %v1517 = vsel %vm1508, %v1484, %v997
      %v1518 = vsel %vm1508, %v1485, %v999
      %v1519 = vsel %vm1508, %v1486, %v1001
      %v1520 = vsel %vm1508, %v1487, %v1003
      %v1521 = vsel %vm1508, %v1488, %v1005
      %v1522 = vsel %vm1508, %v1489, %v1007
      %v1523 = vsel %vm1508, %v1490, %v1009
      %v1524 = vsel %vm1508, %v1491, %v1011
      %v1525 = vsel %vm1508, %v1492, %v1013
      %v1526 = vsel %vm1508, %v1493, %v1015
      %v1527 = vsel %vm1508, %v1494, %v1017
      %v1528 = vsel %vm1508, %v1495, %v1019
      %v1529 = vsel %vm1508, %v1496, %v1021
      %v1530 = vsel %vm1508, %v1497, %v1023
      %v1531 = vsel %vm1508, %v1498, %v1025
      %v1532 = vsel %vm1508, %v1499, %v1027
      %v1533 = vsel %vm1508, %v1500, %v1029
      %v1534 = vsel %vm1508, %v1501, %v1031
      %v1535 = vsel %vm1508, %v1502, %v1033
      %v1536 = vsel %vm1508, %v1503, %v1035
      %v1537 = vsel %vm1508, %v1504, %v1037
      %v1538 = vsel %vm1508, %v1505, %v1039
      %v1539 = vsel %vm1508, %v1506, %v1041
      %v1540 = vsel %vm1508, %v1507, %v1043
      %vm1541 = vcmask 195584
      %v1542 = vsel %vm1541, %v1509, %v1079
      %v1543 = vsel %vm1541, %v1510, %v1081
      %v1544 = vsel %vm1541, %v1511, %v1083
      %v1545 = vsel %vm1541, %v1512, %v1085
      %v1546 = vsel %vm1541, %v1513, %v1087
      %v1547 = vsel %vm1541, %v1514, %v1089
      %v1548 = vsel %vm1541, %v1515, %v1091
      %v1549 = vsel %vm1541, %v1516, %v1093
      %v1550 = vsel %vm1541, %v1517, %v1095
      %v1551 = vsel %vm1541, %v1518, %v1097
      %v1552 = vsel %vm1541, %v1519, %v1099
      %v1553 = vsel %vm1541, %v1520, %v1101
      %v1554 = vsel %vm1541, %v1521, %v1103
      %v1555 = vsel %vm1541, %v1522, %v1105
      %v1556 = vsel %vm1541, %v1523, %v1107
      %v1557 = vsel %vm1541, %v1524, %v1109
      %v1558 = vsel %vm1541, %v1525, %v1111
      %v1559 = vsel %vm1541, %v1526, %v1113
      %v1560 = vsel %vm1541, %v1527, %v1115
      %v1561 = vsel %vm1541, %v1528, %v1117
      %v1562 = vsel %vm1541, %v1529, %v1119
      %v1563 = vsel %vm1541, %v1530, %v1121
      %v1564 = vsel %vm1541, %v1531, %v1123
      %v1565 = vsel %vm1541, %v1532, %v1125
      %v1566 = vsel %vm1541, %v1533, %v1127
      %v1567 = vsel %vm1541, %v1534, %v1129
      %v1568 = vsel %vm1541, %v1535, %v1131
      %v1569 = vsel %vm1541, %v1536, %v1133
      %v1570 = vsel %vm1541, %v1537, %v1135
      %v1571 = vsel %vm1541, %v1538, %v1137
      %v1572 = vsel %vm1541, %v1539, %v1139
      %v1573 = vsel %vm1541, %v1540, %v1141
      %vm1574 = vcmask 228352
      %v1575 = vsel %vm1574, %v1542, %v1181
      %v1576 = vsel %vm1574, %v1543, %v1183
      %v1577 = vsel %vm1574, %v1544, %v1185
      %v1578 = vsel %vm1574, %v1545, %v1187
      %v1579 = vsel %vm1574, %v1546, %v1189
      %v1580 = vsel %vm1574, %v1547, %v1191
      %v1581 = vsel %vm1574, %v1548, %v1193
      %v1582 = vsel %vm1574, %v1549, %v1195
      %v1583 = vsel %vm1574, %v1550, %v1197
      %v1584 = vsel %vm1574, %v1551, %v1199
      %v1585 = vsel %vm1574, %v1552, %v1201
      %v1586 = vsel %vm1574, %v1553, %v1203
      %v1587 = vsel %vm1574, %v1554, %v1205
      %v1588 = vsel %vm1574, %v1555, %v1207
      %v1589 = vsel %vm1574, %v1556, %v1209
      %v1590 = vsel %vm1574, %v1557, %v1211
      %v1591 = vsel %vm1574, %v1558, %v1213
      %v1592 = vsel %vm1574, %v1559, %v1215
      %v1593 = vsel %vm1574, %v1560, %v1217
      %v1594 = vsel %vm1574, %v1561, %v1219
      %v1595 = vsel %vm1574, %v1562, %v1221
      %v1596 = vsel %vm1574, %v1563, %v1223
      %v1597 = vsel %vm1574, %v1564, %v1225
      %v1598 = vsel %vm1574, %v1565, %v1227
      %v1599 = vsel %vm1574, %v1566, %v1229
      %v1600 = vsel %vm1574, %v1567, %v1231
      %v1601 = vsel %vm1574, %v1568, %v1233
      %v1602 = vsel %vm1574, %v1569, %v1235
      %v1603 = vsel %vm1574, %v1570, %v1237
      %v1604 = vsel %vm1574, %v1571, %v1239
      %v1605 = vsel %vm1574, %v1572, %v1241
      %v1606 = vsel %vm1574, %v1573, %v1243
      %vm1607 = vcmask 261120
      %v1608 = vsel %vm1607, %v1575, %v1282
      %v1609 = vsel %vm1607, %v1576, %v1284
      %v1610 = vsel %vm1607, %v1577, %v1286
      %v1611 = vsel %vm1607, %v1578, %v1288
      %v1612 = vsel %vm1607, %v1579, %v1290
      %v1613 = vsel %vm1607, %v1580, %v1292
      %v1614 = vsel %vm1607, %v1581, %v1294
      %v1615 = vsel %vm1607, %v1582, %v1296
      %v1616 = vsel %vm1607, %v1583, %v1298
      %v1617 = vsel %vm1607, %v1584, %v1300
      %v1618 = vsel %vm1607, %v1585, %v1302
      %v1619 = vsel %vm1607, %v1586, %v1304
      %v1620 = vsel %vm1607, %v1587, %v1306
      %v1621 = vsel %vm1607, %v1588, %v1308
      %v1622 = vsel %vm1607, %v1589, %v1310
      %v1623 = vsel %vm1607, %v1590, %v1312
      %v1624 = vsel %vm1607, %v1591, %v1314
      %v1625 = vsel %vm1607, %v1592, %v1316
      %v1626 = vsel %vm1607, %v1593, %v1318
      %v1627 = vsel %vm1607, %v1594, %v1320
      %v1628 = vsel %vm1607, %v1595, %v1322
      %v1629 = vsel %vm1607, %v1596, %v1324
      %v1630 = vsel %vm1607, %v1597, %v1326
      %v1631 = vsel %vm1607, %v1598, %v1328
      %v1632 = vsel %vm1607, %v1599, %v1330
      %v1633 = vsel %vm1607, %v1600, %v1332
      %v1634 = vsel %vm1607, %v1601, %v1334
      %v1635 = vsel %vm1607, %v1602, %v1336
      %v1636 = vsel %vm1607, %v1603, %v1338
      %v1637 = vsel %vm1607, %v1604, %v1340
      %v1638 = vsel %vm1607, %v1605, %v1342
      %v1639 = vsel %vm1607, %v1606, %v1344
      %v1640 = vld [vmem:[%s1] sm:$0xff]
      %v1641 = vld [vmem:[%s1 + $0x8] sm:$0xff]
      %v1642 = vld [vmem:[%s1 + $0x10] sm:$0xff]
      %v1643 = vld [vmem:[%s1 + $0x18] sm:$0xff]
      %v1644 = vld [vmem:[%s1 + $0x20] sm:$0xf]
      %vm1645 = vcmask 293888
      %v1647 = vsel %vm1645, %v1608, 0
      %v1650 = vsel %vm1645, %v1609, 0
      %v1653 = vsel %vm1645, %v1610, 0
      %v1656 = vsel %vm1645, %v1611, 0
      %v1659 = vsel %vm1645, %v1612, 0
      %v1662 = vsel %vm1645, %v1613, 0
      %v1665 = vsel %vm1645, %v1614, 0
      %v1668 = vsel %vm1645, %v1615, 0
      %v1671 = vsel %vm1645, %v1616, 0
      %v1674 = vsel %vm1645, %v1617, 0
      %v1677 = vsel %vm1645, %v1618, 0
      %v1680 = vsel %vm1645, %v1619, 0
      %v1683 = vsel %vm1645, %v1620, 0
      %v1686 = vsel %vm1645, %v1621, 0
      %v1689 = vsel %vm1645, %v1622, 0
      %v1692 = vsel %vm1645, %v1623, 0
      %v1695 = vsel %vm1645, %v1624, 0
      %v1698 = vsel %vm1645, %v1625, 0
      %v1701 = vsel %vm1645, %v1626, 0
      %v1704 = vsel %vm1645, %v1627, 0
      %v1707 = vsel %vm1645, %v1628, 0
      %v1710 = vsel %vm1645, %v1629, 0
      %v1713 = vsel %vm1645, %v1630, 0
      %v1716 = vsel %vm1645, %v1631, 0
      %v1719 = vsel %vm1645, %v1632, 0
      %v1722 = vsel %vm1645, %v1633, 0
      %v1725 = vsel %vm1645, %v1634, 0
      %v1728 = vsel %vm1645, %v1635, 0
      %v1731 = vsel %vm1645, %v1636, 0
      %v1734 = vsel %vm1645, %v1637, 0
      %v1737 = vsel %vm1645, %v1638, 0
      %v1740 = vsel %vm1645, %v1639, 0
      %vm1742 = vcmask 1043456
      %v1744 = vsel %vm1742, %v1644, 0
      %1746 = vmatprep.subr.mxu0 0.0
      %1747 = vmatpush1.msra.mxu0 %v1640
      %1748 = vmatprep.subr.mxu0 0.0
      %1749 = vmatpush1.msra.mxu0 %v1641
      %1750 = vmatprep.subr.mxu0 0.0
      %1751 = vmatpush1.msra.mxu0 %v1642
      %1752 = vmatprep.subr.mxu0 0.0
      %1753 = vmatpush1.msra.mxu0 %v1643
      %1754 = vmatprep.subr.mxu0 0.0
      %1755 = vmatpush1.msra.mxu0 %v1744
      %1756 = vmatprep.subr.mxu0 0.0
      %1757 = vmatpush1.msra.mxu0 0.0
      %1758 = vmatprep.subr.mxu0 0.0
      %1759 = vmatpush1.msra.mxu0 0.0
      %1760 = vmatprep.subr.mxu0 0.0
      %1761 = vmatpush1.msra.mxu0 0.0
      %1762 = vmatprep.subr.mxu0 0.0
      %1763 = vmatpush1.msra.mxu0 0.0
      %1764 = vmatprep.subr.mxu0 0.0
      %1765 = vmatpush1.msra.mxu0 0.0
      %1766 = vmatprep.subr.mxu0 0.0
      %1767 = vmatpush1.msra.mxu0 0.0
      %1768 = vmatprep.subr.mxu0 0.0
      %1769 = vmatpush1.msra.mxu0 0.0
      %1770 = vmatprep.subr.mxu0 0.0
      %1771 = vmatpush1.msra.mxu0 0.0
      %1772 = vmatprep.subr.mxu0 0.0
      %1773 = vmatpush1.msra.mxu0 0.0
      %1774 = vmatprep.subr.mxu0 0.0
      %1775 = vmatpush1.msra.mxu0 0.0
      %1776 = vmatprep.subr.mxu0 0.0
      %1777 = vmatpush1.msra.mxu0 0.0
      %1778 = vmatprep.subr.mxu0 0.0
      %1779 = vmatpush1.msra.mxu0 0.0
      %1780 = vmatprep.subr.mxu0 0.0
      %1781 = vmatpush1.msra.mxu0 0.0
      %1782 = vmatprep.subr.mxu0 0.0
      %1783 = vmatpush1.msra.mxu0 0.0
      %1784 = vmatprep.subr.mxu0 0.0
      %1785 = vmatpush1.msra.mxu0 0.0
      %1786 = vmatprep.subr.mxu0 0.0
      %1787 = vmatpush1.msra.mxu0 0.0
      %1788 = vmatprep.subr.mxu0 0.0
      %1789 = vmatpush1.msra.mxu0 0.0
      %1790 = vmatprep.subr.mxu0 0.0
      %1791 = vmatpush1.msra.mxu0 0.0
      %1792 = vmatprep.subr.mxu0 0.0
      %1793 = vmatpush1.msra.mxu0 0.0
      %1794 = vmatprep.subr.mxu0 0.0
      %1795 = vmatpush1.msra.mxu0 0.0
      %1796 = vmatprep.subr.mxu0 0.0
      %1797 = vmatpush1.msra.mxu0 0.0
      %1798 = vmatprep.subr.mxu0 0.0
      %1799 = vmatpush1.msra.mxu0 0.0
      %1800 = vmatprep.subr.mxu0 0.0
      %1801 = vmatpush1.msra.mxu0 0.0
      %1802 = vmatprep.subr.mxu0 0.0
      %1803 = vmatpush1.msra.mxu0 0.0
      %1804 = vmatprep.subr.mxu0 0.0
      %1805 = vmatpush1.msra.mxu0 0.0
      %1806 = vmatprep.subr.mxu0 0.0
      %1807 = vmatpush1.msra.mxu0 0.0
      %1808 = vmatprep.subr.mxu0 0.0
      %1809 = vmatpush1.msra.mxu0 0.0
      %1810 = vmatprep.mubr.f32.mxu0 0.0
      %1811 = vmatmul.mubr.f32.gmra.mrb[0].mxu0 %v1647
      %v1812 = vpop.f32.mrb[0].mxu0
      %v1813 = vadd.f32 0.0, %v1812
      %v1814 = vpop.f32.mrb[0].mxu0
      %1815 = vmatprep.mubr.f32.mxu0 0.0
      %1816 = vmatmul.mubr.f32.gmra.mrb[0].mxu0 %v1650
      %v1817 = vpop.f32.mrb[0].mxu0
      %v1818 = vadd.f32 0.0, %v1817
      %v1819 = vpop.f32.mrb[0].mxu0
      %1820 = vmatprep.mubr.f32.mxu0 0.0
      %1821 = vmatmul.mubr.f32.gmra.mrb[0].mxu0 %v1653
      %v1822 = vpop.f32.mrb[0].mxu0
      %v1823 = vadd.f32 0.0, %v1822
      %v1824 = vpop.f32.mrb[0].mxu0
      %1825 = vmatprep.mubr.f32.mxu0 0.0
      %1826 = vmatmul.mubr.f32.gmra.mrb[0].mxu0 %v1656
      %v1827 = vpop.f32.mrb[0].mxu0
      %v1828 = vadd.f32 0.0, %v1827
      %v1829 = vpop.f32.mrb[0].mxu0
      %1830 = vmatprep.mubr.f32.mxu0 0.0
      %1831 = vmatmul.mubr.f32.gmra.mrb[0].mxu0 %v1659
      %v1832 = vpop.f32.mrb[0].mxu0
      %v1833 = vadd.f32 0.0, %v1832
      %v1834 = vpop.f32.mrb[0].mxu0
      %1835 = vmatprep.mubr.f32.mxu0 0.0
      %1836 = vmatmul.mubr.f32.gmra.mrb[0].mxu0 %v1662
      %v1837 = vpop.f32.mrb[0].mxu0
      %v1838 = vadd.f32 0.0, %v1837
      %v1839 = vpop.f32.mrb[0].mxu0
      %1840 = vmatprep.mubr.f32.mxu0 0.0
      %1841 = vmatmul.mubr.f32.gmra.mrb[0].mxu0 %v1665
      %v1842 = vpop.f32.mrb[0].mxu0
      %v1843 = vadd.f32 0.0, %v1842
      %v1844 = vpop.f32.mrb[0].mxu0
      %1845 = vmatprep.mubr.f32.mxu0 0.0
      %1846 = vmatmul.mubr.f32.gmra.mrb[0].mxu0 %v1668
      %v1847 = vpop.f32.mrb[0].mxu0
      %v1848 = vadd.f32 0.0, %v1847
      %v1849 = vpop.f32.mrb[0].mxu0
      %1850 = vmatprep.mubr.f32.mxu0 0.0
      %1851 = vmatmul.mubr.f32.gmra.mrb[0].mxu0 %v1671
      %v1852 = vpop.f32.mrb[0].mxu0
      %v1853 = vadd.f32 0.0, %v1852
      %v1854 = vpop.f32.mrb[0].mxu0
      %1855 = vmatprep.mubr.f32.mxu0 0.0
      %1856 = vmatmul.mubr.f32.gmra.mrb[0].mxu0 %v1674
      %v1857 = vpop.f32.mrb[0].mxu0
      %v1858 = vadd.f32 0.0, %v1857
      %v1859 = vpop.f32.mrb[0].mxu0
      %1860 = vmatprep.mubr.f32.mxu0 0.0
      %1861 = vmatmul.mubr.f32.gmra.mrb[0].mxu0 %v1677
      %v1862 = vpop.f32.mrb[0].mxu0
      %v1863 = vadd.f32 0.0, %v1862
      %v1864 = vpop.f32.mrb[0].mxu0
      %1865 = vmatprep.mubr.f32.mxu0 0.0
      %1866 = vmatmul.mubr.f32.gmra.mrb[0].mxu0 %v1680
      %v1867 = vpop.f32.mrb[0].mxu0
      %v1868 = vadd.f32 0.0, %v1867
      %v1869 = vpop.f32.mrb[0].mxu0
      %1870 = vmatprep.mubr.f32.mxu0 0.0
      %1871 = vmatmul.mubr.f32.gmra.mrb[0].mxu0 %v1683
      %v1872 = vpop.f32.mrb[0].mxu0
      %v1873 = vadd.f32 0.0, %v1872
      %v1874 = vpop.f32.mrb[0].mxu0
      %1875 = vmatprep.mubr.f32.mxu0 0.0
      %1876 = vmatmul.mubr.f32.gmra.mrb[0].mxu0 %v1686
      %v1877 = vpop.f32.mrb[0].mxu0
      %v1878 = vadd.f32 0.0, %v1877
      %v1879 = vpop.f32.mrb[0].mxu0
      %1880 = vmatprep.mubr.f32.mxu0 0.0
      %1881 = vmatmul.mubr.f32.gmra.mrb[0].mxu0 %v1689
      %v1882 = vpop.f32.mrb[0].mxu0
      %v1883 = vadd.f32 0.0, %v1882
      %v1884 = vpop.f32.mrb[0].mxu0
      %1885 = vmatprep.mubr.f32.mxu0 0.0
      %1886 = vmatmul.mubr.f32.gmra.mrb[0].mxu0 %v1692
      %v1887 = vpop.f32.mrb[0].mxu0
      %v1888 = vadd.f32 0.0, %v1887
      %v1889 = vpop.f32.mrb[0].mxu0
      %1890 = vmatprep.mubr.f32.mxu0 0.0
      %1891 = vmatmul.mubr.f32.gmra.mrb[0].mxu0 %v1695
      %v1892 = vpop.f32.mrb[0].mxu0
      %v1893 = vadd.f32 0.0, %v1892
      %v1894 = vpop.f32.mrb[0].mxu0
      %1895 = vmatprep.mubr.f32.mxu0 0.0
      %1896 = vmatmul.mubr.f32.gmra.mrb[0].mxu0 %v1698
      %v1897 = vpop.f32.mrb[0].mxu0
      %v1898 = vadd.f32 0.0, %v1897
      %v1899 = vpop.f32.mrb[0].mxu0
      %1900 = vmatprep.mubr.f32.mxu0 0.0
      %1901 = vmatmul.mubr.f32.gmra.mrb[0].mxu0 %v1701
      %v1902 = vpop.f32.mrb[0].mxu0
      %v1903 = vadd.f32 0.0, %v1902
      %v1904 = vpop.f32.mrb[0].mxu0
      %1905 = vmatprep.mubr.f32.mxu0 0.0
      %1906 = vmatmul.mubr.f32.gmra.mrb[0].mxu0 %v1704
      %v1907 = vpop.f32.mrb[0].mxu0
      %v1908 = vadd.f32 0.0, %v1907
      %v1909 = vpop.f32.mrb[0].mxu0
      %1910 = vmatprep.mubr.f32.mxu0 0.0
      %1911 = vmatmul.mubr.f32.gmra.mrb[0].mxu0 %v1707
      %v1912 = vpop.f32.mrb[0].mxu0
      %v1913 = vadd.f32 0.0, %v1912
      %v1914 = vpop.f32.mrb[0].mxu0
      %1915 = vmatprep.mubr.f32.mxu0 0.0
      %1916 = vmatmul.mubr.f32.gmra.mrb[0].mxu0 %v1710
      %v1917 = vpop.f32.mrb[0].mxu0
      %v1918 = vadd.f32 0.0, %v1917
      %v1919 = vpop.f32.mrb[0].mxu0
      %1920 = vmatprep.mubr.f32.mxu0 0.0
      %1921 = vmatmul.mubr.f32.gmra.mrb[0].mxu0 %v1713
      %v1922 = vpop.f32.mrb[0].mxu0
      %v1923 = vadd.f32 0.0, %v1922
      %v1924 = vpop.f32.mrb[0].mxu0
      %1925 = vmatprep.mubr.f32.mxu0 0.0
      %1926 = vmatmul.mubr.f32.gmra.mrb[0].mxu0 %v1716
      %v1927 = vpop.f32.mrb[0].mxu0
      %v1928 = vadd.f32 0.0, %v1927
      %v1929 = vpop.f32.mrb[0].mxu0
      %1930 = vmatprep.mubr.f32.mxu0 0.0
      %1931 = vmatmul.mubr.f32.gmra.mrb[0].mxu0 %v1719
      %v1932 = vpop.f32.mrb[0].mxu0
      %v1933 = vadd.f32 0.0, %v1932
      %v1934 = vpop.f32.mrb[0].mxu0
      %1935 = vmatprep.mubr.f32.mxu0 0.0
      %1936 = vmatmul.mubr.f32.gmra.mrb[0].mxu0 %v1722
      %v1937 = vpop.f32.mrb[0].mxu0
      %v1938 = vadd.f32 0.0, %v1937
      %v1939 = vpop.f32.mrb[0].mxu0
      %1940 = vmatprep.mubr.f32.mxu0 0.0
      %1941 = vmatmul.mubr.f32.gmra.mrb[0].mxu0 %v1725
      %v1942 = vpop.f32.mrb[0].mxu0
      %v1943 = vadd.f32 0.0, %v1942
      %v1944 = vpop.f32.mrb[0].mxu0
      %1945 = vmatprep.mubr.f32.mxu0 0.0
      %1946 = vmatmul.mubr.f32.gmra.mrb[0].mxu0 %v1728
      %v1947 = vpop.f32.mrb[0].mxu0
      %v1948 = vadd.f32 0.0, %v1947
      %v1949 = vpop.f32.mrb[0].mxu0
      %1950 = vmatprep.mubr.f32.mxu0 0.0
      %1951 = vmatmul.mubr.f32.gmra.mrb[0].mxu0 %v1731
      %v1952 = vpop.f32.mrb[0].mxu0
      %v1953 = vadd.f32 0.0, %v1952
      %v1954 = vpop.f32.mrb[0].mxu0
      %1955 = vmatprep.mubr.f32.mxu0 0.0
      %1956 = vmatmul.mubr.f32.gmra.mrb[0].mxu0 %v1734
      %v1957 = vpop.f32.mrb[0].mxu0
      %v1958 = vadd.f32 0.0, %v1957
      %v1959 = vpop.f32.mrb[0].mxu0
      %1960 = vmatprep.mubr.f32.mxu0 0.0
      %1961 = vmatmul.mubr.f32.gmra.mrb[0].mxu0 %v1737
      %v1962 = vpop.f32.mrb[0].mxu0
      %v1963 = vadd.f32 0.0, %v1962
      %v1964 = vpop.f32.mrb[0].mxu0
      %1965 = vmatprep.mubr.f32.mxu0 0.0
      %1966 = vmatmul.mubr.f32.gmra.mrb[0].mxu0 %v1740
      %v1967 = vpop.f32.mrb[0].mxu0
      %v1968 = vadd.f32 0.0, %v1967
      %v1969 = vpop.f32.mrb[0].mxu0
      %1970 = vdwg.mxu0
      %v1971 = vmax.f32 %v1813, 0.0
      %v1972 = vmax.f32 %v1818, 0.0
      %v1973 = vmax.f32 %v1823, 0.0
      %v1974 = vmax.f32 %v1828, 0.0
      %v1975 = vmax.f32 %v1833, 0.0
      %v1976 = vmax.f32 %v1838, 0.0
      %v1977 = vmax.f32 %v1843, 0.0
      %v1978 = vmax.f32 %v1848, 0.0
      %v1979 = vmax.f32 %v1853, 0.0
      %v1980 = vmax.f32 %v1858, 0.0
      %v1981 = vmax.f32 %v1863, 0.0
      %v1982 = vmax.f32 %v1868, 0.0
      %v1983 = vmax.f32 %v1873, 0.0
      %v1984 = vmax.f32 %v1878, 0.0
      %v1985 = vmax.f32 %v1883, 0.0
      %v1986 = vmax.f32 %v1888, 0.0
      %v1987 = vmax.f32 %v1893, 0.0
      %v1988 = vmax.f32 %v1898, 0.0
      %v1989 = vmax.f32 %v1903, 0.0
      %v1990 = vmax.f32 %v1908, 0.0
      %v1991 = vmax.f32 %v1913, 0.0
      %v1992 = vmax.f32 %v1918, 0.0
      %v1993 = vmax.f32 %v1923, 0.0
      %v1994 = vmax.f32 %v1928, 0.0
      %v1995 = vmax.f32 %v1933, 0.0
      %v1996 = vmax.f32 %v1938, 0.0
      %v1997 = vmax.f32 %v1943, 0.0
      %v1998 = vmax.f32 %v1948, 0.0
      %v1999 = vmax.f32 %v1953, 0.0
      %v2000 = vmax.f32 %v1958, 0.0
      %v2001 = vmax.f32 %v1963, 0.0
      %v2002 = vmax.f32 %v1968, 0.0
      %v2003 = vld [vmem:[%s3] sm:$0xf]
      %2004 = vrot.lane.b32.xlu0 %v1608, 112
      %v2005 = vpop.permute.xlu0 %2004
      %2006 = vrot.lane.b32.xlu0 %v1609, 112
      %v2007 = vpop.permute.xlu0 %2006
      %2008 = vrot.lane.b32.xlu0 %v1610, 112
      %v2009 = vpop.permute.xlu0 %2008
      %2010 = vrot.lane.b32.xlu0 %v1611, 112
      %v2011 = vpop.permute.xlu0 %2010
      %2012 = vrot.lane.b32.xlu0 %v1612, 112
      %v2013 = vpop.permute.xlu0 %2012
      %2014 = vrot.lane.b32.xlu0 %v1613, 112
      %v2015 = vpop.permute.xlu0 %2014
      %2016 = vrot.lane.b32.xlu0 %v1614, 112
      %v2017 = vpop.permute.xlu0 %2016
      %2018 = vrot.lane.b32.xlu0 %v1615, 112
      %v2019 = vpop.permute.xlu0 %2018
      %2020 = vrot.lane.b32.xlu0 %v1616, 112
      %v2021 = vpop.permute.xlu0 %2020
      %2022 = vrot.lane.b32.xlu0 %v1617, 112
      %v2023 = vpop.permute.xlu0 %2022
      %2024 = vrot.lane.b32.xlu0 %v1618, 112
      %v2025 = vpop.permute.xlu0 %2024
      %2026 = vrot.lane.b32.xlu0 %v1619, 112
      %v2027 = vpop.permute.xlu0 %2026
      %2028 = vrot.lane.b32.xlu0 %v1620, 112
      %v2029 = vpop.permute.xlu0 %2028
      %2030 = vrot.lane.b32.xlu0 %v1621, 112
      %v2031 = vpop.permute.xlu0 %2030
      %2032 = vrot.lane.b32.xlu0 %v1622, 112
      %v2033 = vpop.permute.xlu0 %2032
      %2034 = vrot.lane.b32.xlu0 %v1623, 112
      %v2035 = vpop.permute.xlu0 %2034
      %2036 = vrot.lane.b32.xlu0 %v1624, 112
      %v2037 = vpop.permute.xlu0 %2036
      %2038 = vrot.lane.b32.xlu0 %v1625, 112
      %v2039 = vpop.permute.xlu0 %2038
      %2040 = vrot.lane.b32.xlu0 %v1626, 112
      %v2041 = vpop.permute.xlu0 %2040
      %2042 = vrot.lane.b32.xlu0 %v1627, 112
      %v2043 = vpop.permute.xlu0 %2042
      %2044 = vrot.lane.b32.xlu0 %v1628, 112
      %v2045 = vpop.permute.xlu0 %2044
      %2046 = vrot.lane.b32.xlu0 %v1629, 112
      %v2047 = vpop.permute.xlu0 %2046
      %2048 = vrot.lane.b32.xlu0 %v1630, 112
      %v2049 = vpop.permute.xlu0 %2048
      %2050 = vrot.lane.b32.xlu0 %v1631, 112
      %v2051 = vpop.permute.xlu0 %2050
      %2052 = vrot.lane.b32.xlu0 %v1632, 112
      %v2053 = vpop.permute.xlu0 %2052
      %2054 = vrot.lane.b32.xlu0 %v1633, 112
      %v2055 = vpop.permute.xlu0 %2054
      %2056 = vrot.lane.b32.xlu0 %v1634, 112
      %v2057 = vpop.permute.xlu0 %2056
      %2058 = vrot.lane.b32.xlu0 %v1635, 112
      %v2059 = vpop.permute.xlu0 %2058
      %2060 = vrot.lane.b32.xlu0 %v1636, 112
      %v2061 = vpop.permute.xlu0 %2060
      %2062 = vrot.lane.b32.xlu0 %v1637, 112
      %v2063 = vpop.permute.xlu0 %2062
      %2064 = vrot.lane.b32.xlu0 %v1638, 112
      %v2065 = vpop.permute.xlu0 %2064
      %2066 = vrot.lane.b32.xlu0 %v1639, 112
      %v2067 = vpop.permute.xlu0 %2066
      %v2068 = vsel %vm198, %v2005, 0
      %v2070 = vsel %vm198, %v2007, 0
      %v2072 = vsel %vm198, %v2009, 0
      %v2074 = vsel %vm198, %v2011, 0
      %v2076 = vsel %vm198, %v2013, 0
      %v2078 = vsel %vm198, %v2015, 0
      %v2080 = vsel %vm198, %v2017, 0
      %v2082 = vsel %vm198, %v2019, 0
      %v2084 = vsel %vm198, %v2021, 0
      %v2086 = vsel %vm198, %v2023, 0
      %v2088 = vsel %vm198, %v2025, 0
      %v2090 = vsel %vm198, %v2027, 0
      %v2092 = vsel %vm198, %v2029, 0
      %v2094 = vsel %vm198, %v2031, 0
      %v2096 = vsel %vm198, %v2033, 0
      %v2098 = vsel %vm198, %v2035, 0
      %v2100 = vsel %vm198, %v2037, 0
      %v2102 = vsel %vm198, %v2039, 0
      %v2104 = vsel %vm198, %v2041, 0
      %v2106 = vsel %vm198, %v2043, 0
      %v2108 = vsel %vm198, %v2045, 0
      %v2110 = vsel %vm198, %v2047, 0
      %v2112 = vsel %vm198, %v2049, 0
      %v2114 = vsel %vm198, %v2051, 0
      %v2116 = vsel %vm198, %v2053, 0
      %v2118 = vsel %vm198, %v2055, 0
      %v2120 = vsel %vm198, %v2057, 0
      %v2122 = vsel %vm198, %v2059, 0
      %v2124 = vsel %vm198, %v2061, 0
      %v2126 = vsel %vm198, %v2063, 0
      %v2128 = vsel %vm198, %v2065, 0
      %v2130 = vsel %vm198, %v2067, 0
      %v2133 = vsel %vm1742, %v2003, 0
      %2135 = vmatprep.subr.mxu0 0.0
      %2136 = vmatpush1.msra.mxu0 %v2133
      %2137 = vmatprep.subr.mxu0 0.0
      %2138 = vmatpush1.msra.mxu0 0.0
      %2139 = vmatprep.subr.mxu0 0.0
      %2140 = vmatpush1.msra.mxu0 0.0
      %2141 = vmatprep.subr.mxu0 0.0
      %2142 = vmatpush1.msra.mxu0 0.0
      %2143 = vmatprep.subr.mxu0 0.0
      %2144 = vmatpush1.msra.mxu0 0.0
      %2145 = vmatprep.subr.mxu0 0.0
      %2146 = vmatpush1.msra.mxu0 0.0
      %2147 = vmatprep.subr.mxu0 0.0
      %2148 = vmatpush1.msra.mxu0 0.0
      %2149 = vmatprep.subr.mxu0 0.0
      %2150 = vmatpush1.msra.mxu0 0.0
      %2151 = vmatprep.subr.mxu0 0.0
      %2152 = vmatpush1.msra.mxu0 0.0
      %2153 = vmatprep.subr.mxu0 0.0
      %2154 = vmatpush1.msra.mxu0 0.0
      %2155 = vmatprep.subr.mxu0 0.0
      %2156 = vmatpush1.msra.mxu0 0.0
      %2157 = vmatprep.subr.mxu0 0.0
      %2158 = vmatpush1.msra.mxu0 0.0
      %2159 = vmatprep.subr.mxu0 0.0
      %2160 = vmatpush1.msra.mxu0 0.0
      %2161 = vmatprep.subr.mxu0 0.0
      %2162 = vmatpush1.msra.mxu0 0.0
      %2163 = vmatprep.subr.mxu0 0.0
      %2164 = vmatpush1.msra.mxu0 0.0
      %2165 = vmatprep.subr.mxu0 0.0
      %2166 = vmatpush1.msra.mxu0 0.0
      %2167 = vmatprep.subr.mxu0 0.0
      %2168 = vmatpush1.msra.mxu0 0.0
      %2169 = vmatprep.subr.mxu0 0.0
      %2170 = vmatpush1.msra.mxu0 0.0
      %2171 = vmatprep.subr.mxu0 0.0
      %2172 = vmatpush1.msra.mxu0 0.0
      %2173 = vmatprep.subr.mxu0 0.0
      %2174 = vmatpush1.msra.mxu0 0.0
      %2175 = vmatprep.subr.mxu0 0.0
      %2176 = vmatpush1.msra.mxu0 0.0
      %2177 = vmatprep.subr.mxu0 0.0
      %2178 = vmatpush1.msra.mxu0 0.0
      %2179 = vmatprep.subr.mxu0 0.0
      %2180 = vmatpush1.msra.mxu0 0.0
      %2181 = vmatprep.subr.mxu0 0.0
      %2182 = vmatpush1.msra.mxu0 0.0
      %2183 = vmatprep.subr.mxu0 0.0
      %2184 = vmatpush1.msra.mxu0 0.0
      %2185 = vmatprep.subr.mxu0 0.0
      %2186 = vmatpush1.msra.mxu0 0.0
      %2187 = vmatprep.subr.mxu0 0.0
      %2188 = vmatpush1.msra.mxu0 0.0
      %2189 = vmatprep.subr.mxu0 0.0
      %2190 = vmatpush1.msra.mxu0 0.0
      %2191 = vmatprep.subr.mxu0 0.0
      %2192 = vmatpush1.msra.mxu0 0.0
      %2193 = vmatprep.subr.mxu0 0.0
      %2194 = vmatpush1.msra.mxu0 0.0
      %2195 = vmatprep.subr.mxu0 0.0
      %2196 = vmatpush1.msra.mxu0 0.0
      %2197 = vmatprep.subr.mxu0 0.0
      %2198 = vmatpush1.msra.mxu0 0.0
      %2199 = vmatprep.mubr.f32.mxu0 0.0
      %2200 = vmatmul.mubr.f32.gmra.mrb[0].mxu0 %v2068
      %v2201 = vpop.f32.mrb[0].mxu0
      %v2202 = vadd.f32 0.0, %v2201
      %v2203 = vpop.f32.mrb[0].mxu0
      %2204 = vmatprep.mubr.f32.mxu0 0.0
      %2205 = vmatmul.mubr.f32.gmra.mrb[0].mxu0 %v2070
      %v2206 = vpop.f32.mrb[0].mxu0
      %v2207 = vadd.f32 0.0, %v2206
      %v2208 = vpop.f32.mrb[0].mxu0
      %2209 = vmatprep.mubr.f32.mxu0 0.0
      %2210 = vmatmul.mubr.f32.gmra.mrb[0].mxu0 %v2072
      %v2211 = vpop.f32.mrb[0].mxu0
      %v2212 = vadd.f32 0.0, %v2211
      %v2213 = vpop.f32.mrb[0].mxu0
      %2214 = vmatprep.mubr.f32.mxu0 0.0
      %2215 = vmatmul.mubr.f32.gmra.mrb[0].mxu0 %v2074
      %v2216 = vpop.f32.mrb[0].mxu0
      %v2217 = vadd.f32 0.0, %v2216
      %v2218 = vpop.f32.mrb[0].mxu0
      %2219 = vmatprep.mubr.f32.mxu0 0.0
      %2220 = vmatmul.mubr.f32.gmra.mrb[0].mxu0 %v2076
      %v2221 = vpop.f32.mrb[0].mxu0
      %v2222 = vadd.f32 0.0, %v2221
      %v2223 = vpop.f32.mrb[0].mxu0
      %2224 = vmatprep.mubr.f32.mxu0 0.0
      %2225 = vmatmul.mubr.f32.gmra.mrb[0].mxu0 %v2078
      %v2226 = vpop.f32.mrb[0].mxu0
      %v2227 = vadd.f32 0.0, %v2226
      %v2228 = vpop.f32.mrb[0].mxu0
      %2229 = vmatprep.mubr.f32.mxu0 0.0
      %2230 = vmatmul.mubr.f32.gmra.mrb[0].mxu0 %v2080
      %v2231 = vpop.f32.mrb[0].mxu0
      %v2232 = vadd.f32 0.0, %v2231
      %v2233 = vpop.f32.mrb[0].mxu0
      %2234 = vmatprep.mubr.f32.mxu0 0.0
      %2235 = vmatmul.mubr.f32.gmra.mrb[0].mxu0 %v2082
      %v2236 = vpop.f32.mrb[0].mxu0
      %v2237 = vadd.f32 0.0, %v2236
      %v2238 = vpop.f32.mrb[0].mxu0
      %2239 = vmatprep.mubr.f32.mxu0 0.0
      %2240 = vmatmul.mubr.f32.gmra.mrb[0].mxu0 %v2084
      %v2241 = vpop.f32.mrb[0].mxu0
      %v2242 = vadd.f32 0.0, %v2241
      %v2243 = vpop.f32.mrb[0].mxu0
      %2244 = vmatprep.mubr.f32.mxu0 0.0
      %2245 = vmatmul.mubr.f32.gmra.mrb[0].mxu0 %v2086
      %v2246 = vpop.f32.mrb[0].mxu0
      %v2247 = vadd.f32 0.0, %v2246
      %v2248 = vpop.f32.mrb[0].mxu0
      %2249 = vmatprep.mubr.f32.mxu0 0.0
      %2250 = vmatmul.mubr.f32.gmra.mrb[0].mxu0 %v2088
      %v2251 = vpop.f32.mrb[0].mxu0
      %v2252 = vadd.f32 0.0, %v2251
      %v2253 = vpop.f32.mrb[0].mxu0
      %2254 = vmatprep.mubr.f32.mxu0 0.0
      %2255 = vmatmul.mubr.f32.gmra.mrb[0].mxu0 %v2090
      %v2256 = vpop.f32.mrb[0].mxu0
      %v2257 = vadd.f32 0.0, %v2256
      %v2258 = vpop.f32.mrb[0].mxu0
      %2259 = vmatprep.mubr.f32.mxu0 0.0
      %2260 = vmatmul.mubr.f32.gmra.mrb[0].mxu0 %v2092
      %v2261 = vpop.f32.mrb[0].mxu0
      %v2262 = vadd.f32 0.0, %v2261
      %v2263 = vpop.f32.mrb[0].mxu0
      %2264 = vmatprep.mubr.f32.mxu0 0.0
      %2265 = vmatmul.mubr.f32.gmra.mrb[0].mxu0 %v2094
      %v2266 = vpop.f32.mrb[0].mxu0
      %v2267 = vadd.f32 0.0, %v2266
      %v2268 = vpop.f32.mrb[0].mxu0
      %2269 = vmatprep.mubr.f32.mxu0 0.0
      %2270 = vmatmul.mubr.f32.gmra.mrb[0].mxu0 %v2096
      %v2271 = vpop.f32.mrb[0].mxu0
      %v2272 = vadd.f32 0.0, %v2271
      %v2273 = vpop.f32.mrb[0].mxu0
      %2274 = vmatprep.mubr.f32.mxu0 0.0
      %2275 = vmatmul.mubr.f32.gmra.mrb[0].mxu0 %v2098
      %v2276 = vpop.f32.mrb[0].mxu0
      %v2277 = vadd.f32 0.0, %v2276
      %v2278 = vpop.f32.mrb[0].mxu0
      %2279 = vmatprep.mubr.f32.mxu0 0.0
      %2280 = vmatmul.mubr.f32.gmra.mrb[0].mxu0 %v2100
      %v2281 = vpop.f32.mrb[0].mxu0
      %v2282 = vadd.f32 0.0, %v2281
      %v2283 = vpop.f32.mrb[0].mxu0
      %2284 = vmatprep.mubr.f32.mxu0 0.0
      %2285 = vmatmul.mubr.f32.gmra.mrb[0].mxu0 %v2102
      %v2286 = vpop.f32.mrb[0].mxu0
      %v2287 = vadd.f32 0.0, %v2286
      %v2288 = vpop.f32.mrb[0].mxu0
      %2289 = vmatprep.mubr.f32.mxu0 0.0
      %2290 = vmatmul.mubr.f32.gmra.mrb[0].mxu0 %v2104
      %v2291 = vpop.f32.mrb[0].mxu0
      %v2292 = vadd.f32 0.0, %v2291
      %v2293 = vpop.f32.mrb[0].mxu0
      %2294 = vmatprep.mubr.f32.mxu0 0.0
      %2295 = vmatmul.mubr.f32.gmra.mrb[0].mxu0 %v2106
      %v2296 = vpop.f32.mrb[0].mxu0
      %v2297 = vadd.f32 0.0, %v2296
      %v2298 = vpop.f32.mrb[0].mxu0
      %2299 = vmatprep.mubr.f32.mxu0 0.0
      %2300 = vmatmul.mubr.f32.gmra.mrb[0].mxu0 %v2108
      %v2301 = vpop.f32.mrb[0].mxu0
      %v2302 = vadd.f32 0.0, %v2301
      %v2303 = vpop.f32.mrb[0].mxu0
      %2304 = vmatprep.mubr.f32.mxu0 0.0
      %2305 = vmatmul.mubr.f32.gmra.mrb[0].mxu0 %v2110
      %v2306 = vpop.f32.mrb[0].mxu0
      %v2307 = vadd.f32 0.0, %v2306
      %v2308 = vpop.f32.mrb[0].mxu0
      %2309 = vmatprep.mubr.f32.mxu0 0.0
      %2310 = vmatmul.mubr.f32.gmra.mrb[0].mxu0 %v2112
      %v2311 = vpop.f32.mrb[0].mxu0
      %v2312 = vadd.f32 0.0, %v2311
      %v2313 = vpop.f32.mrb[0].mxu0
      %2314 = vmatprep.mubr.f32.mxu0 0.0
      %2315 = vmatmul.mubr.f32.gmra.mrb[0].mxu0 %v2114
      %v2316 = vpop.f32.mrb[0].mxu0
      %v2317 = vadd.f32 0.0, %v2316
      %v2318 = vpop.f32.mrb[0].mxu0
      %2319 = vmatprep.mubr.f32.mxu0 0.0
      %2320 = vmatmul.mubr.f32.gmra.mrb[0].mxu0 %v2116
      %v2321 = vpop.f32.mrb[0].mxu0
      %v2322 = vadd.f32 0.0, %v2321
      %v2323 = vpop.f32.mrb[0].mxu0
      %2324 = vmatprep.mubr.f32.mxu0 0.0
      %2325 = vmatmul.mubr.f32.gmra.mrb[0].mxu0 %v2118
      %v2326 = vpop.f32.mrb[0].mxu0
      %v2327 = vadd.f32 0.0, %v2326
      %v2328 = vpop.f32.mrb[0].mxu0
      %2329 = vmatprep.mubr.f32.mxu0 0.0
      %2330 = vmatmul.mubr.f32.gmra.mrb[0].mxu0 %v2120
      %v2331 = vpop.f32.mrb[0].mxu0
      %v2332 = vadd.f32 0.0, %v2331
      %v2333 = vpop.f32.mrb[0].mxu0
      %2334 = vmatprep.mubr.f32.mxu0 0.0
      %2335 = vmatmul.mubr.f32.gmra.mrb[0].mxu0 %v2122
      %v2336 = vpop.f32.mrb[0].mxu0
      %v2337 = vadd.f32 0.0, %v2336
      %v2338 = vpop.f32.mrb[0].mxu0
      %2339 = vmatprep.mubr.f32.mxu0 0.0
      %2340 = vmatmul.mubr.f32.gmra.mrb[0].mxu0 %v2124
      %v2341 = vpop.f32.mrb[0].mxu0
      %v2342 = vadd.f32 0.0, %v2341
      %v2343 = vpop.f32.mrb[0].mxu0
      %2344 = vmatprep.mubr.f32.mxu0 0.0
      %2345 = vmatmul.mubr.f32.gmra.mrb[0].mxu0 %v2126
      %v2346 = vpop.f32.mrb[0].mxu0
      %v2347 = vadd.f32 0.0, %v2346
      %v2348 = vpop.f32.mrb[0].mxu0
      %2349 = vmatprep.mubr.f32.mxu0 0.0
      %2350 = vmatmul.mubr.f32.gmra.mrb[0].mxu0 %v2128
      %v2351 = vpop.f32.mrb[0].mxu0
      %v2352 = vadd.f32 0.0, %v2351
      %v2353 = vpop.f32.mrb[0].mxu0
      %2354 = vmatprep.mubr.f32.mxu0 0.0
      %2355 = vmatmul.mubr.f32.gmra.mrb[0].mxu0 %v2130
      %v2356 = vpop.f32.mrb[0].mxu0
      %v2357 = vadd.f32 0.0, %v2356
      %v2358 = vpop.f32.mrb[0].mxu0
      %2359 = vdwg.mxu0
      %2360 = vst.msk [vmem:[#allocation3] sm:$0xff] %vm1409, 0.0
      %2361 = vst.msk [vmem:[#allocation3 + $0x8] sm:$0xff] %vm1409, 0.0
      %vm2362 = vcmask 58368
      %2363 = vst.msk [vmem:[#allocation3 + $0x10] sm:$0x3] %vm2362, 0.0
      %2364 = vst.msk [vmem:[#allocation3 + $0x18] sm:$0xff] %vm1409, 0.0
      %2365 = vst.msk [vmem:[#allocation3 + $0x20] sm:$0xff] %vm1409, 0.0
      %2366 = vst.msk [vmem:[#allocation3 + $0x28] sm:$0x3] %vm2362, 0.0
      %2367 = vst.msk [vmem:[#allocation3 + $0x30] sm:$0xff] %vm1409, 0.0
      %2368 = vst.msk [vmem:[#allocation3 + $0x38] sm:$0xff] %vm1409, 0.0
      %2369 = vst.msk [vmem:[#allocation3 + $0x40] sm:$0x3] %vm2362, 0.0
      %2370 = vst.msk [vmem:[#allocation3 + $0x48] sm:$0xff] %vm1409, 0.0
      %2371 = vst.msk [vmem:[#allocation3 + $0x50] sm:$0xff] %vm1409, 0.0
      %2372 = vst.msk [vmem:[#allocation3 + $0x58] sm:$0x3] %vm2362, 0.0
      %2373 = vst.msk [vmem:[#allocation3 + $0x60] sm:$0xff] %vm1409, 0.0
      %2374 = vst.msk [vmem:[#allocation3 + $0x68] sm:$0xff] %vm1409, 0.0
      %2375 = vst.msk [vmem:[#allocation3 + $0x70] sm:$0x3] %vm2362, 0.0
      %2376 = vst.msk [vmem:[#allocation3 + $0x78] sm:$0xff] %vm1409, 0.0
      %2377 = vst.msk [vmem:[#allocation3 + $0x80] sm:$0xff] %vm1409, 0.0
      %2378 = vst.msk [vmem:[#allocation3 + $0x88] sm:$0x3] %vm2362, 0.0
      %2379 = vst.msk [vmem:[#allocation3 + $0x90] sm:$0xff] %vm1409, 0.0
      %2380 = vst.msk [vmem:[#allocation3 + $0x98] sm:$0xff] %vm1409, 0.0
      %2381 = vst.msk [vmem:[#allocation3 + $0xa0] sm:$0x3] %vm2362, 0.0
      %2382 = vst.msk [vmem:[#allocation3 + $0xa8] sm:$0xff] %vm1409, 0.0
      %2383 = vst.msk [vmem:[#allocation3 + $0xb0] sm:$0xff] %vm1409, 0.0
      %2384 = vst.msk [vmem:[#allocation3 + $0xb8] sm:$0x3] %vm2362, 0.0
      %2385 = vst.msk [vmem:[#allocation3 + $0xc0] sm:$0xff] %vm1409, 0.0
      %2386 = vst.msk [vmem:[#allocation3 + $0xc8] sm:$0xff] %vm1409, 0.0
      %2387 = vst.msk [vmem:[#allocation3 + $0xd0] sm:$0x3] %vm2362, 0.0
      %2388 = vst.msk [vmem:[#allocation3 + $0xd8] sm:$0xff] %vm1409, 0.0
      %2389 = vst.msk [vmem:[#allocation3 + $0xe0] sm:$0xff] %vm1409, 0.0
      %2390 = vst.msk [vmem:[#allocation3 + $0xe8] sm:$0x3] %vm2362, 0.0
      %2391 = vst.msk [vmem:[#allocation3 + $0xf0] sm:$0xff] %vm1409, 0.0
      %2392 = vst.msk [vmem:[#allocation3 + $0xf8] sm:$0xff] %vm1409, 0.0
      %2393 = vst.msk [vmem:[#allocation3 + $0x100] sm:$0x3] %vm2362, 0.0
      %2394 = vst.msk [vmem:[#allocation3 + $0x108] sm:$0xff] %vm1409, 0.0
      %2395 = vst.msk [vmem:[#allocation3 + $0x110] sm:$0xff] %vm1409, 0.0
      %2396 = vst.msk [vmem:[#allocation3 + $0x118] sm:$0x3] %vm2362, 0.0
      %2397 = vst.msk [vmem:[#allocation3 + $0x120] sm:$0xff] %vm1409, 0.0
      %2398 = vst.msk [vmem:[#allocation3 + $0x128] sm:$0xff] %vm1409, 0.0
      %2399 = vst.msk [vmem:[#allocation3 + $0x130] sm:$0x3] %vm2362, 0.0
      %2400 = vst.msk [vmem:[#allocation3 + $0x138] sm:$0xff] %vm1409, 0.0
      %2401 = vst.msk [vmem:[#allocation3 + $0x140] sm:$0xff] %vm1409, 0.0
      %2402 = vst.msk [vmem:[#allocation3 + $0x148] sm:$0x3] %vm2362, 0.0
      %2403 = vst.msk [vmem:[#allocation3 + $0x150] sm:$0xff] %vm1409, 0.0
      %2404 = vst.msk [vmem:[#allocation3 + $0x158] sm:$0xff] %vm1409, 0.0
      %2405 = vst.msk [vmem:[#allocation3 + $0x160] sm:$0x3] %vm2362, 0.0
      %2406 = vst.msk [vmem:[#allocation3 + $0x168] sm:$0xff] %vm1409, 0.0
      %2407 = vst.msk [vmem:[#allocation3 + $0x170] sm:$0xff] %vm1409, 0.0
      %2408 = vst.msk [vmem:[#allocation3 + $0x178] sm:$0x3] %vm2362, 0.0
      %2409 = vst.msk [vmem:[#allocation3 + $0x180] sm:$0xff] %vm1409, 0.0
      %2410 = vst.msk [vmem:[#allocation3 + $0x188] sm:$0xff] %vm1409, 0.0
      %2411 = vst.msk [vmem:[#allocation3 + $0x190] sm:$0x3] %vm2362, 0.0
      %2412 = vst.msk [vmem:[#allocation3 + $0x198] sm:$0xff] %vm1409, 0.0
      %2413 = vst.msk [vmem:[#allocation3 + $0x1a0] sm:$0xff] %vm1409, 0.0
      %2414 = vst.msk [vmem:[#allocation3 + $0x1a8] sm:$0x3] %vm2362, 0.0
      %s2415 = scalar_lea.vmem [#allocation3], 24
      %2416 = vst.msk [vmem:[%s2415 + $0x1] sm:$0xff] %vm1409, %v1971
      %2417 = vst.msk [vmem:[%s2415 + $0x9] sm:$0xff] %vm1409, %v1972
      %2418 = vst.msk [vmem:[%s2415 + $0x19] sm:$0xff] %vm1409, %v1973
      %2419 = vst.msk [vmem:[%s2415 + $0x21] sm:$0xff] %vm1409, %v1974
      %2420 = vst.msk [vmem:[%s2415 + $0x31] sm:$0xff] %vm1409, %v1975
      %2421 = vst.msk [vmem:[%s2415 + $0x39] sm:$0xff] %vm1409, %v1976
      %2422 = vst.msk [vmem:[%s2415 + $0x49] sm:$0xff] %vm1409, %v1977
      %2423 = vst.msk [vmem:[%s2415 + $0x51] sm:$0xff] %vm1409, %v1978
      %2424 = vst.msk [vmem:[%s2415 + $0x61] sm:$0xff] %vm1409, %v1979
      %2425 = vst.msk [vmem:[%s2415 + $0x69] sm:$0xff] %vm1409, %v1980
      %2426 = vst.msk [vmem:[%s2415 + $0x79] sm:$0xff] %vm1409, %v1981
      %2427 = vst.msk [vmem:[%s2415 + $0x81] sm:$0xff] %vm1409, %v1982
      %2428 = vst.msk [vmem:[%s2415 + $0x91] sm:$0xff] %vm1409, %v1983
      %2429 = vst.msk [vmem:[%s2415 + $0x99] sm:$0xff] %vm1409, %v1984
      %2430 = vst.msk [vmem:[%s2415 + $0xa9] sm:$0xff] %vm1409, %v1985
      %2431 = vst.msk [vmem:[%s2415 + $0xb1] sm:$0xff] %vm1409, %v1986
      %2432 = vst.msk [vmem:[%s2415 + $0xc1] sm:$0xff] %vm1409, %v1987
      %2433 = vst.msk [vmem:[%s2415 + $0xc9] sm:$0xff] %vm1409, %v1988
      %2434 = vst.msk [vmem:[%s2415 + $0xd9] sm:$0xff] %vm1409, %v1989
      %2435 = vst.msk [vmem:[%s2415 + $0xe1] sm:$0xff] %vm1409, %v1990
      %2436 = vst.msk [vmem:[%s2415 + $0xf1] sm:$0xff] %vm1409, %v1991
      %2437 = vst.msk [vmem:[%s2415 + $0xf9] sm:$0xff] %vm1409, %v1992
      %2438 = vst.msk [vmem:[%s2415 + $0x109] sm:$0xff] %vm1409, %v1993
      %2439 = vst.msk [vmem:[%s2415 + $0x111] sm:$0xff] %vm1409, %v1994
      %2440 = vst.msk [vmem:[%s2415 + $0x121] sm:$0xff] %vm1409, %v1995
      %2441 = vst.msk [vmem:[%s2415 + $0x129] sm:$0xff] %vm1409, %v1996
      %2442 = vst.msk [vmem:[%s2415 + $0x139] sm:$0xff] %vm1409, %v1997
      %2443 = vst.msk [vmem:[%s2415 + $0x141] sm:$0xff] %vm1409, %v1998
      %2444 = vst.msk [vmem:[%s2415 + $0x151] sm:$0xff] %vm1409, %v1999
      %2445 = vst.msk [vmem:[%s2415 + $0x159] sm:$0xff] %vm1409, %v2000
      %2446 = vst.msk [vmem:[%s2415 + $0x169] sm:$0xff] %vm1409, %v2001
      %2447 = vst.msk [vmem:[%s2415 + $0x171] sm:$0xff] %vm1409, %v2002
      %v2448 = vld [vmem:[#allocation3] sm:$0xff]
      %v2449 = vld [vmem:[#allocation3 + $0x8] sm:$0xff]
      %v2450 = vld [vmem:[#allocation3 + $0x10] sm:$0x3]
      %v2451 = vld [vmem:[#allocation3 + $0x18] sm:$0xff]
      %v2452 = vld [vmem:[#allocation3 + $0x20] sm:$0xff]
      %v2453 = vld [vmem:[#allocation3 + $0x28] sm:$0x3]
      %v2454 = vld [vmem:[#allocation3 + $0x30] sm:$0xff]
      %v2455 = vld [vmem:[#allocation3 + $0x38] sm:$0xff]
      %v2456 = vld [vmem:[#allocation3 + $0x40] sm:$0x3]
      %v2457 = vld [vmem:[#allocation3 + $0x48] sm:$0xff]
      %v2458 = vld [vmem:[#allocation3 + $0x50] sm:$0xff]
      %v2459 = vld [vmem:[#allocation3 + $0x58] sm:$0x3]
      %v2460 = vld [vmem:[#allocation3 + $0x60] sm:$0xff]
      %v2461 = vld [vmem:[#allocation3 + $0x68] sm:$0xff]
      %v2462 = vld [vmem:[#allocation3 + $0x70] sm:$0x3]
      %v2463 = vld [vmem:[#allocation3 + $0x78] sm:$0xff]
      %v2464 = vld [vmem:[#allocation3 + $0x80] sm:$0xff]
      %v2465 = vld [vmem:[#allocation3 + $0x88] sm:$0x3]
      %v2466 = vld [vmem:[#allocation3 + $0x90] sm:$0xff]
      %v2467 = vld [vmem:[#allocation3 + $0x98] sm:$0xff]
      %v2468 = vld [vmem:[#allocation3 + $0xa0] sm:$0x3]
      %v2469 = vld [vmem:[#allocation3 + $0xa8] sm:$0xff]
      %v2470 = vld [vmem:[#allocation3 + $0xb0] sm:$0xff]
      %v2471 = vld [vmem:[#allocation3 + $0xb8] sm:$0x3]
      %v2472 = vld [vmem:[#allocation3 + $0xc0] sm:$0xff]
      %v2473 = vld [vmem:[#allocation3 + $0xc8] sm:$0xff]
      %v2474 = vld [vmem:[#allocation3 + $0xd0] sm:$0x3]
      %v2475 = vld [vmem:[#allocation3 + $0xd8] sm:$0xff]
      %v2476 = vld [vmem:[#allocation3 + $0xe0] sm:$0xff]
      %v2477 = vld [vmem:[#allocation3 + $0xe8] sm:$0x3]
      %v2478 = vld [vmem:[#allocation3 + $0xf0] sm:$0xff]
      %v2479 = vld [vmem:[#allocation3 + $0xf8] sm:$0xff]
      %v2480 = vld [vmem:[#allocation3 + $0x100] sm:$0x3]
      %v2481 = vld [vmem:[#allocation3 + $0x108] sm:$0xff]
      %v2482 = vld [vmem:[#allocation3 + $0x110] sm:$0xff]
      %v2483 = vld [vmem:[#allocation3 + $0x118] sm:$0x3]
      %v2484 = vld [vmem:[#allocation3 + $0x120] sm:$0xff]
      %v2485 = vld [vmem:[#allocation3 + $0x128] sm:$0xff]
      %v2486 = vld [vmem:[#allocation3 + $0x130] sm:$0x3]
      %v2487 = vld [vmem:[#allocation3 + $0x138] sm:$0xff]
      %v2488 = vld [vmem:[#allocation3 + $0x140] sm:$0xff]
      %v2489 = vld [vmem:[#allocation3 + $0x148] sm:$0x3]
      %v2490 = vld [vmem:[#allocation3 + $0x150] sm:$0xff]
      %v2491 = vld [vmem:[#allocation3 + $0x158] sm:$0xff]
      %v2492 = vld [vmem:[#allocation3 + $0x160] sm:$0x3]
      %v2493 = vld [vmem:[#allocation3 + $0x168] sm:$0xff]
      %v2494 = vld [vmem:[#allocation3 + $0x170] sm:$0xff]
      %v2495 = vld [vmem:[#allocation3 + $0x178] sm:$0x3]
      %v2496 = vld [vmem:[#allocation3 + $0x180] sm:$0xff]
      %v2497 = vld [vmem:[#allocation3 + $0x188] sm:$0xff]
      %v2498 = vld [vmem:[#allocation3 + $0x190] sm:$0x3]
      %v2499 = vld [vmem:[#allocation3 + $0x198] sm:$0xff]
      %v2500 = vld [vmem:[#allocation3 + $0x1a0] sm:$0xff]
      %v2501 = vld [vmem:[#allocation3 + $0x1a8] sm:$0x3]
      %v2550 = vrot.slane %v2448, 1
      %v2551 = vrot.slane %v2449, 1
      %v2552 = vsel %vm421, %v2550, %v2551
      %v2553 = vrot.slane %v2450, 1
      %v2554 = vsel %vm421, %v2551, %v2553
      %v2555 = vrot.slane %v2451, 1
      %v2556 = vrot.slane %v2452, 1
      %v2557 = vsel %vm421, %v2555, %v2556
      %v2558 = vrot.slane %v2453, 1
      %v2559 = vsel %vm421, %v2556, %v2558
      %v2560 = vrot.slane %v2454, 1
      %v2561 = vrot.slane %v2455, 1
      %v2562 = vsel %vm421, %v2560, %v2561
      %v2563 = vrot.slane %v2456, 1
      %v2564 = vsel %vm421, %v2561, %v2563
      %v2565 = vrot.slane %v2457, 1
      %v2566 = vrot.slane %v2458, 1
      %v2567 = vsel %vm421, %v2565, %v2566
      %v2568 = vrot.slane %v2459, 1
      %v2569 = vsel %vm421, %v2566, %v2568
      %v2570 = vrot.slane %v2460, 1
      %v2571 = vrot.slane %v2461, 1
      %v2572 = vsel %vm421, %v2570, %v2571
      %v2573 = vrot.slane %v2462, 1
      %v2574 = vsel %vm421, %v2571, %v2573
      %v2575 = vrot.slane %v2463, 1
      %v2576 = vrot.slane %v2464, 1
      %v2577 = vsel %vm421, %v2575, %v2576
      %v2578 = vrot.slane %v2465, 1
      %v2579 = vsel %vm421, %v2576, %v2578
      %v2580 = vrot.slane %v2466, 1
      %v2581 = vrot.slane %v2467, 1
      %v2582 = vsel %vm421, %v2580, %v2581
      %v2583 = vrot.slane %v2468, 1
      %v2584 = vsel %vm421, %v2581, %v2583
      %v2585 = vrot.slane %v2469, 1
      %v2586 = vrot.slane %v2470, 1
      %v2587 = vsel %vm421, %v2585, %v2586
      %v2588 = vrot.slane %v2471, 1
      %v2589 = vsel %vm421, %v2586, %v2588
      %v2590 = vrot.slane %v2472, 1
      %v2591 = vrot.slane %v2473, 1
      %v2592 = vsel %vm421, %v2590, %v2591
      %v2593 = vrot.slane %v2474, 1
      %v2594 = vsel %vm421, %v2591, %v2593
      %v2595 = vrot.slane %v2475, 1
      %v2596 = vrot.slane %v2476, 1
      %v2597 = vsel %vm421, %v2595, %v2596
      %v2598 = vrot.slane %v2477, 1
      %v2599 = vsel %vm421, %v2596, %v2598
      %v2600 = vrot.slane %v2478, 1
      %v2601 = vrot.slane %v2479, 1
      %v2602 = vsel %vm421, %v2600, %v2601
      %v2603 = vrot.slane %v2480, 1
      %v2604 = vsel %vm421, %v2601, %v2603
      %v2605 = vrot.slane %v2481, 1
      %v2606 = vrot.slane %v2482, 1
      %v2607 = vsel %vm421, %v2605, %v2606
      %v2608 = vrot.slane %v2483, 1
      %v2609 = vsel %vm421, %v2606, %v2608
      %v2610 = vrot.slane %v2484, 1
      %v2611 = vrot.slane %v2485, 1
      %v2612 = vsel %vm421, %v2610, %v2611
      %v2613 = vrot.slane %v2486, 1
      %v2614 = vsel %vm421, %v2611, %v2613
      %v2615 = vrot.slane %v2487, 1
      %v2616 = vrot.slane %v2488, 1
      %v2617 = vsel %vm421, %v2615, %v2616
      %v2618 = vrot.slane %v2489, 1
      %v2619 = vsel %vm421, %v2616, %v2618
      %v2620 = vrot.slane %v2490, 1
      %v2621 = vrot.slane %v2491, 1
      %v2622 = vsel %vm421, %v2620, %v2621
      %v2623 = vrot.slane %v2492, 1
      %v2624 = vsel %vm421, %v2621, %v2623
      %v2625 = vrot.slane %v2493, 1
      %v2626 = vrot.slane %v2494, 1
      %v2627 = vsel %vm421, %v2625, %v2626
      %v2628 = vrot.slane %v2495, 1
      %v2629 = vsel %vm421, %v2626, %v2628
      %2630 = vrot.lane.b32.xlu0 %v2552, 8
      %v2631 = vpop.permute.xlu0 %2630
      %2632 = vrot.lane.b32.xlu0 %v2554, 8
      %v2633 = vpop.permute.xlu0 %2632
      %2634 = vrot.lane.b32.xlu0 %v2557, 8
      %v2635 = vpop.permute.xlu0 %2634
      %2636 = vrot.lane.b32.xlu0 %v2559, 8
      %v2637 = vpop.permute.xlu0 %2636
      %2638 = vrot.lane.b32.xlu0 %v2562, 8
      %v2639 = vpop.permute.xlu0 %2638
      %2640 = vrot.lane.b32.xlu0 %v2564, 8
      %v2641 = vpop.permute.xlu0 %2640
      %2642 = vrot.lane.b32.xlu0 %v2567, 8
      %v2643 = vpop.permute.xlu0 %2642
      %2644 = vrot.lane.b32.xlu0 %v2569, 8
      %v2645 = vpop.permute.xlu0 %2644
      %2646 = vrot.lane.b32.xlu0 %v2572, 8
      %v2647 = vpop.permute.xlu0 %2646
      %2648 = vrot.lane.b32.xlu0 %v2574, 8
      %v2649 = vpop.permute.xlu0 %2648
      %2650 = vrot.lane.b32.xlu0 %v2577, 8
      %v2651 = vpop.permute.xlu0 %2650
      %2652 = vrot.lane.b32.xlu0 %v2579, 8
      %v2653 = vpop.permute.xlu0 %2652
      %2654 = vrot.lane.b32.xlu0 %v2582, 8
      %v2655 = vpop.permute.xlu0 %2654
      %2656 = vrot.lane.b32.xlu0 %v2584, 8
      %v2657 = vpop.permute.xlu0 %2656
      %2658 = vrot.lane.b32.xlu0 %v2587, 8
      %v2659 = vpop.permute.xlu0 %2658
      %2660 = vrot.lane.b32.xlu0 %v2589, 8
      %v2661 = vpop.permute.xlu0 %2660
      %2662 = vrot.lane.b32.xlu0 %v2592, 8
      %v2663 = vpop.permute.xlu0 %2662
      %2664 = vrot.lane.b32.xlu0 %v2594, 8
      %v2665 = vpop.permute.xlu0 %2664
      %2666 = vrot.lane.b32.xlu0 %v2597, 8
      %v2667 = vpop.permute.xlu0 %2666
      %2668 = vrot.lane.b32.xlu0 %v2599, 8
      %v2669 = vpop.permute.xlu0 %2668
      %2670 = vrot.lane.b32.xlu0 %v2602, 8
      %v2671 = vpop.permute.xlu0 %2670
      %2672 = vrot.lane.b32.xlu0 %v2604, 8
      %v2673 = vpop.permute.xlu0 %2672
      %2674 = vrot.lane.b32.xlu0 %v2607, 8
      %v2675 = vpop.permute.xlu0 %2674
      %2676 = vrot.lane.b32.xlu0 %v2609, 8
      %v2677 = vpop.permute.xlu0 %2676
      %2678 = vrot.lane.b32.xlu0 %v2612, 8
      %v2679 = vpop.permute.xlu0 %2678
      %2680 = vrot.lane.b32.xlu0 %v2614, 8
      %v2681 = vpop.permute.xlu0 %2680
      %2682 = vrot.lane.b32.xlu0 %v2617, 8
      %v2683 = vpop.permute.xlu0 %2682
      %2684 = vrot.lane.b32.xlu0 %v2619, 8
      %v2685 = vpop.permute.xlu0 %2684
      %2686 = vrot.lane.b32.xlu0 %v2622, 8
      %v2687 = vpop.permute.xlu0 %2686
      %2688 = vrot.lane.b32.xlu0 %v2624, 8
      %v2689 = vpop.permute.xlu0 %2688
      %2690 = vrot.lane.b32.xlu0 %v2627, 8
      %v2691 = vpop.permute.xlu0 %2690
      %2692 = vrot.lane.b32.xlu0 %v2629, 8
      %v2693 = vpop.permute.xlu0 %2692
      %v2726 = vrot.slane %v2448, 2
      %v2727 = vrot.slane %v2449, 2
      %v2728 = vsel %vm598, %v2726, %v2727
      %v2729 = vrot.slane %v2450, 2
      %v2730 = vsel %vm598, %v2727, %v2729
      %v2731 = vrot.slane %v2451, 2
      %v2732 = vrot.slane %v2452, 2
      %v2733 = vsel %vm598, %v2731, %v2732
      %v2734 = vrot.slane %v2453, 2
      %v2735 = vsel %vm598, %v2732, %v2734
      %v2736 = vrot.slane %v2454, 2
      %v2737 = vrot.slane %v2455, 2
      %v2738 = vsel %vm598, %v2736, %v2737
      %v2739 = vrot.slane %v2456, 2
      %v2740 = vsel %vm598, %v2737, %v2739
      %v2741 = vrot.slane %v2457, 2
      %v2742 = vrot.slane %v2458, 2
      %v2743 = vsel %vm598, %v2741, %v2742
      %v2744 = vrot.slane %v2459, 2
      %v2745 = vsel %vm598, %v2742, %v2744
      %v2746 = vrot.slane %v2460, 2
      %v2747 = vrot.slane %v2461, 2
      %v2748 = vsel %vm598, %v2746, %v2747
      %v2749 = vrot.slane %v2462, 2
      %v2750 = vsel %vm598, %v2747, %v2749
      %v2751 = vrot.slane %v2463, 2
      %v2752 = vrot.slane %v2464, 2
      %v2753 = vsel %vm598, %v2751, %v2752
      %v2754 = vrot.slane %v2465, 2
      %v2755 = vsel %vm598, %v2752, %v2754
      %v2756 = vrot.slane %v2466, 2
      %v2757 = vrot.slane %v2467, 2
      %v2758 = vsel %vm598, %v2756, %v2757
      %v2759 = vrot.slane %v2468, 2
      %v2760 = vsel %vm598, %v2757, %v2759
      %v2761 = vrot.slane %v2469, 2
      %v2762 = vrot.slane %v2470, 2
      %v2763 = vsel %vm598, %v2761, %v2762
      %v2764 = vrot.slane %v2471, 2
      %v2765 = vsel %vm598, %v2762, %v2764
      %v2766 = vrot.slane %v2472, 2
      %v2767 = vrot.slane %v2473, 2
      %v2768 = vsel %vm598, %v2766, %v2767
      %v2769 = vrot.slane %v2474, 2
      %v2770 = vsel %vm598, %v2767, %v2769
      %v2771 = vrot.slane %v2475, 2
      %v2772 = vrot.slane %v2476, 2
      %v2773 = vsel %vm598, %v2771, %v2772
      %v2774 = vrot.slane %v2477, 2
      %v2775 = vsel %vm598, %v2772, %v2774
      %v2776 = vrot.slane %v2478, 2
      %v2777 = vrot.slane %v2479, 2
      %v2778 = vsel %vm598, %v2776, %v2777
      %v2779 = vrot.slane %v2480, 2
      %v2780 = vsel %vm598, %v2777, %v2779
      %v2781 = vrot.slane %v2481, 2
      %v2782 = vrot.slane %v2482, 2
      %v2783 = vsel %vm598, %v2781, %v2782
      %v2784 = vrot.slane %v2483, 2
      %v2785 = vsel %vm598, %v2782, %v2784
      %v2786 = vrot.slane %v2484, 2
      %v2787 = vrot.slane %v2485, 2
      %v2788 = vsel %vm598, %v2786, %v2787
      %v2789 = vrot.slane %v2486, 2
      %v2790 = vsel %vm598, %v2787, %v2789
      %v2791 = vrot.slane %v2487, 2
      %v2792 = vrot.slane %v2488, 2
      %v2793 = vsel %vm598, %v2791, %v2792
      %v2794 = vrot.slane %v2489, 2
      %v2795 = vsel %vm598, %v2792, %v2794
      %v2796 = vrot.slane %v2490, 2
      %v2797 = vrot.slane %v2491, 2
      %v2798 = vsel %vm598, %v2796, %v2797
      %v2799 = vrot.slane %v2492, 2
      %v2800 = vsel %vm598, %v2797, %v2799
      %v2801 = vrot.slane %v2493, 2
      %v2802 = vrot.slane %v2494, 2
      %v2803 = vsel %vm598, %v2801, %v2802
      %v2804 = vrot.slane %v2495, 2
      %v2805 = vsel %vm598, %v2802, %v2804
      %2806 = vrot.lane.b32.xlu0 %v2728, 16
      %v2807 = vpop.permute.xlu0 %2806
      %2808 = vrot.lane.b32.xlu0 %v2730, 16
      %v2809 = vpop.permute.xlu0 %2808
      %2810 = vrot.lane.b32.xlu0 %v2733, 16
      %v2811 = vpop.permute.xlu0 %2810
      %2812 = vrot.lane.b32.xlu0 %v2735, 16
      %v2813 = vpop.permute.xlu0 %2812
      %2814 = vrot.lane.b32.xlu0 %v2738, 16
      %v2815 = vpop.permute.xlu0 %2814
      %2816 = vrot.lane.b32.xlu0 %v2740, 16
      %v2817 = vpop.permute.xlu0 %2816
      %2818 = vrot.lane.b32.xlu0 %v2743, 16
      %v2819 = vpop.permute.xlu0 %2818
      %2820 = vrot.lane.b32.xlu0 %v2745, 16
      %v2821 = vpop.permute.xlu0 %2820
      %2822 = vrot.lane.b32.xlu0 %v2748, 16
      %v2823 = vpop.permute.xlu0 %2822
      %2824 = vrot.lane.b32.xlu0 %v2750, 16
      %v2825 = vpop.permute.xlu0 %2824
      %2826 = vrot.lane.b32.xlu0 %v2753, 16
      %v2827 = vpop.permute.xlu0 %2826
      %2828 = vrot.lane.b32.xlu0 %v2755, 16
      %v2829 = vpop.permute.xlu0 %2828
      %2830 = vrot.lane.b32.xlu0 %v2758, 16
      %v2831 = vpop.permute.xlu0 %2830
      %2832 = vrot.lane.b32.xlu0 %v2760, 16
      %v2833 = vpop.permute.xlu0 %2832
      %2834 = vrot.lane.b32.xlu0 %v2763, 16
      %v2835 = vpop.permute.xlu0 %2834
      %2836 = vrot.lane.b32.xlu0 %v2765, 16
      %v2837 = vpop.permute.xlu0 %2836
      %2838 = vrot.lane.b32.xlu0 %v2768, 16
      %v2839 = vpop.permute.xlu0 %2838
      %2840 = vrot.lane.b32.xlu0 %v2770, 16
      %v2841 = vpop.permute.xlu0 %2840
      %2842 = vrot.lane.b32.xlu0 %v2773, 16
      %v2843 = vpop.permute.xlu0 %2842
      %2844 = vrot.lane.b32.xlu0 %v2775, 16
      %v2845 = vpop.permute.xlu0 %2844
      %2846 = vrot.lane.b32.xlu0 %v2778, 16
      %v2847 = vpop.permute.xlu0 %2846
      %2848 = vrot.lane.b32.xlu0 %v2780, 16
      %v2849 = vpop.permute.xlu0 %2848
      %2850 = vrot.lane.b32.xlu0 %v2783, 16
      %v2851 = vpop.permute.xlu0 %2850
      %2852 = vrot.lane.b32.xlu0 %v2785, 16
      %v2853 = vpop.permute.xlu0 %2852
      %2854 = vrot.lane.b32.xlu0 %v2788, 16
      %v2855 = vpop.permute.xlu0 %2854
      %2856 = vrot.lane.b32.xlu0 %v2790, 16
      %v2857 = vpop.permute.xlu0 %2856
      %2858 = vrot.lane.b32.xlu0 %v2793, 16
      %v2859 = vpop.permute.xlu0 %2858
      %2860 = vrot.lane.b32.xlu0 %v2795, 16
      %v2861 = vpop.permute.xlu0 %2860
      %2862 = vrot.lane.b32.xlu0 %v2798, 16
      %v2863 = vpop.permute.xlu0 %2862
      %2864 = vrot.lane.b32.xlu0 %v2800, 16
      %v2865 = vpop.permute.xlu0 %2864
      %2866 = vrot.lane.b32.xlu0 %v2803, 16
      %v2867 = vpop.permute.xlu0 %2866
      %2868 = vrot.lane.b32.xlu0 %v2805, 16
      %v2869 = vpop.permute.xlu0 %2868
      %2904 = vrot.lane.b32.xlu0 %v2451, 24
      %v2905 = vpop.permute.xlu0 %2904
      %2906 = vrot.lane.b32.xlu0 %v2452, 24
      %v2907 = vpop.permute.xlu0 %2906
      %2908 = vrot.lane.b32.xlu0 %v2454, 24
      %v2909 = vpop.permute.xlu0 %2908
      %2910 = vrot.lane.b32.xlu0 %v2455, 24
      %v2911 = vpop.permute.xlu0 %2910
      %2912 = vrot.lane.b32.xlu0 %v2457, 24
      %v2913 = vpop.permute.xlu0 %2912
      %2914 = vrot.lane.b32.xlu0 %v2458, 24
      %v2915 = vpop.permute.xlu0 %2914
      %2916 = vrot.lane.b32.xlu0 %v2460, 24
      %v2917 = vpop.permute.xlu0 %2916
      %2918 = vrot.lane.b32.xlu0 %v2461, 24
      %v2919 = vpop.permute.xlu0 %2918
      %2920 = vrot.lane.b32.xlu0 %v2463, 24
      %v2921 = vpop.permute.xlu0 %2920
      %2922 = vrot.lane.b32.xlu0 %v2464, 24
      %v2923 = vpop.permute.xlu0 %2922
      %2924 = vrot.lane.b32.xlu0 %v2466, 24
      %v2925 = vpop.permute.xlu0 %2924
      %2926 = vrot.lane.b32.xlu0 %v2467, 24
      %v2927 = vpop.permute.xlu0 %2926
      %2928 = vrot.lane.b32.xlu0 %v2469, 24
      %v2929 = vpop.permute.xlu0 %2928
      %2930 = vrot.lane.b32.xlu0 %v2470, 24
      %v2931 = vpop.permute.xlu0 %2930
      %2932 = vrot.lane.b32.xlu0 %v2472, 24
      %v2933 = vpop.permute.xlu0 %2932
      %2934 = vrot.lane.b32.xlu0 %v2473, 24
      %v2935 = vpop.permute.xlu0 %2934
      %2936 = vrot.lane.b32.xlu0 %v2475, 24
      %v2937 = vpop.permute.xlu0 %2936
      %2938 = vrot.lane.b32.xlu0 %v2476, 24
      %v2939 = vpop.permute.xlu0 %2938
      %2940 = vrot.lane.b32.xlu0 %v2478, 24
      %v2941 = vpop.permute.xlu0 %2940
      %2942 = vrot.lane.b32.xlu0 %v2479, 24
      %v2943 = vpop.permute.xlu0 %2942
      %2944 = vrot.lane.b32.xlu0 %v2481, 24
      %v2945 = vpop.permute.xlu0 %2944
      %2946 = vrot.lane.b32.xlu0 %v2482, 24
      %v2947 = vpop.permute.xlu0 %2946
      %2948 = vrot.lane.b32.xlu0 %v2484, 24
      %v2949 = vpop.permute.xlu0 %2948
      %2950 = vrot.lane.b32.xlu0 %v2485, 24
      %v2951 = vpop.permute.xlu0 %2950
      %2952 = vrot.lane.b32.xlu0 %v2487, 24
      %v2953 = vpop.permute.xlu0 %2952
      %2954 = vrot.lane.b32.xlu0 %v2488, 24
      %v2955 = vpop.permute.xlu0 %2954
      %2956 = vrot.lane.b32.xlu0 %v2490, 24
      %v2957 = vpop.permute.xlu0 %2956
      %2958 = vrot.lane.b32.xlu0 %v2491, 24
      %v2959 = vpop.permute.xlu0 %2958
      %2960 = vrot.lane.b32.xlu0 %v2493, 24
      %v2961 = vpop.permute.xlu0 %2960
      %2962 = vrot.lane.b32.xlu0 %v2494, 24
      %v2963 = vpop.permute.xlu0 %2962
      %2964 = vrot.lane.b32.xlu0 %v2496, 24
      %v2965 = vpop.permute.xlu0 %2964
      %2966 = vrot.lane.b32.xlu0 %v2497, 24
      %v2967 = vpop.permute.xlu0 %2966
      %v3001 = vrot.slane %v2496, 1
      %v3002 = vrot.slane %v2497, 1
      %v3003 = vsel %vm421, %v3001, %v3002
      %v3004 = vrot.slane %v2498, 1
      %v3005 = vsel %vm421, %v3002, %v3004
      %3006 = vrot.lane.b32.xlu0 %v2557, 32
      %v3007 = vpop.permute.xlu0 %3006
      %3008 = vrot.lane.b32.xlu0 %v2559, 32
      %v3009 = vpop.permute.xlu0 %3008
      %3010 = vrot.lane.b32.xlu0 %v2562, 32
      %v3011 = vpop.permute.xlu0 %3010
      %3012 = vrot.lane.b32.xlu0 %v2564, 32
      %v3013 = vpop.permute.xlu0 %3012
      %3014 = vrot.lane.b32.xlu0 %v2567, 32
      %v3015 = vpop.permute.xlu0 %3014
      %3016 = vrot.lane.b32.xlu0 %v2569, 32
      %v3017 = vpop.permute.xlu0 %3016
      %3018 = vrot.lane.b32.xlu0 %v2572, 32
      %v3019 = vpop.permute.xlu0 %3018
      %3020 = vrot.lane.b32.xlu0 %v2574, 32
      %v3021 = vpop.permute.xlu0 %3020
      %3022 = vrot.lane.b32.xlu0 %v2577, 32
      %v3023 = vpop.permute.xlu0 %3022
      %3024 = vrot.lane.b32.xlu0 %v2579, 32
      %v3025 = vpop.permute.xlu0 %3024
      %3026 = vrot.lane.b32.xlu0 %v2582, 32
      %v3027 = vpop.permute.xlu0 %3026
      %3028 = vrot.lane.b32.xlu0 %v2584, 32
      %v3029 = vpop.permute.xlu0 %3028
      %3030 = vrot.lane.b32.xlu0 %v2587, 32
      %v3031 = vpop.permute.xlu0 %3030
      %3032 = vrot.lane.b32.xlu0 %v2589, 32
      %v3033 = vpop.permute.xlu0 %3032
      %3034 = vrot.lane.b32.xlu0 %v2592, 32
      %v3035 = vpop.permute.xlu0 %3034
      %3036 = vrot.lane.b32.xlu0 %v2594, 32
      %v3037 = vpop.permute.xlu0 %3036
      %3038 = vrot.lane.b32.xlu0 %v2597, 32
      %v3039 = vpop.permute.xlu0 %3038
      %3040 = vrot.lane.b32.xlu0 %v2599, 32
      %v3041 = vpop.permute.xlu0 %3040
      %3042 = vrot.lane.b32.xlu0 %v2602, 32
      %v3043 = vpop.permute.xlu0 %3042
      %3044 = vrot.lane.b32.xlu0 %v2604, 32
      %v3045 = vpop.permute.xlu0 %3044
      %3046 = vrot.lane.b32.xlu0 %v2607, 32
      %v3047 = vpop.permute.xlu0 %3046
      %3048 = vrot.lane.b32.xlu0 %v2609, 32
      %v3049 = vpop.permute.xlu0 %3048
      %3050 = vrot.lane.b32.xlu0 %v2612, 32
      %v3051 = vpop.permute.xlu0 %3050
      %3052 = vrot.lane.b32.xlu0 %v2614, 32
      %v3053 = vpop.permute.xlu0 %3052
      %3054 = vrot.lane.b32.xlu0 %v2617, 32
      %v3055 = vpop.permute.xlu0 %3054
      %3056 = vrot.lane.b32.xlu0 %v2619, 32
      %v3057 = vpop.permute.xlu0 %3056
      %3058 = vrot.lane.b32.xlu0 %v2622, 32
      %v3059 = vpop.permute.xlu0 %3058
      %3060 = vrot.lane.b32.xlu0 %v2624, 32
      %v3061 = vpop.permute.xlu0 %3060
      %3062 = vrot.lane.b32.xlu0 %v2627, 32
      %v3063 = vpop.permute.xlu0 %3062
      %3064 = vrot.lane.b32.xlu0 %v2629, 32
      %v3065 = vpop.permute.xlu0 %3064
      %3066 = vrot.lane.b32.xlu0 %v3003, 32
      %v3067 = vpop.permute.xlu0 %3066
      %3068 = vrot.lane.b32.xlu0 %v3005, 32
      %v3069 = vpop.permute.xlu0 %3068
      %v3102 = vrot.slane %v2496, 2
      %v3103 = vrot.slane %v2497, 2
      %v3104 = vsel %vm598, %v3102, %v3103
      %v3105 = vrot.slane %v2498, 2
      %v3106 = vsel %vm598, %v3103, %v3105
      %3107 = vrot.lane.b32.xlu0 %v2733, 40
      %v3108 = vpop.permute.xlu0 %3107
      %3109 = vrot.lane.b32.xlu0 %v2735, 40
      %v3110 = vpop.permute.xlu0 %3109
      %3111 = vrot.lane.b32.xlu0 %v2738, 40
      %v3112 = vpop.permute.xlu0 %3111
      %3113 = vrot.lane.b32.xlu0 %v2740, 40
      %v3114 = vpop.permute.xlu0 %3113
      %3115 = vrot.lane.b32.xlu0 %v2743, 40
      %v3116 = vpop.permute.xlu0 %3115
      %3117 = vrot.lane.b32.xlu0 %v2745, 40
      %v3118 = vpop.permute.xlu0 %3117
      %3119 = vrot.lane.b32.xlu0 %v2748, 40
      %v3120 = vpop.permute.xlu0 %3119
      %3121 = vrot.lane.b32.xlu0 %v2750, 40
      %v3122 = vpop.permute.xlu0 %3121
      %3123 = vrot.lane.b32.xlu0 %v2753, 40
      %v3124 = vpop.permute.xlu0 %3123
      %3125 = vrot.lane.b32.xlu0 %v2755, 40
      %v3126 = vpop.permute.xlu0 %3125
      %3127 = vrot.lane.b32.xlu0 %v2758, 40
      %v3128 = vpop.permute.xlu0 %3127
      %3129 = vrot.lane.b32.xlu0 %v2760, 40
      %v3130 = vpop.permute.xlu0 %3129
      %3131 = vrot.lane.b32.xlu0 %v2763, 40
      %v3132 = vpop.permute.xlu0 %3131
      %3133 = vrot.lane.b32.xlu0 %v2765, 40
      %v3134 = vpop.permute.xlu0 %3133
      %3135 = vrot.lane.b32.xlu0 %v2768, 40
      %v3136 = vpop.permute.xlu0 %3135
      %3137 = vrot.lane.b32.xlu0 %v2770, 40
      %v3138 = vpop.permute.xlu0 %3137
      %3139 = vrot.lane.b32.xlu0 %v2773, 40
      %v3140 = vpop.permute.xlu0 %3139
      %3141 = vrot.lane.b32.xlu0 %v2775, 40
      %v3142 = vpop.permute.xlu0 %3141
      %3143 = vrot.lane.b32.xlu0 %v2778, 40
      %v3144 = vpop.permute.xlu0 %3143
      %3145 = vrot.lane.b32.xlu0 %v2780, 40
      %v3146 = vpop.permute.xlu0 %3145
      %3147 = vrot.lane.b32.xlu0 %v2783, 40
      %v3148 = vpop.permute.xlu0 %3147
      %3149 = vrot.lane.b32.xlu0 %v2785, 40
      %v3150 = vpop.permute.xlu0 %3149
      %3151 = vrot.lane.b32.xlu0 %v2788, 40
      %v3152 = vpop.permute.xlu0 %3151
      %3153 = vrot.lane.b32.xlu0 %v2790, 40
      %v3154 = vpop.permute.xlu0 %3153
      %3155 = vrot.lane.b32.xlu0 %v2793, 40
      %v3156 = vpop.permute.xlu0 %3155
      %3157 = vrot.lane.b32.xlu0 %v2795, 40
      %v3158 = vpop.permute.xlu0 %3157
      %3159 = vrot.lane.b32.xlu0 %v2798, 40
      %v3160 = vpop.permute.xlu0 %3159
      %3161 = vrot.lane.b32.xlu0 %v2800, 40
      %v3162 = vpop.permute.xlu0 %3161
      %3163 = vrot.lane.b32.xlu0 %v2803, 40
      %v3164 = vpop.permute.xlu0 %3163
      %3165 = vrot.lane.b32.xlu0 %v2805, 40
      %v3166 = vpop.permute.xlu0 %3165
      %3167 = vrot.lane.b32.xlu0 %v3104, 40
      %v3168 = vpop.permute.xlu0 %3167
      %3169 = vrot.lane.b32.xlu0 %v3106, 40
      %v3170 = vpop.permute.xlu0 %3169
      %3205 = vrot.lane.b32.xlu0 %v2454, 48
      %v3206 = vpop.permute.xlu0 %3205
      %3207 = vrot.lane.b32.xlu0 %v2455, 48
      %v3208 = vpop.permute.xlu0 %3207
      %3209 = vrot.lane.b32.xlu0 %v2457, 48
      %v3210 = vpop.permute.xlu0 %3209
      %3211 = vrot.lane.b32.xlu0 %v2458, 48
      %v3212 = vpop.permute.xlu0 %3211
      %3213 = vrot.lane.b32.xlu0 %v2460, 48
      %v3214 = vpop.permute.xlu0 %3213
      %3215 = vrot.lane.b32.xlu0 %v2461, 48
      %v3216 = vpop.permute.xlu0 %3215
      %3217 = vrot.lane.b32.xlu0 %v2463, 48
      %v3218 = vpop.permute.xlu0 %3217
      %3219 = vrot.lane.b32.xlu0 %v2464, 48
      %v3220 = vpop.permute.xlu0 %3219
      %3221 = vrot.lane.b32.xlu0 %v2466, 48
      %v3222 = vpop.permute.xlu0 %3221
      %3223 = vrot.lane.b32.xlu0 %v2467, 48
      %v3224 = vpop.permute.xlu0 %3223
      %3225 = vrot.lane.b32.xlu0 %v2469, 48
      %v3226 = vpop.permute.xlu0 %3225
      %3227 = vrot.lane.b32.xlu0 %v2470, 48
      %v3228 = vpop.permute.xlu0 %3227
      %3229 = vrot.lane.b32.xlu0 %v2472, 48
      %v3230 = vpop.permute.xlu0 %3229
      %3231 = vrot.lane.b32.xlu0 %v2473, 48
      %v3232 = vpop.permute.xlu0 %3231
      %3233 = vrot.lane.b32.xlu0 %v2475, 48
      %v3234 = vpop.permute.xlu0 %3233
      %3235 = vrot.lane.b32.xlu0 %v2476, 48
      %v3236 = vpop.permute.xlu0 %3235
      %3237 = vrot.lane.b32.xlu0 %v2478, 48
      %v3238 = vpop.permute.xlu0 %3237
      %3239 = vrot.lane.b32.xlu0 %v2479, 48
      %v3240 = vpop.permute.xlu0 %3239
      %3241 = vrot.lane.b32.xlu0 %v2481, 48
      %v3242 = vpop.permute.xlu0 %3241
      %3243 = vrot.lane.b32.xlu0 %v2482, 48
      %v3244 = vpop.permute.xlu0 %3243
      %3245 = vrot.lane.b32.xlu0 %v2484, 48
      %v3246 = vpop.permute.xlu0 %3245
      %3247 = vrot.lane.b32.xlu0 %v2485, 48
      %v3248 = vpop.permute.xlu0 %3247
      %3249 = vrot.lane.b32.xlu0 %v2487, 48
      %v3250 = vpop.permute.xlu0 %3249
      %3251 = vrot.lane.b32.xlu0 %v2488, 48
      %v3252 = vpop.permute.xlu0 %3251
      %3253 = vrot.lane.b32.xlu0 %v2490, 48
      %v3254 = vpop.permute.xlu0 %3253
      %3255 = vrot.lane.b32.xlu0 %v2491, 48
      %v3256 = vpop.permute.xlu0 %3255
      %3257 = vrot.lane.b32.xlu0 %v2493, 48
      %v3258 = vpop.permute.xlu0 %3257
      %3259 = vrot.lane.b32.xlu0 %v2494, 48
      %v3260 = vpop.permute.xlu0 %3259
      %3261 = vrot.lane.b32.xlu0 %v2496, 48
      %v3262 = vpop.permute.xlu0 %3261
      %3263 = vrot.lane.b32.xlu0 %v2497, 48
      %v3264 = vpop.permute.xlu0 %3263
      %3265 = vrot.lane.b32.xlu0 %v2499, 48
      %v3266 = vpop.permute.xlu0 %3265
      %3267 = vrot.lane.b32.xlu0 %v2500, 48
      %v3268 = vpop.permute.xlu0 %3267
      %v3302 = vrot.slane %v2499, 1
      %v3303 = vrot.slane %v2500, 1
      %v3304 = vsel %vm421, %v3302, %v3303
      %v3305 = vrot.slane %v2501, 1
      %v3306 = vsel %vm421, %v3303, %v3305
      %3307 = vrot.lane.b32.xlu0 %v2562, 56
      %v3308 = vpop.permute.xlu0 %3307
      %3309 = vrot.lane.b32.xlu0 %v2564, 56
      %v3310 = vpop.permute.xlu0 %3309
      %3311 = vrot.lane.b32.xlu0 %v2567, 56
      %v3312 = vpop.permute.xlu0 %3311
      %3313 = vrot.lane.b32.xlu0 %v2569, 56
      %v3314 = vpop.permute.xlu0 %3313
      %3315 = vrot.lane.b32.xlu0 %v2572, 56
      %v3316 = vpop.permute.xlu0 %3315
      %3317 = vrot.lane.b32.xlu0 %v2574, 56
      %v3318 = vpop.permute.xlu0 %3317
      %3319 = vrot.lane.b32.xlu0 %v2577, 56
      %v3320 = vpop.permute.xlu0 %3319
      %3321 = vrot.lane.b32.xlu0 %v2579, 56
      %v3322 = vpop.permute.xlu0 %3321
      %3323 = vrot.lane.b32.xlu0 %v2582, 56
      %v3324 = vpop.permute.xlu0 %3323
      %3325 = vrot.lane.b32.xlu0 %v2584, 56
      %v3326 = vpop.permute.xlu0 %3325
      %3327 = vrot.lane.b32.xlu0 %v2587, 56
      %v3328 = vpop.permute.xlu0 %3327
      %3329 = vrot.lane.b32.xlu0 %v2589, 56
      %v3330 = vpop.permute.xlu0 %3329
      %3331 = vrot.lane.b32.xlu0 %v2592, 56
      %v3332 = vpop.permute.xlu0 %3331
      %3333 = vrot.lane.b32.xlu0 %v2594, 56
      %v3334 = vpop.permute.xlu0 %3333
      %3335 = vrot.lane.b32.xlu0 %v2597, 56
      %v3336 = vpop.permute.xlu0 %3335
      %3337 = vrot.lane.b32.xlu0 %v2599, 56
      %v3338 = vpop.permute.xlu0 %3337
      %3339 = vrot.lane.b32.xlu0 %v2602, 56
      %v3340 = vpop.permute.xlu0 %3339
      %3341 = vrot.lane.b32.xlu0 %v2604, 56
      %v3342 = vpop.permute.xlu0 %3341
      %3343 = vrot.lane.b32.xlu0 %v2607, 56
      %v3344 = vpop.permute.xlu0 %3343
      %3345 = vrot.lane.b32.xlu0 %v2609, 56
      %v3346 = vpop.permute.xlu0 %3345
      %3347 = vrot.lane.b32.xlu0 %v2612, 56
      %v3348 = vpop.permute.xlu0 %3347
      %3349 = vrot.lane.b32.xlu0 %v2614, 56
      %v3350 = vpop.permute.xlu0 %3349
      %3351 = vrot.lane.b32.xlu0 %v2617, 56
      %v3352 = vpop.permute.xlu0 %3351
      %3353 = vrot.lane.b32.xlu0 %v2619, 56
      %v3354 = vpop.permute.xlu0 %3353
      %3355 = vrot.lane.b32.xlu0 %v2622, 56
      %v3356 = vpop.permute.xlu0 %3355
      %3357 = vrot.lane.b32.xlu0 %v2624, 56
      %v3358 = vpop.permute.xlu0 %3357
      %3359 = vrot.lane.b32.xlu0 %v2627, 56
      %v3360 = vpop.permute.xlu0 %3359
      %3361 = vrot.lane.b32.xlu0 %v2629, 56
      %v3362 = vpop.permute.xlu0 %3361
      %3363 = vrot.lane.b32.xlu0 %v3003, 56
      %v3364 = vpop.permute.xlu0 %3363
      %3365 = vrot.lane.b32.xlu0 %v3005, 56
      %v3366 = vpop.permute.xlu0 %3365
      %3367 = vrot.lane.b32.xlu0 %v3304, 56
      %v3368 = vpop.permute.xlu0 %3367
      %3369 = vrot.lane.b32.xlu0 %v3306, 56
      %v3370 = vpop.permute.xlu0 %3369
      %v3403 = vrot.slane %v2499, 2
      %v3404 = vrot.slane %v2500, 2
      %v3405 = vsel %vm598, %v3403, %v3404
      %v3406 = vrot.slane %v2501, 2
      %v3407 = vsel %vm598, %v3404, %v3406
      %3408 = vrot.lane.b32.xlu0 %v2738, 64
      %v3409 = vpop.permute.xlu0 %3408
      %3410 = vrot.lane.b32.xlu0 %v2740, 64
      %v3411 = vpop.permute.xlu0 %3410
      %3412 = vrot.lane.b32.xlu0 %v2743, 64
      %v3413 = vpop.permute.xlu0 %3412
      %3414 = vrot.lane.b32.xlu0 %v2745, 64
      %v3415 = vpop.permute.xlu0 %3414
      %3416 = vrot.lane.b32.xlu0 %v2748, 64
      %v3417 = vpop.permute.xlu0 %3416
      %3418 = vrot.lane.b32.xlu0 %v2750, 64
      %v3419 = vpop.permute.xlu0 %3418
      %3420 = vrot.lane.b32.xlu0 %v2753, 64
      %v3421 = vpop.permute.xlu0 %3420
      %3422 = vrot.lane.b32.xlu0 %v2755, 64
      %v3423 = vpop.permute.xlu0 %3422
      %3424 = vrot.lane.b32.xlu0 %v2758, 64
      %v3425 = vpop.permute.xlu0 %3424
      %3426 = vrot.lane.b32.xlu0 %v2760, 64
      %v3427 = vpop.permute.xlu0 %3426
      %3428 = vrot.lane.b32.xlu0 %v2763, 64
      %v3429 = vpop.permute.xlu0 %3428
      %3430 = vrot.lane.b32.xlu0 %v2765, 64
      %v3431 = vpop.permute.xlu0 %3430
      %3432 = vrot.lane.b32.xlu0 %v2768, 64
      %v3433 = vpop.permute.xlu0 %3432
      %3434 = vrot.lane.b32.xlu0 %v2770, 64
      %v3435 = vpop.permute.xlu0 %3434
      %3436 = vrot.lane.b32.xlu0 %v2773, 64
      %v3437 = vpop.permute.xlu0 %3436
      %3438 = vrot.lane.b32.xlu0 %v2775, 64
      %v3439 = vpop.permute.xlu0 %3438
      %3440 = vrot.lane.b32.xlu0 %v2778, 64
      %v3441 = vpop.permute.xlu0 %3440
      %3442 = vrot.lane.b32.xlu0 %v2780, 64
      %v3443 = vpop.permute.xlu0 %3442
      %3444 = vrot.lane.b32.xlu0 %v2783, 64
      %v3445 = vpop.permute.xlu0 %3444
      %3446 = vrot.lane.b32.xlu0 %v2785, 64
      %v3447 = vpop.permute.xlu0 %3446
      %3448 = vrot.lane.b32.xlu0 %v2788, 64
      %v3449 = vpop.permute.xlu0 %3448
      %3450 = vrot.lane.b32.xlu0 %v2790, 64
      %v3451 = vpop.permute.xlu0 %3450
      %3452 = vrot.lane.b32.xlu0 %v2793, 64
      %v3453 = vpop.permute.xlu0 %3452
      %3454 = vrot.lane.b32.xlu0 %v2795, 64
      %v3455 = vpop.permute.xlu0 %3454
      %3456 = vrot.lane.b32.xlu0 %v2798, 64
      %v3457 = vpop.permute.xlu0 %3456
      %3458 = vrot.lane.b32.xlu0 %v2800, 64
      %v3459 = vpop.permute.xlu0 %3458
      %3460 = vrot.lane.b32.xlu0 %v2803, 64
      %v3461 = vpop.permute.xlu0 %3460
      %3462 = vrot.lane.b32.xlu0 %v2805, 64
      %v3463 = vpop.permute.xlu0 %3462
      %3464 = vrot.lane.b32.xlu0 %v3104, 64
      %v3465 = vpop.permute.xlu0 %3464
      %3466 = vrot.lane.b32.xlu0 %v3106, 64
      %v3467 = vpop.permute.xlu0 %3466
      %3468 = vrot.lane.b32.xlu0 %v3405, 64
      %v3469 = vpop.permute.xlu0 %3468
      %3470 = vrot.lane.b32.xlu0 %v3407, 64
      %v3471 = vpop.permute.xlu0 %3470
      %v3504 = vsel %vm1409, %v2448, %v2631
      %v3505 = vsel %vm1409, %v2449, %v2633
      %v3506 = vsel %vm1409, %v2451, %v2635
      %v3507 = vsel %vm1409, %v2452, %v2637
      %v3508 = vsel %vm1409, %v2454, %v2639
      %v3509 = vsel %vm1409, %v2455, %v2641
      %v3510 = vsel %vm1409, %v2457, %v2643
      %v3511 = vsel %vm1409, %v2458, %v2645
      %v3512 = vsel %vm1409, %v2460, %v2647
      %v3513 = vsel %vm1409, %v2461, %v2649
      %v3514 = vsel %vm1409, %v2463, %v2651
      %v3515 = vsel %vm1409, %v2464, %v2653
      %v3516 = vsel %vm1409, %v2466, %v2655
      %v3517 = vsel %vm1409, %v2467, %v2657
      %v3518 = vsel %vm1409, %v2469, %v2659
      %v3519 = vsel %vm1409, %v2470, %v2661
      %v3520 = vsel %vm1409, %v2472, %v2663
      %v3521 = vsel %vm1409, %v2473, %v2665
      %v3522 = vsel %vm1409, %v2475, %v2667
      %v3523 = vsel %vm1409, %v2476, %v2669
      %v3524 = vsel %vm1409, %v2478, %v2671
      %v3525 = vsel %vm1409, %v2479, %v2673
      %v3526 = vsel %vm1409, %v2481, %v2675
      %v3527 = vsel %vm1409, %v2482, %v2677
      %v3528 = vsel %vm1409, %v2484, %v2679
      %v3529 = vsel %vm1409, %v2485, %v2681
      %v3530 = vsel %vm1409, %v2487, %v2683
      %v3531 = vsel %vm1409, %v2488, %v2685
      %v3532 = vsel %vm1409, %v2490, %v2687
      %v3533 = vsel %vm1409, %v2491, %v2689
      %v3534 = vsel %vm1409, %v2493, %v2691
      %v3535 = vsel %vm1409, %v2494, %v2693
      %v3536 = vsel %vm1475, %v3504, %v2807
      %v3537 = vsel %vm1475, %v3505, %v2809
      %v3538 = vsel %vm1475, %v3506, %v2811
      %v3539 = vsel %vm1475, %v3507, %v2813
      %v3540 = vsel %vm1475, %v3508, %v2815
      %v3541 = vsel %vm1475, %v3509, %v2817
      %v3542 = vsel %vm1475, %v3510, %v2819
      %v3543 = vsel %vm1475, %v3511, %v2821
      %v3544 = vsel %vm1475, %v3512, %v2823
      %v3545 = vsel %vm1475, %v3513, %v2825
      %v3546 = vsel %vm1475, %v3514, %v2827
      %v3547 = vsel %vm1475, %v3515, %v2829
      %v3548 = vsel %vm1475, %v3516, %v2831
      %v3549 = vsel %vm1475, %v3517, %v2833
      %v3550 = vsel %vm1475, %v3518, %v2835
      %v3551 = vsel %vm1475, %v3519, %v2837
      %v3552 = vsel %vm1475, %v3520, %v2839
      %v3553 = vsel %vm1475, %v3521, %v2841
      %v3554 = vsel %vm1475, %v3522, %v2843
      %v3555 = vsel %vm1475, %v3523, %v2845
      %v3556 = vsel %vm1475, %v3524, %v2847
      %v3557 = vsel %vm1475, %v3525, %v2849
      %v3558 = vsel %vm1475, %v3526, %v2851
      %v3559 = vsel %vm1475, %v3527, %v2853
      %v3560 = vsel %vm1475, %v3528, %v2855
      %v3561 = vsel %vm1475, %v3529, %v2857
      %v3562 = vsel %vm1475, %v3530, %v2859
      %v3563 = vsel %vm1475, %v3531, %v2861
      %v3564 = vsel %vm1475, %v3532, %v2863
      %v3565 = vsel %vm1475, %v3533, %v2865
      %v3566 = vsel %vm1475, %v3534, %v2867
      %v3567 = vsel %vm1475, %v3535, %v2869
      %v3568 = vsel %vm1541, %v3536, %v2905
      %v3569 = vsel %vm1541, %v3537, %v2907
      %v3570 = vsel %vm1541, %v3538, %v2909
      %v3571 = vsel %vm1541, %v3539, %v2911
      %v3572 = vsel %vm1541, %v3540, %v2913
      %v3573 = vsel %vm1541, %v3541, %v2915
      %v3574 = vsel %vm1541, %v3542, %v2917
      %v3575 = vsel %vm1541, %v3543, %v2919
      %v3576 = vsel %vm1541, %v3544, %v2921
      %v3577 = vsel %vm1541, %v3545, %v2923
      %v3578 = vsel %vm1541, %v3546, %v2925
      %v3579 = vsel %vm1541, %v3547, %v2927
      %v3580 = vsel %vm1541, %v3548, %v2929
      %v3581 = vsel %vm1541, %v3549, %v2931
      %v3582 = vsel %vm1541, %v3550, %v2933
      %v3583 = vsel %vm1541, %v3551, %v2935
      %v3584 = vsel %vm1541, %v3552, %v2937
      %v3585 = vsel %vm1541, %v3553, %v2939
      %v3586 = vsel %vm1541, %v3554, %v2941
      %v3587 = vsel %vm1541, %v3555, %v2943
      %v3588 = vsel %vm1541, %v3556, %v2945
      %v3589 = vsel %vm1541, %v3557, %v2947
      %v3590 = vsel %vm1541, %v3558, %v2949
      %v3591 = vsel %vm1541, %v3559, %v2951
      %v3592 = vsel %vm1541, %v3560, %v2953
      %v3593 = vsel %vm1541, %v3561, %v2955
      %v3594 = vsel %vm1541, %v3562, %v2957
      %v3595 = vsel %vm1541, %v3563, %v2959
      %v3596 = vsel %vm1541, %v3564, %v2961
      %v3597 = vsel %vm1541, %v3565, %v2963
      %v3598 = vsel %vm1541, %v3566, %v2965
      %v3599 = vsel %vm1541, %v3567, %v2967
      %v3600 = vsel %vm1607, %v3568, %v3007
      %v3601 = vsel %vm1607, %v3569, %v3009
      %v3602 = vsel %vm1607, %v3570, %v3011
      %v3603 = vsel %vm1607, %v3571, %v3013
      %v3604 = vsel %vm1607, %v3572, %v3015
      %v3605 = vsel %vm1607, %v3573, %v3017
      %v3606 = vsel %vm1607, %v3574, %v3019
      %v3607 = vsel %vm1607, %v3575, %v3021
      %v3608 = vsel %vm1607, %v3576, %v3023
      %v3609 = vsel %vm1607, %v3577, %v3025
      %v3610 = vsel %vm1607, %v3578, %v3027
      %v3611 = vsel %vm1607, %v3579, %v3029
      %v3612 = vsel %vm1607, %v3580, %v3031
      %v3613 = vsel %vm1607, %v3581, %v3033
      %v3614 = vsel %vm1607, %v3582, %v3035
      %v3615 = vsel %vm1607, %v3583, %v3037
      %v3616 = vsel %vm1607, %v3584, %v3039
      %v3617 = vsel %vm1607, %v3585, %v3041
      %v3618 = vsel %vm1607, %v3586, %v3043
      %v3619 = vsel %vm1607, %v3587, %v3045
      %v3620 = vsel %vm1607, %v3588, %v3047
      %v3621 = vsel %vm1607, %v3589, %v3049
      %v3622 = vsel %vm1607, %v3590, %v3051
      %v3623 = vsel %vm1607, %v3591, %v3053
      %v3624 = vsel %vm1607, %v3592, %v3055
      %v3625 = vsel %vm1607, %v3593, %v3057
      %v3626 = vsel %vm1607, %v3594, %v3059
      %v3627 = vsel %vm1607, %v3595, %v3061
      %v3628 = vsel %vm1607, %v3596, %v3063
      %v3629 = vsel %vm1607, %v3597, %v3065
      %v3630 = vsel %vm1607, %v3598, %v3067
      %v3631 = vsel %vm1607, %v3599, %v3069
      %vm3632 = vcmask 326656
      %v3633 = vsel %vm3632, %v3600, %v3108
      %v3634 = vsel %vm3632, %v3601, %v3110
      %v3635 = vsel %vm3632, %v3602, %v3112
      %v3636 = vsel %vm3632, %v3603, %v3114
      %v3637 = vsel %vm3632, %v3604, %v3116
      %v3638 = vsel %vm3632, %v3605, %v3118
      %v3639 = vsel %vm3632, %v3606, %v3120
      %v3640 = vsel %vm3632, %v3607, %v3122
      %v3641 = vsel %vm3632, %v3608, %v3124
      %v3642 = vsel %vm3632, %v3609, %v3126
      %v3643 = vsel %vm3632, %v3610, %v3128
      %v3644 = vsel %vm3632, %v3611, %v3130
      %v3645 = vsel %vm3632, %v3612, %v3132
      %v3646 = vsel %vm3632, %v3613, %v3134
      %v3647 = vsel %vm3632, %v3614, %v3136
      %v3648 = vsel %vm3632, %v3615, %v3138
      %v3649 = vsel %vm3632, %v3616, %v3140
      %v3650 = vsel %vm3632, %v3617, %v3142
      %v3651 = vsel %vm3632, %v3618, %v3144
      %v3652 = vsel %vm3632, %v3619, %v3146
      %v3653 = vsel %vm3632, %v3620, %v3148
      %v3654 = vsel %vm3632, %v3621, %v3150
      %v3655 = vsel %vm3632, %v3622, %v3152
      %v3656 = vsel %vm3632, %v3623, %v3154
      %v3657 = vsel %vm3632, %v3624, %v3156
      %v3658 = vsel %vm3632, %v3625, %v3158
      %v3659 = vsel %vm3632, %v3626, %v3160
      %v3660 = vsel %vm3632, %v3627, %v3162
      %v3661 = vsel %vm3632, %v3628, %v3164
      %v3662 = vsel %vm3632, %v3629, %v3166
      %v3663 = vsel %vm3632, %v3630, %v3168
      %v3664 = vsel %vm3632, %v3631, %v3170
      %vm3665 = vcmask 392192
      %v3666 = vsel %vm3665, %v3633, %v3206
      %v3667 = vsel %vm3665, %v3634, %v3208
      %v3668 = vsel %vm3665, %v3635, %v3210
      %v3669 = vsel %vm3665, %v3636, %v3212
      %v3670 = vsel %vm3665, %v3637, %v3214
      %v3671 = vsel %vm3665, %v3638, %v3216
      %v3672 = vsel %vm3665, %v3639, %v3218
      %v3673 = vsel %vm3665, %v3640, %v3220
      %v3674 = vsel %vm3665, %v3641, %v3222
      %v3675 = vsel %vm3665, %v3642, %v3224
      %v3676 = vsel %vm3665, %v3643, %v3226
      %v3677 = vsel %vm3665, %v3644, %v3228
      %v3678 = vsel %vm3665, %v3645, %v3230
      %v3679 = vsel %vm3665, %v3646, %v3232
      %v3680 = vsel %vm3665, %v3647, %v3234
      %v3681 = vsel %vm3665, %v3648, %v3236
      %v3682 = vsel %vm3665, %v3649, %v3238
      %v3683 = vsel %vm3665, %v3650, %v3240
      %v3684 = vsel %vm3665, %v3651, %v3242
      %v3685 = vsel %vm3665, %v3652, %v3244
      %v3686 = vsel %vm3665, %v3653, %v3246
      %v3687 = vsel %vm3665, %v3654, %v3248
      %v3688 = vsel %vm3665, %v3655, %v3250
      %v3689 = vsel %vm3665, %v3656, %v3252
      %v3690 = vsel %vm3665, %v3657, %v3254
      %v3691 = vsel %vm3665, %v3658, %v3256
      %v3692 = vsel %vm3665, %v3659, %v3258
      %v3693 = vsel %vm3665, %v3660, %v3260
      %v3694 = vsel %vm3665, %v3661, %v3262
      %v3695 = vsel %vm3665, %v3662, %v3264
      %v3696 = vsel %vm3665, %v3663, %v3266
      %v3697 = vsel %vm3665, %v3664, %v3268
      %vm3698 = vcmask 457728
      %v3699 = vsel %vm3698, %v3666, %v3308
      %v3700 = vsel %vm3698, %v3667, %v3310
      %v3701 = vsel %vm3698, %v3668, %v3312
      %v3702 = vsel %vm3698, %v3669, %v3314
      %v3703 = vsel %vm3698, %v3670, %v3316
      %v3704 = vsel %vm3698, %v3671, %v3318
      %v3705 = vsel %vm3698, %v3672, %v3320
      %v3706 = vsel %vm3698, %v3673, %v3322
      %v3707 = vsel %vm3698, %v3674, %v3324
      %v3708 = vsel %vm3698, %v3675, %v3326
      %v3709 = vsel %vm3698, %v3676, %v3328
      %v3710 = vsel %vm3698, %v3677, %v3330
      %v3711 = vsel %vm3698, %v3678, %v3332
      %v3712 = vsel %vm3698, %v3679, %v3334
      %v3713 = vsel %vm3698, %v3680, %v3336
      %v3714 = vsel %vm3698, %v3681, %v3338
      %v3715 = vsel %vm3698, %v3682, %v3340
      %v3716 = vsel %vm3698, %v3683, %v3342
      %v3717 = vsel %vm3698, %v3684, %v3344
      %v3718 = vsel %vm3698, %v3685, %v3346
      %v3719 = vsel %vm3698, %v3686, %v3348
      %v3720 = vsel %vm3698, %v3687, %v3350
      %v3721 = vsel %vm3698, %v3688, %v3352
      %v3722 = vsel %vm3698, %v3689, %v3354
      %v3723 = vsel %vm3698, %v3690, %v3356
      %v3724 = vsel %vm3698, %v3691, %v3358
      %v3725 = vsel %vm3698, %v3692, %v3360
      %v3726 = vsel %vm3698, %v3693, %v3362
      %v3727 = vsel %vm3698, %v3694, %v3364
      %v3728 = vsel %vm3698, %v3695, %v3366
      %v3729 = vsel %vm3698, %v3696, %v3368
      %v3730 = vsel %vm3698, %v3697, %v3370
      %vm3731 = vcmask 523264
      %v3732 = vsel %vm3731, %v3699, %v3409
      %v3733 = vsel %vm3731, %v3700, %v3411
      %v3734 = vsel %vm3731, %v3701, %v3413
      %v3735 = vsel %vm3731, %v3702, %v3415
      %v3736 = vsel %vm3731, %v3703, %v3417
      %v3737 = vsel %vm3731, %v3704, %v3419
      %v3738 = vsel %vm3731, %v3705, %v3421
      %v3739 = vsel %vm3731, %v3706, %v3423
      %v3740 = vsel %vm3731, %v3707, %v3425
      %v3741 = vsel %vm3731, %v3708, %v3427
      %v3742 = vsel %vm3731, %v3709, %v3429
      %v3743 = vsel %vm3731, %v3710, %v3431
      %v3744 = vsel %vm3731, %v3711, %v3433
      %v3745 = vsel %vm3731, %v3712, %v3435
      %v3746 = vsel %vm3731, %v3713, %v3437
      %v3747 = vsel %vm3731, %v3714, %v3439
      %v3748 = vsel %vm3731, %v3715, %v3441
      %v3749 = vsel %vm3731, %v3716, %v3443
      %v3750 = vsel %vm3731, %v3717, %v3445
      %v3751 = vsel %vm3731, %v3718, %v3447
      %v3752 = vsel %vm3731, %v3719, %v3449
      %v3753 = vsel %vm3731, %v3720, %v3451
      %v3754 = vsel %vm3731, %v3721, %v3453
      %v3755 = vsel %vm3731, %v3722, %v3455
      %v3756 = vsel %vm3731, %v3723, %v3457
      %v3757 = vsel %vm3731, %v3724, %v3459
      %v3758 = vsel %vm3731, %v3725, %v3461
      %v3759 = vsel %vm3731, %v3726, %v3463
      %v3760 = vsel %vm3731, %v3727, %v3465
      %v3761 = vsel %vm3731, %v3728, %v3467
      %v3762 = vsel %vm3731, %v3729, %v3469
      %v3763 = vsel %vm3731, %v3730, %v3471
      %v3764 = vld [vmem:[%s2] sm:$0xff]
      %v3765 = vld [vmem:[%s2 + $0x8] sm:$0xff]
      %v3766 = vld [vmem:[%s2 + $0x10] sm:$0xff]
      %v3767 = vld [vmem:[%s2 + $0x18] sm:$0xff]
      %v3768 = vld [vmem:[%s2 + $0x20] sm:$0xff]
      %v3769 = vld [vmem:[%s2 + $0x28] sm:$0xff]
      %v3770 = vld [vmem:[%s2 + $0x30] sm:$0xff]
      %v3771 = vld [vmem:[%s2 + $0x38] sm:$0xff]
      %v3772 = vld [vmem:[%s2 + $0x40] sm:$0xff]
      %vm3773 = vcmask 588800
      %v3775 = vsel %vm3773, %v3732, 0
      %v3778 = vsel %vm3773, %v3733, 0
      %v3781 = vsel %vm3773, %v3734, 0
      %v3784 = vsel %vm3773, %v3735, 0
      %v3787 = vsel %vm3773, %v3736, 0
      %v3790 = vsel %vm3773, %v3737, 0
      %v3793 = vsel %vm3773, %v3738, 0
      %v3796 = vsel %vm3773, %v3739, 0
      %v3799 = vsel %vm3773, %v3740, 0
      %v3802 = vsel %vm3773, %v3741, 0
      %v3805 = vsel %vm3773, %v3742, 0
      %v3808 = vsel %vm3773, %v3743, 0
      %v3811 = vsel %vm3773, %v3744, 0
      %v3814 = vsel %vm3773, %v3745, 0
      %v3817 = vsel %vm3773, %v3746, 0
      %v3820 = vsel %vm3773, %v3747, 0
      %v3823 = vsel %vm3773, %v3748, 0
      %v3826 = vsel %vm3773, %v3749, 0
      %v3829 = vsel %vm3773, %v3750, 0
      %v3832 = vsel %vm3773, %v3751, 0
      %v3835 = vsel %vm3773, %v3752, 0
      %v3838 = vsel %vm3773, %v3753, 0
      %v3841 = vsel %vm3773, %v3754, 0
      %v3844 = vsel %vm3773, %v3755, 0
      %v3847 = vsel %vm3773, %v3756, 0
      %v3850 = vsel %vm3773, %v3757, 0
      %v3853 = vsel %vm3773, %v3758, 0
      %v3856 = vsel %vm3773, %v3759, 0
      %v3859 = vsel %vm3773, %v3760, 0
      %v3862 = vsel %vm3773, %v3761, 0
      %v3865 = vsel %vm3773, %v3762, 0
      %v3868 = vsel %vm3773, %v3763, 0
      %3870 = vmatprep.subr.mxu0 0.0
      %3871 = vmatpush1.msra.mxu0 %v3764
      %3872 = vmatprep.subr.mxu0 0.0
      %3873 = vmatpush1.msra.mxu0 %v3765
      %3874 = vmatprep.subr.mxu0 0.0
      %3875 = vmatpush1.msra.mxu0 %v3766
      %3876 = vmatprep.subr.mxu0 0.0
      %3877 = vmatpush1.msra.mxu0 %v3767
      %3878 = vmatprep.subr.mxu0 0.0
      %3879 = vmatpush1.msra.mxu0 %v3768
      %3880 = vmatprep.subr.mxu0 0.0
      %3881 = vmatpush1.msra.mxu0 %v3769
      %3882 = vmatprep.subr.mxu0 0.0
      %3883 = vmatpush1.msra.mxu0 %v3770
      %3884 = vmatprep.subr.mxu0 0.0
      %3885 = vmatpush1.msra.mxu0 %v3771
      %3886 = vmatprep.subr.mxu0 0.0
      %3887 = vmatpush1.msra.mxu0 %v3772
      %3888 = vmatprep.subr.mxu0 0.0
      %3889 = vmatpush1.msra.mxu0 0.0
      %3890 = vmatprep.subr.mxu0 0.0
      %3891 = vmatpush1.msra.mxu0 0.0
      %3892 = vmatprep.subr.mxu0 0.0
      %3893 = vmatpush1.msra.mxu0 0.0
      %3894 = vmatprep.subr.mxu0 0.0
      %3895 = vmatpush1.msra.mxu0 0.0
      %3896 = vmatprep.subr.mxu0 0.0
      %3897 = vmatpush1.msra.mxu0 0.0
      %3898 = vmatprep.subr.mxu0 0.0
      %3899 = vmatpush1.msra.mxu0 0.0
      %3900 = vmatprep.subr.mxu0 0.0
      %3901 = vmatpush1.msra.mxu0 0.0
      %3902 = vmatprep.subr.mxu0 0.0
      %3903 = vmatpush1.msra.mxu0 0.0
      %3904 = vmatprep.subr.mxu0 0.0
      %3905 = vmatpush1.msra.mxu0 0.0
      %3906 = vmatprep.subr.mxu0 0.0
      %3907 = vmatpush1.msra.mxu0 0.0
      %3908 = vmatprep.subr.mxu0 0.0
      %3909 = vmatpush1.msra.mxu0 0.0
      %3910 = vmatprep.subr.mxu0 0.0
      %3911 = vmatpush1.msra.mxu0 0.0
      %3912 = vmatprep.subr.mxu0 0.0
      %3913 = vmatpush1.msra.mxu0 0.0
      %3914 = vmatprep.subr.mxu0 0.0
      %3915 = vmatpush1.msra.mxu0 0.0
      %3916 = vmatprep.subr.mxu0 0.0
      %3917 = vmatpush1.msra.mxu0 0.0
      %3918 = vmatprep.subr.mxu0 0.0
      %3919 = vmatpush1.msra.mxu0 0.0
      %3920 = vmatprep.subr.mxu0 0.0
      %3921 = vmatpush1.msra.mxu0 0.0
      %3922 = vmatprep.subr.mxu0 0.0
      %3923 = vmatpush1.msra.mxu0 0.0
      %3924 = vmatprep.subr.mxu0 0.0
      %3925 = vmatpush1.msra.mxu0 0.0
      %3926 = vmatprep.subr.mxu0 0.0
      %3927 = vmatpush1.msra.mxu0 0.0
      %3928 = vmatprep.subr.mxu0 0.0
      %3929 = vmatpush1.msra.mxu0 0.0
      %3930 = vmatprep.subr.mxu0 0.0
      %3931 = vmatpush1.msra.mxu0 0.0
      %3932 = vmatprep.subr.mxu0 0.0
      %3933 = vmatpush1.msra.mxu0 0.0
      %3934 = vmatprep.mubr.f32.mxu0 0.0
      %3935 = vmatmul.mubr.f32.gmra.mrb[0].mxu0 %v3775
      %v3936 = vpop.f32.mrb[0].mxu0
      %v3937 = vadd.f32 %v2202, %v3936
      %v3938 = vpop.f32.mrb[0].mxu0
      %3939 = vmatprep.mubr.f32.mxu0 0.0
      %3940 = vmatmul.mubr.f32.gmra.mrb[0].mxu0 %v3778
      %v3941 = vpop.f32.mrb[0].mxu0
      %v3942 = vadd.f32 %v2207, %v3941
      %v3943 = vpop.f32.mrb[0].mxu0
      %3944 = vmatprep.mubr.f32.mxu0 0.0
      %3945 = vmatmul.mubr.f32.gmra.mrb[0].mxu0 %v3781
      %v3946 = vpop.f32.mrb[0].mxu0
      %v3947 = vadd.f32 %v2212, %v3946
      %v3948 = vpop.f32.mrb[0].mxu0
      %3949 = vmatprep.mubr.f32.mxu0 0.0
      %3950 = vmatmul.mubr.f32.gmra.mrb[0].mxu0 %v3784
      %v3951 = vpop.f32.mrb[0].mxu0
      %v3952 = vadd.f32 %v2217, %v3951
      %v3953 = vpop.f32.mrb[0].mxu0
      %3954 = vmatprep.mubr.f32.mxu0 0.0
      %3955 = vmatmul.mubr.f32.gmra.mrb[0].mxu0 %v3787
      %v3956 = vpop.f32.mrb[0].mxu0
      %v3957 = vadd.f32 %v2222, %v3956
      %v3958 = vpop.f32.mrb[0].mxu0
      %3959 = vmatprep.mubr.f32.mxu0 0.0
      %3960 = vmatmul.mubr.f32.gmra.mrb[0].mxu0 %v3790
      %v3961 = vpop.f32.mrb[0].mxu0
      %v3962 = vadd.f32 %v2227, %v3961
      %v3963 = vpop.f32.mrb[0].mxu0
      %3964 = vmatprep.mubr.f32.mxu0 0.0
      %3965 = vmatmul.mubr.f32.gmra.mrb[0].mxu0 %v3793
      %v3966 = vpop.f32.mrb[0].mxu0
      %v3967 = vadd.f32 %v2232, %v3966
      %v3968 = vpop.f32.mrb[0].mxu0
      %3969 = vmatprep.mubr.f32.mxu0 0.0
      %3970 = vmatmul.mubr.f32.gmra.mrb[0].mxu0 %v3796
      %v3971 = vpop.f32.mrb[0].mxu0
      %v3972 = vadd.f32 %v2237, %v3971
      %v3973 = vpop.f32.mrb[0].mxu0
      %3974 = vmatprep.mubr.f32.mxu0 0.0
      %3975 = vmatmul.mubr.f32.gmra.mrb[0].mxu0 %v3799
      %v3976 = vpop.f32.mrb[0].mxu0
      %v3977 = vadd.f32 %v2242, %v3976
      %v3978 = vpop.f32.mrb[0].mxu0
      %3979 = vmatprep.mubr.f32.mxu0 0.0
      %3980 = vmatmul.mubr.f32.gmra.mrb[0].mxu0 %v3802
      %v3981 = vpop.f32.mrb[0].mxu0
      %v3982 = vadd.f32 %v2247, %v3981
      %v3983 = vpop.f32.mrb[0].mxu0
      %3984 = vmatprep.mubr.f32.mxu0 0.0
      %3985 = vmatmul.mubr.f32.gmra.mrb[0].mxu0 %v3805
      %v3986 = vpop.f32.mrb[0].mxu0
      %v3987 = vadd.f32 %v2252, %v3986
      %v3988 = vpop.f32.mrb[0].mxu0
      %3989 = vmatprep.mubr.f32.mxu0 0.0
      %3990 = vmatmul.mubr.f32.gmra.mrb[0].mxu0 %v3808
      %v3991 = vpop.f32.mrb[0].mxu0
      %v3992 = vadd.f32 %v2257, %v3991
      %v3993 = vpop.f32.mrb[0].mxu0
      %3994 = vmatprep.mubr.f32.mxu0 0.0
      %3995 = vmatmul.mubr.f32.gmra.mrb[0].mxu0 %v3811
      %v3996 = vpop.f32.mrb[0].mxu0
      %v3997 = vadd.f32 %v2262, %v3996
      %v3998 = vpop.f32.mrb[0].mxu0
      %3999 = vmatprep.mubr.f32.mxu0 0.0
      %4000 = vmatmul.mubr.f32.gmra.mrb[0].mxu0 %v3814
      %v4001 = vpop.f32.mrb[0].mxu0
      %v4002 = vadd.f32 %v2267, %v4001
      %v4003 = vpop.f32.mrb[0].mxu0
      %4004 = vmatprep.mubr.f32.mxu0 0.0
      %4005 = vmatmul.mubr.f32.gmra.mrb[0].mxu0 %v3817
      %v4006 = vpop.f32.mrb[0].mxu0
      %v4007 = vadd.f32 %v2272, %v4006
      %v4008 = vpop.f32.mrb[0].mxu0
      %4009 = vmatprep.mubr.f32.mxu0 0.0
      %4010 = vmatmul.mubr.f32.gmra.mrb[0].mxu0 %v3820
      %v4011 = vpop.f32.mrb[0].mxu0
      %v4012 = vadd.f32 %v2277, %v4011
      %v4013 = vpop.f32.mrb[0].mxu0
      %4014 = vmatprep.mubr.f32.mxu0 0.0
      %4015 = vmatmul.mubr.f32.gmra.mrb[0].mxu0 %v3823
      %v4016 = vpop.f32.mrb[0].mxu0
      %v4017 = vadd.f32 %v2282, %v4016
      %v4018 = vpop.f32.mrb[0].mxu0
      %4019 = vmatprep.mubr.f32.mxu0 0.0
      %4020 = vmatmul.mubr.f32.gmra.mrb[0].mxu0 %v3826
      %v4021 = vpop.f32.mrb[0].mxu0
      %v4022 = vadd.f32 %v2287, %v4021
      %v4023 = vpop.f32.mrb[0].mxu0
      %4024 = vmatprep.mubr.f32.mxu0 0.0
      %4025 = vmatmul.mubr.f32.gmra.mrb[0].mxu0 %v3829
      %v4026 = vpop.f32.mrb[0].mxu0
      %v4027 = vadd.f32 %v2292, %v4026
      %v4028 = vpop.f32.mrb[0].mxu0
      %4029 = vmatprep.mubr.f32.mxu0 0.0
      %4030 = vmatmul.mubr.f32.gmra.mrb[0].mxu0 %v3832
      %v4031 = vpop.f32.mrb[0].mxu0
      %v4032 = vadd.f32 %v2297, %v4031
      %v4033 = vpop.f32.mrb[0].mxu0
      %4034 = vmatprep.mubr.f32.mxu0 0.0
      %4035 = vmatmul.mubr.f32.gmra.mrb[0].mxu0 %v3835
      %v4036 = vpop.f32.mrb[0].mxu0
      %v4037 = vadd.f32 %v2302, %v4036
      %v4038 = vpop.f32.mrb[0].mxu0
      %4039 = vmatprep.mubr.f32.mxu0 0.0
      %4040 = vmatmul.mubr.f32.gmra.mrb[0].mxu0 %v3838
      %v4041 = vpop.f32.mrb[0].mxu0
      %v4042 = vadd.f32 %v2307, %v4041
      %v4043 = vpop.f32.mrb[0].mxu0
      %4044 = vmatprep.mubr.f32.mxu0 0.0
      %4045 = vmatmul.mubr.f32.gmra.mrb[0].mxu0 %v3841
      %v4046 = vpop.f32.mrb[0].mxu0
      %v4047 = vadd.f32 %v2312, %v4046
      %v4048 = vpop.f32.mrb[0].mxu0
      %4049 = vmatprep.mubr.f32.mxu0 0.0
      %4050 = vmatmul.mubr.f32.gmra.mrb[0].mxu0 %v3844
      %v4051 = vpop.f32.mrb[0].mxu0
      %v4052 = vadd.f32 %v2317, %v4051
      %v4053 = vpop.f32.mrb[0].mxu0
      %4054 = vmatprep.mubr.f32.mxu0 0.0
      %4055 = vmatmul.mubr.f32.gmra.mrb[0].mxu0 %v3847
      %v4056 = vpop.f32.mrb[0].mxu0
      %v4057 = vadd.f32 %v2322, %v4056
      %v4058 = vpop.f32.mrb[0].mxu0
      %4059 = vmatprep.mubr.f32.mxu0 0.0
      %4060 = vmatmul.mubr.f32.gmra.mrb[0].mxu0 %v3850
      %v4061 = vpop.f32.mrb[0].mxu0
      %v4062 = vadd.f32 %v2327, %v4061
      %v4063 = vpop.f32.mrb[0].mxu0
      %4064 = vmatprep.mubr.f32.mxu0 0.0
      %4065 = vmatmul.mubr.f32.gmra.mrb[0].mxu0 %v3853
      %v4066 = vpop.f32.mrb[0].mxu0
      %v4067 = vadd.f32 %v2332, %v4066
      %v4068 = vpop.f32.mrb[0].mxu0
      %4069 = vmatprep.mubr.f32.mxu0 0.0
      %4070 = vmatmul.mubr.f32.gmra.mrb[0].mxu0 %v3856
      %v4071 = vpop.f32.mrb[0].mxu0
      %v4072 = vadd.f32 %v2337, %v4071
      %v4073 = vpop.f32.mrb[0].mxu0
      %4074 = vmatprep.mubr.f32.mxu0 0.0
      %4075 = vmatmul.mubr.f32.gmra.mrb[0].mxu0 %v3859
      %v4076 = vpop.f32.mrb[0].mxu0
      %v4077 = vadd.f32 %v2342, %v4076
      %v4078 = vpop.f32.mrb[0].mxu0
      %4079 = vmatprep.mubr.f32.mxu0 0.0
      %4080 = vmatmul.mubr.f32.gmra.mrb[0].mxu0 %v3862
      %v4081 = vpop.f32.mrb[0].mxu0
      %v4082 = vadd.f32 %v2347, %v4081
      %v4083 = vpop.f32.mrb[0].mxu0
      %4084 = vmatprep.mubr.f32.mxu0 0.0
      %4085 = vmatmul.mubr.f32.gmra.mrb[0].mxu0 %v3865
      %v4086 = vpop.f32.mrb[0].mxu0
      %v4087 = vadd.f32 %v2352, %v4086
      %v4088 = vpop.f32.mrb[0].mxu0
      %4089 = vmatprep.mubr.f32.mxu0 0.0
      %4090 = vmatmul.mubr.f32.gmra.mrb[0].mxu0 %v3868
      %v4091 = vpop.f32.mrb[0].mxu0
      %v4092 = vadd.f32 %v2357, %v4091
      %v4093 = vpop.f32.mrb[0].mxu0
      %4094 = vdwg.mxu0
      %v4095 = vmax.f32 %v3937, 0.0
      %v4096 = vmax.f32 %v3942, 0.0
      %v4097 = vmax.f32 %v3947, 0.0
      %v4098 = vmax.f32 %v3952, 0.0
      %v4099 = vmax.f32 %v3957, 0.0
      %v4100 = vmax.f32 %v3962, 0.0
      %v4101 = vmax.f32 %v3967, 0.0
      %v4102 = vmax.f32 %v3972, 0.0
      %v4103 = vmax.f32 %v3977, 0.0
      %v4104 = vmax.f32 %v3982, 0.0
      %v4105 = vmax.f32 %v3987, 0.0
      %v4106 = vmax.f32 %v3992, 0.0
      %v4107 = vmax.f32 %v3997, 0.0
      %v4108 = vmax.f32 %v4002, 0.0
      %v4109 = vmax.f32 %v4007, 0.0
      %v4110 = vmax.f32 %v4012, 0.0
      %v4111 = vmax.f32 %v4017, 0.0
      %v4112 = vmax.f32 %v4022, 0.0
      %v4113 = vmax.f32 %v4027, 0.0
      %v4114 = vmax.f32 %v4032, 0.0
      %v4115 = vmax.f32 %v4037, 0.0
      %v4116 = vmax.f32 %v4042, 0.0
      %v4117 = vmax.f32 %v4047, 0.0
      %v4118 = vmax.f32 %v4052, 0.0
      %v4119 = vmax.f32 %v4057, 0.0
      %v4120 = vmax.f32 %v4062, 0.0
      %v4121 = vmax.f32 %v4067, 0.0
      %v4122 = vmax.f32 %v4072, 0.0
      %v4123 = vmax.f32 %v4077, 0.0
      %v4124 = vmax.f32 %v4082, 0.0
      %v4125 = vmax.f32 %v4087, 0.0
      %v4126 = vmax.f32 %v4092, 0.0
      %4127 = vst.msk [vmem:[%s197] sm:$0xff] %vm1409, %v4095
      %4128 = vst.msk [vmem:[%s197 + $0x8] sm:$0xff] %vm1409, %v4096
      %4129 = vst.msk [vmem:[%s197 + $0x10] sm:$0xff] %vm1409, %v4097
      %4130 = vst.msk [vmem:[%s197 + $0x18] sm:$0xff] %vm1409, %v4098
      %4131 = vst.msk [vmem:[%s197 + $0x20] sm:$0xff] %vm1409, %v4099
      %4132 = vst.msk [vmem:[%s197 + $0x28] sm:$0xff] %vm1409, %v4100
      %4133 = vst.msk [vmem:[%s197 + $0x30] sm:$0xff] %vm1409, %v4101
      %4134 = vst.msk [vmem:[%s197 + $0x38] sm:$0xff] %vm1409, %v4102
      %4135 = vst.msk [vmem:[%s197 + $0x40] sm:$0xff] %vm1409, %v4103
      %4136 = vst.msk [vmem:[%s197 + $0x48] sm:$0xff] %vm1409, %v4104
      %4137 = vst.msk [vmem:[%s197 + $0x50] sm:$0xff] %vm1409, %v4105
      %4138 = vst.msk [vmem:[%s197 + $0x58] sm:$0xff] %vm1409, %v4106
      %4139 = vst.msk [vmem:[%s197 + $0x60] sm:$0xff] %vm1409, %v4107
      %4140 = vst.msk [vmem:[%s197 + $0x68] sm:$0xff] %vm1409, %v4108
      %4141 = vst.msk [vmem:[%s197 + $0x70] sm:$0xff] %vm1409, %v4109
      %4142 = vst.msk [vmem:[%s197 + $0x78] sm:$0xff] %vm1409, %v4110
      %4143 = vst.msk [vmem:[%s197 + $0x80] sm:$0xff] %vm1409, %v4111
      %4144 = vst.msk [vmem:[%s197 + $0x88] sm:$0xff] %vm1409, %v4112
      %4145 = vst.msk [vmem:[%s197 + $0x90] sm:$0xff] %vm1409, %v4113
      %4146 = vst.msk [vmem:[%s197 + $0x98] sm:$0xff] %vm1409, %v4114
      %4147 = vst.msk [vmem:[%s197 + $0xa0] sm:$0xff] %vm1409, %v4115
      %4148 = vst.msk [vmem:[%s197 + $0xa8] sm:$0xff] %vm1409, %v4116
      %4149 = vst.msk [vmem:[%s197 + $0xb0] sm:$0xff] %vm1409, %v4117
      %4150 = vst.msk [vmem:[%s197 + $0xb8] sm:$0xff] %vm1409, %v4118
      %4151 = vst.msk [vmem:[%s197 + $0xc0] sm:$0xff] %vm1409, %v4119
      %4152 = vst.msk [vmem:[%s197 + $0xc8] sm:$0xff] %vm1409, %v4120
      %4153 = vst.msk [vmem:[%s197 + $0xd0] sm:$0xff] %vm1409, %v4121
      %4154 = vst.msk [vmem:[%s197 + $0xd8] sm:$0xff] %vm1409, %v4122
      %4155 = vst.msk [vmem:[%s197 + $0xe0] sm:$0xff] %vm1409, %v4123
      %4156 = vst.msk [vmem:[%s197 + $0xe8] sm:$0xff] %vm1409, %v4124
      %4157 = vst.msk [vmem:[%s197 + $0xf0] sm:$0xff] %vm1409, %v4125
      %4158 = vst.msk [vmem:[%s197 + $0xf8] sm:$0xff] %vm1409, %v4126
      %p4159 = scmp.lt.s32.totalorder %s15, 1
      %s4160 = scalar_select %p4159, %s15, 1
      %s4161 = smul.addr %s4160, 32
      %s4162 = smul.addr %s4161, 8
      %s4163 = scalar_lea.vmem %s4, %s4162
      // Predicated region
      $region37: #{basic_block_forward.1} parent=35 // pred_check
        %p4164 = pneg %p122
      $region38: #{basic_block_forward.1} parent=35 // pred_check_branch
        %4166 = sbr.rel (%p4164) target = $region40
      $region39: #{basic_block_forward.1} parent=35 // pred_region
        _
      $region40: #{basic_block_forward.1} parent=35 // pred_fallthru
        _
    $region36: #{basic_block_forward.1} parent=5 // pred_fallthru
      _
    %p4167 = scmp.le.s32.totalorder 2, %s10
    // Predicated region
    $region41: #{basic_block_forward.1} parent=5 // pred_check
      %p4168 = pneg %p4167
    $region42: #{basic_block_forward.1} parent=5 // pred_check_branch
      %4170 = sbr.rel (%p4168) target = $region44
    $region43: #{basic_block_forward.1} parent=5 // pred_region
      %s4171 = ssub.s32 %s10, 2
      // Predicated region
      $region45: #{basic_block_forward.1} parent=43 // pred_check
        %p4172 = pneg %p128
      $region46: #{basic_block_forward.1} parent=43 // pred_check_branch
        %4174 = sbr.rel (%p4172) target = $region48
      $region47: #{basic_block_forward.1} parent=43 // pred_region
        %p4175 = scmp.lt.s32.totalorder %s16, 1
        %s4176 = scalar_select %p4175, %s16, 1
        %s4177 = smul.addr %s4176, 32
        %s4178 = smul.addr %s4177, 8
        %s4179 = scalar_lea.vmem %s4, %s4178
      $region48: #{basic_block_forward.1} parent=43 // pred_fallthru
        _
    $region44: #{basic_block_forward.1} parent=5 // pred_fallthru
      _
  $region6: #{basic_block_forward.1} parent=0 // loop_footer
    %s14 = sadd.s32 1, %s10
  $region7: #{basic_block_forward.1} parent=0 // loop_footer_branch
    %9 = sbr.rel target = $region3
  $region8: #{basic_block_forward.1} parent=0 // loop_exit
    _

</llo_original>
